<compile_context>
chip_gen: v5e
topology: v5e:2x2
jax: 0.10.0
libtpu: 0.0.40
codegen_flags: <defaults>
</compile_context>

<pallas_src>
import jax
import jax.numpy as jnp
import numpy as np
from jax.experimental import pallas as pl
from jax.experimental.pallas import tpu as pltpu

EPS = 1e-5
MM_DTYPE = jnp.bfloat16   # MXU operand dtype; accumulation and norm math stay f32.


def _shift_h(a, dy):
    """tap[:, i] = a[:, i+dy-1] with zero padding; dy in {0,1,2} (axis=1, leading dim)."""
    if dy == 1:
        return a
    zero = jnp.zeros_like(a[:, :1])
    if dy == 0:                                          # needs row i-1
        return jnp.concatenate([zero, a[:, :-1]], axis=1)
    return jnp.concatenate([a[:, 1:], zero], axis=1)     # dy == 2: needs row i+1


def _shift_w(a, dx):
    """tap[:, :, j] = a[:, :, j+dx-1] with zero padding; dx in {0,1,2} (axis=2, sublane dim)."""
    if dx == 1:
        return a
    zero = jnp.zeros_like(a[:, :, :1])
    if dx == 0:
        return jnp.concatenate([zero, a[:, :, :-1]], axis=2)
    return jnp.concatenate([a[:, :, 1:], zero], axis=2)


def down_kernel(x_ref, w1_ref, w2_ref, o_ref):
    """One batch-tile per grid step.

    x_ref : (Bt, Hh, 2, Wh, 2*Cin) f32  -- free reshape of the NHWC input block
    w1_ref: (9, Cin,  Cmid) bf16        -- conv1 taps, (dy,dx) row-major == HWIO order
    w2_ref: (9, Cmid, Cout) bf16
    o_ref : (Bt, Hh*Wh*Cout) f32 lane-dense slab, or (Bt, Hh*Wh, Cout) when Cout
            is already a multiple of 128.
    """
    Bt, Hh, _, Wh, C2 = x_ref.shape
    Cin = C2 // 2
    Cmid = w1_ref.shape[2]
    Cout = w2_ref.shape[2]
    M = Bt * Hh * Wh
    inv_hw = 1.0 / float(Hh * Wh)

    # ---- MaxPool2d(2): max over the H pair (dim 2) then the W pair (lane halves).
    top = x_ref[:, :, 0]                                  # (Bt, Hh, Wh, 2*Cin) even rows
    bot = x_ref[:, :, 1]                                  # odd rows
    mh = jnp.maximum(top, bot)
    pooled = jnp.maximum(mh[..., :Cin], mh[..., Cin:])    # (Bt, Hh, Wh, Cin) f32

    def conv_in_relu(a, w_ref):
        """3x3 SAME conv (bias-free) as 9 accumulated tap matmuls + InstanceNorm + ReLU."""
        c_in = a.shape[-1]
        c_out = w_ref.shape[2]
        acc = jnp.zeros((M, c_out), jnp.float32)
        for dy in range(3):                               # shifts stay f32 (exact);
            row = _shift_h(a, dy)                         # only MXU operands go bf16
            for dx in range(3):
                t = _shift_w(row, dx).reshape(M, c_in).astype(w_ref.dtype)
                acc = acc + jnp.dot(t, w_ref[dy * 3 + dx],
                                    preferred_element_type=jnp.float32)
        acc = acc.reshape(Bt, Hh * Wh, c_out)
        # InstanceNorm2d (affine=False, biased variance) per image, single-pass stats.
        s1 = jnp.sum(acc, axis=1, keepdims=True)
        s2 = jnp.sum(acc * acc, axis=1, keepdims=True)
        mean = s1 * inv_hw
        var = jnp.maximum(s2 * inv_hw - mean * mean, 0.0)  # clamp: avoid NaN from cancellation
        return jnp.maximum((acc - mean) * jax.lax.rsqrt(var + EPS), 0.0)

    h1 = conv_in_relu(pooled, w1_ref).reshape(Bt, Hh, Wh, Cmid)
    h2 = conv_in_relu(h1, w2_ref)                         # (Bt, Hh*Wh, Cout) f32
    if len(o_ref.shape) == 2:                             # lane-dense output slab
        o_ref[...] = h2.reshape(Bt, Hh * Wh * Cout).astype(o_ref.dtype)
    else:
        o_ref[...] = h2.astype(o_ref.dtype)


def _vmem_info():
    """(vmem capacity bytes, looks-like-two-TensorCore-chip) with a safe fallback."""
    try:
        info = pltpu.get_tpu_info()
        cap = int(getattr(info, "vmem_capacity_bytes", 64 * 1024 * 1024))
    except Exception:
        cap = 64 * 1024 * 1024                            # conservative (v7x-sized) fallback
    two_tc = cap <= 80 * 1024 * 1024                      # v7x heuristic: 64 MiB/TC, 2 TC/chip
    return cap, two_tc


def _block_bytes(bt, hh, wh, cin, cmid, cout):
    """Rough per-grid-step VMEM footprint estimate."""
    f4 = 4
    f2 = jnp.dtype(MM_DTYPE).itemsize
    hw = bt * hh * wh
    in_blk = bt * hh * 2 * wh * 2 * cin * f4
    out_blk = hw * cout * f4
    weights = 9 * (cin * cmid + cmid * cout) * f2
    act = hw * (cin * (f4 + f2)             # pooled + one bf16 tap
                + cmid * (2 * f4 + f2)      # conv1 acc, h1, one bf16 tap
                + cout * 2 * f4             # conv2 acc, output staging
                + 2 * max(cin, cmid) * f4)  # a couple of live f32 shift temporaries
    return 2 * in_blk + 2 * out_blk + 2 * weights + act


def _pick_batch_tile(n, hh, wh, cin, cmid, cout, vmem_cap, min_steps):
    """Largest divisor of n that fits the VMEM cap and leaves >= min_steps grid steps."""
    hw = hh * wh
    best = 1
    for d in range(1, n + 1):
        if n % d:
            continue
        if n // d < min(min_steps, n):
            continue
        if d * hw > max(1024, hw):                        # keep the matmul M dimension sane
            continue
        if 1.3 * _block_bytes(d, hh, wh, cin, cmid, cout) > vmem_cap:
            continue
        best = d
    return best


def down_pallas(x_nhwc, w1, w2, batch_tile=None):
    """x_nhwc: (N, H, W, Cin) f32; w1: (3,3,Cin,Cmid); w2: (3,3,Cmid,Cout) (HWIO)."""
    N, H, W, Cin = x_nhwc.shape
    assert H % 2 == 0 and W % 2 == 0, "MaxPool2d(2) path assumes even H, W"
    Hh, Wh = H // 2, W // 2
    Cmid, Cout = w1.shape[3], w2.shape[3]

    vmem_cap_raw, two_tc = _vmem_info()
    vmem_cap = int(0.75 * vmem_cap_raw)                   # headroom for compiler scratch
    min_steps = 2 if two_tc else 1                        # give v7x both TensorCores work
    Bt = batch_tile or _pick_batch_tile(N, Hh, Wh, Cin, Cmid, Cout, vmem_cap, min_steps)
    # TODO(synk): Hh strip-tiling (1-row halo per conv, two-pass InstanceNorm) for shapes
    # where even Bt=1 does not fit the cap.

    # Free, order-preserving reshapes (no strided HBM copies):
    #   input   -> pool pairs recovered in-kernel from (Hh, 2, Wh, 2*Cin)
    #   weights -> (9, cin, cout) per-tap matrices, cast to bf16 once (halves weight DMA)
    x5 = x_nhwc.reshape(N, Hh, 2, Wh, 2 * Cin)
    w1t = w1.reshape(9, Cin, Cmid).astype(MM_DTYPE)
    w2t = w2.reshape(9, Cmid, Cout).astype(MM_DTYPE)

    est = _block_bytes(Bt, Hh, Wh, Cin, Cmid, Cout)
    vmem_limit = int(min(vmem_cap, max(2 * est, 16 * 1024 * 1024)))

    flops = 2 * N * Hh * Wh * 9 * (Cin * Cmid + Cmid * Cout)
    bytes_accessed = int(x5.size * 4
                         + (w1t.size + w2t.size) * jnp.dtype(MM_DTYPE).itemsize
                         + N * Hh * Wh * Cout * 4)
    cost = pl.CostEstimate(flops=flops, transcendentals=2 * N * (Cmid + Cout),
                           bytes_accessed=bytes_accessed)

    x_spec = pl.BlockSpec((Bt, Hh, 2, Wh, 2 * Cin), lambda n: (n, 0, 0, 0, 0))

    def build(flatten_out, single_buffer_weights):
        wkw = {"pipeline_mode": pl.Buffered(1)} if single_buffer_weights else {}
        w1_spec = pl.BlockSpec((9, Cin, Cmid), lambda n: (0, 0, 0), **wkw)
        w2_spec = pl.BlockSpec((9, Cmid, Cout), lambda n: (0, 0, 0), **wkw)
        if flatten_out:
            out_shape = jax.ShapeDtypeStruct((N, Hh * Wh * Cout), jnp.float32)
            out_spec = pl.BlockSpec((Bt, Hh * Wh * Cout), lambda n: (n, 0))
        else:
            out_shape = jax.ShapeDtypeStruct((N, Hh * Wh, Cout), jnp.float32)
            out_spec = pl.BlockSpec((Bt, Hh * Wh, Cout), lambda n: (n, 0, 0))
        return pl.pallas_call(
            down_kernel,
            out_shape=out_shape,
            grid_spec=pltpu.PrefetchScalarGridSpec(
                num_scalar_prefetch=0,
                grid=(N // Bt,),
                in_specs=[x_spec, w1_spec, w2_spec],
                out_specs=out_spec),
            compiler_params=pltpu.CompilerParams(
                dimension_semantics=("parallel",),
                vmem_limit_bytes=vmem_limit),
            cost_estimate=cost)

    want_flat = (Cout % 128 != 0)   # lane-dense slab only pays off at narrow Cout
    configs = [(fl, sb)
               for fl in ((True, False) if want_flat else (False,))
               for sb in (True, False)]

    last_err = None
    for fl, sb in configs:
        try:
            out = jax.block_until_ready(build(fl, sb)(x5, w1t, w2t))
            return out.reshape(N, Hh, Wh, Cout)
        except Exception as err:    # fall back if an optional layout/buffering knob is rejected
            last_err = err
    raise last_err


def down_ref(x_nhwc, w1, w2, mm_dtype=MM_DTYPE):
    """Pure-JAX reference of the PyTorch Down forward (NHWC), bf16 conv operands + f32 acc."""
    N, H, W, C = x_nhwc.shape
    pooled = x_nhwc.reshape(N, H // 2, 2, W // 2, 2, C).max(axis=(2, 4))

    def conv_in_relu(h, w):
        y = jax.lax.conv_general_dilated(
            h.astype(mm_dtype), w.astype(mm_dtype),
            window_strides=(1, 1), padding="SAME",
            dimension_numbers=("NHWC", "HWIO", "NHWC"),
            preferred_element_type=jnp.float32)
        mean = y.mean(axis=(1, 2), keepdims=True)
        var = ((y - mean) ** 2).mean(axis=(1, 2), keepdims=True)
        return jnp.maximum((y - mean) * jax.lax.rsqrt(var + EPS), 0.0)

    return conv_in_relu(conv_in_relu(pooled, w1), w2)


if __name__ == "__main__":
    # Small shapes: Down(in_channels=4, out_channels=8), x = (2, 4, 16, 16) NCHW.
    N, Cin, H, W = 2, 4, 16, 16
    Cout = 8
    Cmid = Cout  # DoubleConv default: mid_channels = out_channels

    key = jax.random.PRNGKey(0)
    kx, kw1, kw2 = jax.random.split(key, 3)

    x_nchw = jax.random.normal(kx, (N, Cin, H, W), dtype=jnp.float32)
    # Deterministic synthetic weights, HWIO layout (kh, kw, cin, cout).
    w1 = 0.1 * jax.random.normal(kw1, (3, 3, Cin, Cmid), dtype=jnp.float32)
    w2 = 0.1 * jax.random.normal(kw2, (3, 3, Cmid, Cout), dtype=jnp.float32)

    x_nhwc = jnp.transpose(x_nchw, (0, 2, 3, 1))

    out = down_pallas(x_nhwc, w1, w2)
    out = jax.block_until_ready(out)

    ref = jax.block_until_ready(down_ref(x_nhwc, w1, w2))
    np.testing.assert_allclose(np.asarray(out), np.asarray(ref), rtol=5e-3, atol=5e-3)

    # (output is NHWC == PyTorch output transposed from NCHW)
    print("KERNEL_OK")
</pallas_src>

<mosaic_0001>
module attributes {stable_mosaic.version = 11 : i64} {
  func.func @down_kernel(%arg0: i32, %arg1: memref<1x8x2x8x8xf32, #tpu.memory_space<vmem>>, %arg2: memref<9x4x8xbf16, #tpu.memory_space<vmem>>, %arg3: memref<9x8x8xbf16, #tpu.memory_space<vmem>>, %arg4: memref<1x64x8xf32, #tpu.memory_space<vmem>>) attributes {dimension_semantics = [#tpu.dimension_semantics<parallel>], iteration_bounds = array<i64: 2>, scalar_prefetch = 0 : i64, scratch_operands = 0 : i64, tpu.core_type = #tpu.core_type<tc>, window_params = [{transform_indices = @transform_0, window_bounds = array<i64: 1, 8, 2, 8, 8>}, {pipeline_mode = #tpu.pipeline_mode<synchronous>, transform_indices = @transform_1, window_bounds = array<i64: 9, 4, 8>}, {pipeline_mode = #tpu.pipeline_mode<synchronous>, transform_indices = @transform_2, window_bounds = array<i64: 9, 8, 8>}, {transform_indices = @transform_3, window_bounds = array<i64: 1, 64, 8>}]} {
    %c0 = arith.constant 0 : index
    %c0_0 = arith.constant 0 : index
    %c0_1 = arith.constant 0 : index
    %c0_2 = arith.constant 0 : index
    %c0_3 = arith.constant 0 : index
    %0 = vector.load %arg1[%c0, %c0_0, %c0_1, %c0_2, %c0_3] : memref<1x8x2x8x8xf32, #tpu.memory_space<vmem>>, vector<1x8x1x8x8xf32>
    %1 = vector.shape_cast %0 : vector<1x8x1x8x8xf32> to vector<1x8x8x8xf32>
    %c0_4 = arith.constant 0 : index
    %c0_5 = arith.constant 0 : index
    %c1 = arith.constant 1 : index
    %c0_6 = arith.constant 0 : index
    %c0_7 = arith.constant 0 : index
    %2 = vector.load %arg1[%c0_4, %c0_5, %c1, %c0_6, %c0_7] : memref<1x8x2x8x8xf32, #tpu.memory_space<vmem>>, vector<1x8x1x8x8xf32>
    %3 = vector.shape_cast %2 : vector<1x8x1x8x8xf32> to vector<1x8x8x8xf32>
    %4 = arith.maximumf %1, %3 : vector<1x8x8x8xf32>
    %5 = vector.extract_strided_slice %4 {offsets = [0, 0, 0, 0], sizes = [1, 8, 8, 4], strides = [1, 1, 1, 1]} : vector<1x8x8x8xf32> to vector<1x8x8x4xf32>
    %6 = vector.extract_strided_slice %4 {offsets = [0, 0, 0, 4], sizes = [1, 8, 8, 4], strides = [1, 1, 1, 1]} : vector<1x8x8x8xf32> to vector<1x8x8x4xf32>
    %7 = arith.maximumf %5, %6 : vector<1x8x8x4xf32>
    %cst = arith.constant 0.000000e+00 : f32
    %8 = vector.broadcast %cst : f32 to vector<64x8xf32>
    %cst_8 = arith.constant 0.000000e+00 : f32
    %9 = vector.broadcast %cst_8 : f32 to vector<1x1x8x4xf32>
    %10 = vector.extract_strided_slice %7 {offsets = [0, 0, 0, 0], sizes = [1, 7, 8, 4], strides = [1, 1, 1, 1]} : vector<1x8x8x4xf32> to vector<1x7x8x4xf32>
    %11 = tpu.concatenate %9, %10 in 1 : vector<1x1x8x4xf32>, vector<1x7x8x4xf32> -> vector<1x8x8x4xf32>
    %cst_9 = arith.constant 0.000000e+00 : f32
    %12 = vector.broadcast %cst_9 : f32 to vector<1x8x1x4xf32>
    %13 = vector.extract_strided_slice %11 {offsets = [0, 0, 0, 0], sizes = [1, 8, 7, 4], strides = [1, 1, 1, 1]} : vector<1x8x8x4xf32> to vector<1x8x7x4xf32>
    %14 = tpu.concatenate %12, %13 in 2 : vector<1x8x1x4xf32>, vector<1x8x7x4xf32> -> vector<1x8x8x4xf32>
    %15 = vector.shape_cast %14 : vector<1x8x8x4xf32> to vector<64x4xf32>
    %16 = arith.truncf %15 : vector<64x4xf32> to vector<64x4xbf16>
    %c0_10 = arith.constant 0 : index
    %c0_11 = arith.constant 0 : index
    %c0_12 = arith.constant 0 : index
    %17 = vector.load %arg2[%c0_10, %c0_11, %c0_12] : memref<9x4x8xbf16, #tpu.memory_space<vmem>>, vector<1x4x8xbf16>
    %18 = vector.shape_cast %17 : vector<1x4x8xbf16> to vector<4x8xbf16>
    %cst_13 = arith.constant dense<0.000000e+00> : vector<64x8xf32>
    %19 = tpu.matmul %16, %18, %cst_13 {dimension_numbers = #tpu.dot_dimension_numbers<[1], [0], [0], [1], [0, 0, 1, 1], [], []>} : vector<64x4xbf16>, vector<4x8xbf16>, vector<64x8xf32> -> vector<64x8xf32>
    %20 = arith.addf %8, %19 : vector<64x8xf32>
    %21 = vector.shape_cast %11 : vector<1x8x8x4xf32> to vector<64x4xf32>
    %22 = arith.truncf %21 : vector<64x4xf32> to vector<64x4xbf16>
    %c1_14 = arith.constant 1 : index
    %c0_15 = arith.constant 0 : index
    %c0_16 = arith.constant 0 : index
    %23 = vector.load %arg2[%c1_14, %c0_15, %c0_16] : memref<9x4x8xbf16, #tpu.memory_space<vmem>>, vector<1x4x8xbf16>
    %24 = vector.shape_cast %23 : vector<1x4x8xbf16> to vector<4x8xbf16>
    %cst_17 = arith.constant dense<0.000000e+00> : vector<64x8xf32>
    %25 = tpu.matmul %22, %24, %cst_17 {dimension_numbers = #tpu.dot_dimension_numbers<[1], [0], [0], [1], [0, 0, 1, 1], [], []>} : vector<64x4xbf16>, vector<4x8xbf16>, vector<64x8xf32> -> vector<64x8xf32>
    %26 = arith.addf %20, %25 : vector<64x8xf32>
    %cst_18 = arith.constant 0.000000e+00 : f32
    %27 = vector.broadcast %cst_18 : f32 to vector<1x8x1x4xf32>
    %28 = vector.extract_strided_slice %11 {offsets = [0, 0, 1, 0], sizes = [1, 8, 7, 4], strides = [1, 1, 1, 1]} : vector<1x8x8x4xf32> to vector<1x8x7x4xf32>
    %29 = tpu.concatenate %28, %27 in 2 : vector<1x8x7x4xf32>, vector<1x8x1x4xf32> -> vector<1x8x8x4xf32>
    %30 = vector.shape_cast %29 : vector<1x8x8x4xf32> to vector<64x4xf32>
    %31 = arith.truncf %30 : vector<64x4xf32> to vector<64x4xbf16>
    %c2 = arith.constant 2 : index
    %c0_19 = arith.constant 0 : index
    %c0_20 = arith.constant 0 : index
    %32 = vector.load %arg2[%c2, %c0_19, %c0_20] : memref<9x4x8xbf16, #tpu.memory_space<vmem>>, vector<1x4x8xbf16>
    %33 = vector.shape_cast %32 : vector<1x4x8xbf16> to vector<4x8xbf16>
    %cst_21 = arith.constant dense<0.000000e+00> : vector<64x8xf32>
    %34 = tpu.matmul %31, %33, %cst_21 {dimension_numbers = #tpu.dot_dimension_numbers<[1], [0], [0], [1], [0, 0, 1, 1], [], []>} : vector<64x4xbf16>, vector<4x8xbf16>, vector<64x8xf32> -> vector<64x8xf32>
    %35 = arith.addf %26, %34 : vector<64x8xf32>
    %cst_22 = arith.constant 0.000000e+00 : f32
    %36 = vector.broadcast %cst_22 : f32 to vector<1x8x1x4xf32>
    %37 = vector.extract_strided_slice %7 {offsets = [0, 0, 0, 0], sizes = [1, 8, 7, 4], strides = [1, 1, 1, 1]} : vector<1x8x8x4xf32> to vector<1x8x7x4xf32>
    %38 = tpu.concatenate %36, %37 in 2 : vector<1x8x1x4xf32>, vector<1x8x7x4xf32> -> vector<1x8x8x4xf32>
    %39 = vector.shape_cast %38 : vector<1x8x8x4xf32> to vector<64x4xf32>
    %40 = arith.truncf %39 : vector<64x4xf32> to vector<64x4xbf16>
    %c3 = arith.constant 3 : index
    %c0_23 = arith.constant 0 : index
    %c0_24 = arith.constant 0 : index
    %41 = vector.load %arg2[%c3, %c0_23, %c0_24] : memref<9x4x8xbf16, #tpu.memory_space<vmem>>, vector<1x4x8xbf16>
    %42 = vector.shape_cast %41 : vector<1x4x8xbf16> to vector<4x8xbf16>
    %cst_25 = arith.constant dense<0.000000e+00> : vector<64x8xf32>
    %43 = tpu.matmul %40, %42, %cst_25 {dimension_numbers = #tpu.dot_dimension_numbers<[1], [0], [0], [1], [0, 0, 1, 1], [], []>} : vector<64x4xbf16>, vector<4x8xbf16>, vector<64x8xf32> -> vector<64x8xf32>
    %44 = arith.addf %35, %43 : vector<64x8xf32>
    %45 = vector.shape_cast %7 : vector<1x8x8x4xf32> to vector<64x4xf32>
    %46 = arith.truncf %45 : vector<64x4xf32> to vector<64x4xbf16>
    %c4 = arith.constant 4 : index
    %c0_26 = arith.constant 0 : index
    %c0_27 = arith.constant 0 : index
    %47 = vector.load %arg2[%c4, %c0_26, %c0_27] : memref<9x4x8xbf16, #tpu.memory_space<vmem>>, vector<1x4x8xbf16>
    %48 = vector.shape_cast %47 : vector<1x4x8xbf16> to vector<4x8xbf16>
    %cst_28 = arith.constant dense<0.000000e+00> : vector<64x8xf32>
    %49 = tpu.matmul %46, %48, %cst_28 {dimension_numbers = #tpu.dot_dimension_numbers<[1], [0], [0], [1], [0, 0, 1, 1], [], []>} : vector<64x4xbf16>, vector<4x8xbf16>, vector<64x8xf32> -> vector<64x8xf32>
    %50 = arith.addf %44, %49 : vector<64x8xf32>
    %cst_29 = arith.constant 0.000000e+00 : f32
    %51 = vector.broadcast %cst_29 : f32 to vector<1x8x1x4xf32>
    %52 = vector.extract_strided_slice %7 {offsets = [0, 0, 1, 0], sizes = [1, 8, 7, 4], strides = [1, 1, 1, 1]} : vector<1x8x8x4xf32> to vector<1x8x7x4xf32>
    %53 = tpu.concatenate %52, %51 in 2 : vector<1x8x7x4xf32>, vector<1x8x1x4xf32> -> vector<1x8x8x4xf32>
    %54 = vector.shape_cast %53 : vector<1x8x8x4xf32> to vector<64x4xf32>
    %55 = arith.truncf %54 : vector<64x4xf32> to vector<64x4xbf16>
    %c5 = arith.constant 5 : index
    %c0_30 = arith.constant 0 : index
    %c0_31 = arith.constant 0 : index
    %56 = vector.load %arg2[%c5, %c0_30, %c0_31] : memref<9x4x8xbf16, #tpu.memory_space<vmem>>, vector<1x4x8xbf16>
    %57 = vector.shape_cast %56 : vector<1x4x8xbf16> to vector<4x8xbf16>
    %cst_32 = arith.constant dense<0.000000e+00> : vector<64x8xf32>
    %58 = tpu.matmul %55, %57, %cst_32 {dimension_numbers = #tpu.dot_dimension_numbers<[1], [0], [0], [1], [0, 0, 1, 1], [], []>} : vector<64x4xbf16>, vector<4x8xbf16>, vector<64x8xf32> -> vector<64x8xf32>
    %59 = arith.addf %50, %58 : vector<64x8xf32>
    %cst_33 = arith.constant 0.000000e+00 : f32
    %60 = vector.broadcast %cst_33 : f32 to vector<1x1x8x4xf32>
    %61 = vector.extract_strided_slice %7 {offsets = [0, 1, 0, 0], sizes = [1, 7, 8, 4], strides = [1, 1, 1, 1]} : vector<1x8x8x4xf32> to vector<1x7x8x4xf32>
    %62 = tpu.concatenate %61, %60 in 1 : vector<1x7x8x4xf32>, vector<1x1x8x4xf32> -> vector<1x8x8x4xf32>
    %cst_34 = arith.constant 0.000000e+00 : f32
    %63 = vector.broadcast %cst_34 : f32 to vector<1x8x1x4xf32>
    %64 = vector.extract_strided_slice %62 {offsets = [0, 0, 0, 0], sizes = [1, 8, 7, 4], strides = [1, 1, 1, 1]} : vector<1x8x8x4xf32> to vector<1x8x7x4xf32>
    %65 = tpu.concatenate %63, %64 in 2 : vector<1x8x1x4xf32>, vector<1x8x7x4xf32> -> vector<1x8x8x4xf32>
    %66 = vector.shape_cast %65 : vector<1x8x8x4xf32> to vector<64x4xf32>
    %67 = arith.truncf %66 : vector<64x4xf32> to vector<64x4xbf16>
    %c6 = arith.constant 6 : index
    %c0_35 = arith.constant 0 : index
    %c0_36 = arith.constant 0 : index
    %68 = vector.load %arg2[%c6, %c0_35, %c0_36] : memref<9x4x8xbf16, #tpu.memory_space<vmem>>, vector<1x4x8xbf16>
    %69 = vector.shape_cast %68 : vector<1x4x8xbf16> to vector<4x8xbf16>
    %cst_37 = arith.constant dense<0.000000e+00> : vector<64x8xf32>
    %70 = tpu.matmul %67, %69, %cst_37 {dimension_numbers = #tpu.dot_dimension_numbers<[1], [0], [0], [1], [0, 0, 1, 1], [], []>} : vector<64x4xbf16>, vector<4x8xbf16>, vector<64x8xf32> -> vector<64x8xf32>
    %71 = arith.addf %59, %70 : vector<64x8xf32>
    %72 = vector.shape_cast %62 : vector<1x8x8x4xf32> to vector<64x4xf32>
    %73 = arith.truncf %72 : vector<64x4xf32> to vector<64x4xbf16>
    %c7 = arith.constant 7 : index
    %c0_38 = arith.constant 0 : index
    %c0_39 = arith.constant 0 : index
    %74 = vector.load %arg2[%c7, %c0_38, %c0_39] : memref<9x4x8xbf16, #tpu.memory_space<vmem>>, vector<1x4x8xbf16>
    %75 = vector.shape_cast %74 : vector<1x4x8xbf16> to vector<4x8xbf16>
    %cst_40 = arith.constant dense<0.000000e+00> : vector<64x8xf32>
    %76 = tpu.matmul %73, %75, %cst_40 {dimension_numbers = #tpu.dot_dimension_numbers<[1], [0], [0], [1], [0, 0, 1, 1], [], []>} : vector<64x4xbf16>, vector<4x8xbf16>, vector<64x8xf32> -> vector<64x8xf32>
    %77 = arith.addf %71, %76 : vector<64x8xf32>
    %cst_41 = arith.constant 0.000000e+00 : f32
    %78 = vector.broadcast %cst_41 : f32 to vector<1x8x1x4xf32>
    %79 = vector.extract_strided_slice %62 {offsets = [0, 0, 1, 0], sizes = [1, 8, 7, 4], strides = [1, 1, 1, 1]} : vector<1x8x8x4xf32> to vector<1x8x7x4xf32>
    %80 = tpu.concatenate %79, %78 in 2 : vector<1x8x7x4xf32>, vector<1x8x1x4xf32> -> vector<1x8x8x4xf32>
    %81 = vector.shape_cast %80 : vector<1x8x8x4xf32> to vector<64x4xf32>
    %82 = arith.truncf %81 : vector<64x4xf32> to vector<64x4xbf16>
    %c8 = arith.constant 8 : index
    %c0_42 = arith.constant 0 : index
    %c0_43 = arith.constant 0 : index
    %83 = vector.load %arg2[%c8, %c0_42, %c0_43] : memref<9x4x8xbf16, #tpu.memory_space<vmem>>, vector<1x4x8xbf16>
    %84 = vector.shape_cast %83 : vector<1x4x8xbf16> to vector<4x8xbf16>
    %cst_44 = arith.constant dense<0.000000e+00> : vector<64x8xf32>
    %85 = tpu.matmul %82, %84, %cst_44 {dimension_numbers = #tpu.dot_dimension_numbers<[1], [0], [0], [1], [0, 0, 1, 1], [], []>} : vector<64x4xbf16>, vector<4x8xbf16>, vector<64x8xf32> -> vector<64x8xf32>
    %86 = arith.addf %77, %85 : vector<64x8xf32>
    %87 = vector.shape_cast %86 : vector<64x8xf32> to vector<1x64x8xf32>
    %cst_45 = arith.constant dense<0.000000e+00> : vector<1x8xf32>
    %88 = vector.multi_reduction <add>, %87, %cst_45 [1] : vector<1x64x8xf32> to vector<1x8xf32>
    %89 = vector.shape_cast %88 : vector<1x8xf32> to vector<1x1x8xf32>
    %90 = arith.mulf %87, %87 : vector<1x64x8xf32>
    %cst_46 = arith.constant dense<0.000000e+00> : vector<1x8xf32>
    %91 = vector.multi_reduction <add>, %90, %cst_46 [1] : vector<1x64x8xf32> to vector<1x8xf32>
    %92 = vector.shape_cast %91 : vector<1x8xf32> to vector<1x1x8xf32>
    %cst_47 = arith.constant 1.562500e-02 : f32
    %93 = vector.broadcast %cst_47 : f32 to vector<1x1x8xf32>
    %94 = arith.mulf %89, %93 : vector<1x1x8xf32>
    %cst_48 = arith.constant 1.562500e-02 : f32
    %95 = vector.broadcast %cst_48 : f32 to vector<1x1x8xf32>
    %96 = arith.mulf %92, %95 : vector<1x1x8xf32>
    %97 = arith.mulf %94, %94 : vector<1x1x8xf32>
    %98 = arith.subf %96, %97 : vector<1x1x8xf32>
    %cst_49 = arith.constant 0.000000e+00 : f32
    %99 = vector.broadcast %cst_49 : f32 to vector<1x1x8xf32>
    %100 = arith.maximumf %98, %99 : vector<1x1x8xf32>
    %101 = vector.broadcast %94 : vector<1x1x8xf32> to vector<1x64x8xf32>
    %102 = arith.subf %87, %101 : vector<1x64x8xf32>
    %cst_50 = arith.constant 9.99999974E-6 : f32
    %103 = vector.broadcast %cst_50 : f32 to vector<1x1x8xf32>
    %104 = arith.addf %100, %103 : vector<1x1x8xf32>
    %105 = math.rsqrt %104 : vector<1x1x8xf32>
    %106 = vector.broadcast %105 : vector<1x1x8xf32> to vector<1x64x8xf32>
    %107 = arith.mulf %102, %106 : vector<1x64x8xf32>
    %cst_51 = arith.constant 0.000000e+00 : f32
    %108 = vector.broadcast %cst_51 : f32 to vector<1x64x8xf32>
    %109 = arith.maximumf %107, %108 : vector<1x64x8xf32>
    %110 = vector.shape_cast %109 : vector<1x64x8xf32> to vector<1x8x8x8xf32>
    %cst_52 = arith.constant 0.000000e+00 : f32
    %111 = vector.broadcast %cst_52 : f32 to vector<64x8xf32>
    %cst_53 = arith.constant 0.000000e+00 : f32
    %112 = vector.broadcast %cst_53 : f32 to vector<1x1x8x8xf32>
    %113 = vector.extract_strided_slice %110 {offsets = [0, 0, 0, 0], sizes = [1, 7, 8, 8], strides = [1, 1, 1, 1]} : vector<1x8x8x8xf32> to vector<1x7x8x8xf32>
    %114 = tpu.concatenate %112, %113 in 1 : vector<1x1x8x8xf32>, vector<1x7x8x8xf32> -> vector<1x8x8x8xf32>
    %cst_54 = arith.constant 0.000000e+00 : f32
    %115 = vector.broadcast %cst_54 : f32 to vector<1x8x1x8xf32>
    %116 = vector.extract_strided_slice %114 {offsets = [0, 0, 0, 0], sizes = [1, 8, 7, 8], strides = [1, 1, 1, 1]} : vector<1x8x8x8xf32> to vector<1x8x7x8xf32>
    %117 = tpu.concatenate %115, %116 in 2 : vector<1x8x1x8xf32>, vector<1x8x7x8xf32> -> vector<1x8x8x8xf32>
    %118 = vector.shape_cast %117 : vector<1x8x8x8xf32> to vector<64x8xf32>
    %119 = arith.truncf %118 : vector<64x8xf32> to vector<64x8xbf16>
    %c0_55 = arith.constant 0 : index
    %c0_56 = arith.constant 0 : index
    %c0_57 = arith.constant 0 : index
    %120 = vector.load %arg3[%c0_55, %c0_56, %c0_57] : memref<9x8x8xbf16, #tpu.memory_space<vmem>>, vector<1x8x8xbf16>
    %121 = vector.shape_cast %120 : vector<1x8x8xbf16> to vector<8x8xbf16>
    %cst_58 = arith.constant dense<0.000000e+00> : vector<64x8xf32>
    %122 = tpu.matmul %119, %121, %cst_58 {dimension_numbers = #tpu.dot_dimension_numbers<[1], [0], [0], [1], [0, 0, 1, 1], [], []>} : vector<64x8xbf16>, vector<8x8xbf16>, vector<64x8xf32> -> vector<64x8xf32>
    %123 = arith.addf %111, %122 : vector<64x8xf32>
    %124 = vector.shape_cast %114 : vector<1x8x8x8xf32> to vector<64x8xf32>
    %125 = arith.truncf %124 : vector<64x8xf32> to vector<64x8xbf16>
    %c1_59 = arith.constant 1 : index
    %c0_60 = arith.constant 0 : index
    %c0_61 = arith.constant 0 : index
    %126 = vector.load %arg3[%c1_59, %c0_60, %c0_61] : memref<9x8x8xbf16, #tpu.memory_space<vmem>>, vector<1x8x8xbf16>
    %127 = vector.shape_cast %126 : vector<1x8x8xbf16> to vector<8x8xbf16>
    %cst_62 = arith.constant dense<0.000000e+00> : vector<64x8xf32>
    %128 = tpu.matmul %125, %127, %cst_62 {dimension_numbers = #tpu.dot_dimension_numbers<[1], [0], [0], [1], [0, 0, 1, 1], [], []>} : vector<64x8xbf16>, vector<8x8xbf16>, vector<64x8xf32> -> vector<64x8xf32>
    %129 = arith.addf %123, %128 : vector<64x8xf32>
    %cst_63 = arith.constant 0.000000e+00 : f32
    %130 = vector.broadcast %cst_63 : f32 to vector<1x8x1x8xf32>
    %131 = vector.extract_strided_slice %114 {offsets = [0, 0, 1, 0], sizes = [1, 8, 7, 8], strides = [1, 1, 1, 1]} : vector<1x8x8x8xf32> to vector<1x8x7x8xf32>
    %132 = tpu.concatenate %131, %130 in 2 : vector<1x8x7x8xf32>, vector<1x8x1x8xf32> -> vector<1x8x8x8xf32>
    %133 = vector.shape_cast %132 : vector<1x8x8x8xf32> to vector<64x8xf32>
    %134 = arith.truncf %133 : vector<64x8xf32> to vector<64x8xbf16>
    %c2_64 = arith.constant 2 : index
    %c0_65 = arith.constant 0 : index
    %c0_66 = arith.constant 0 : index
    %135 = vector.load %arg3[%c2_64, %c0_65, %c0_66] : memref<9x8x8xbf16, #tpu.memory_space<vmem>>, vector<1x8x8xbf16>
    %136 = vector.shape_cast %135 : vector<1x8x8xbf16> to vector<8x8xbf16>
    %cst_67 = arith.constant dense<0.000000e+00> : vector<64x8xf32>
    %137 = tpu.matmul %134, %136, %cst_67 {dimension_numbers = #tpu.dot_dimension_numbers<[1], [0], [0], [1], [0, 0, 1, 1], [], []>} : vector<64x8xbf16>, vector<8x8xbf16>, vector<64x8xf32> -> vector<64x8xf32>
    %138 = arith.addf %129, %137 : vector<64x8xf32>
    %cst_68 = arith.constant 0.000000e+00 : f32
    %139 = vector.broadcast %cst_68 : f32 to vector<1x8x1x8xf32>
    %140 = vector.extract_strided_slice %110 {offsets = [0, 0, 0, 0], sizes = [1, 8, 7, 8], strides = [1, 1, 1, 1]} : vector<1x8x8x8xf32> to vector<1x8x7x8xf32>
    %141 = tpu.concatenate %139, %140 in 2 : vector<1x8x1x8xf32>, vector<1x8x7x8xf32> -> vector<1x8x8x8xf32>
    %142 = vector.shape_cast %141 : vector<1x8x8x8xf32> to vector<64x8xf32>
    %143 = arith.truncf %142 : vector<64x8xf32> to vector<64x8xbf16>
    %c3_69 = arith.constant 3 : index
    %c0_70 = arith.constant 0 : index
    %c0_71 = arith.constant 0 : index
    %144 = vector.load %arg3[%c3_69, %c0_70, %c0_71] : memref<9x8x8xbf16, #tpu.memory_space<vmem>>, vector<1x8x8xbf16>
    %145 = vector.shape_cast %144 : vector<1x8x8xbf16> to vector<8x8xbf16>
    %cst_72 = arith.constant dense<0.000000e+00> : vector<64x8xf32>
    %146 = tpu.matmul %143, %145, %cst_72 {dimension_numbers = #tpu.dot_dimension_numbers<[1], [0], [0], [1], [0, 0, 1, 1], [], []>} : vector<64x8xbf16>, vector<8x8xbf16>, vector<64x8xf32> -> vector<64x8xf32>
    %147 = arith.addf %138, %146 : vector<64x8xf32>
    %148 = vector.shape_cast %110 : vector<1x8x8x8xf32> to vector<64x8xf32>
    %149 = arith.truncf %148 : vector<64x8xf32> to vector<64x8xbf16>
    %c4_73 = arith.constant 4 : index
    %c0_74 = arith.constant 0 : index
    %c0_75 = arith.constant 0 : index
    %150 = vector.load %arg3[%c4_73, %c0_74, %c0_75] : memref<9x8x8xbf16, #tpu.memory_space<vmem>>, vector<1x8x8xbf16>
    %151 = vector.shape_cast %150 : vector<1x8x8xbf16> to vector<8x8xbf16>
    %cst_76 = arith.constant dense<0.000000e+00> : vector<64x8xf32>
    %152 = tpu.matmul %149, %151, %cst_76 {dimension_numbers = #tpu.dot_dimension_numbers<[1], [0], [0], [1], [0, 0, 1, 1], [], []>} : vector<64x8xbf16>, vector<8x8xbf16>, vector<64x8xf32> -> vector<64x8xf32>
    %153 = arith.addf %147, %152 : vector<64x8xf32>
    %cst_77 = arith.constant 0.000000e+00 : f32
    %154 = vector.broadcast %cst_77 : f32 to vector<1x8x1x8xf32>
    %155 = vector.extract_strided_slice %110 {offsets = [0, 0, 1, 0], sizes = [1, 8, 7, 8], strides = [1, 1, 1, 1]} : vector<1x8x8x8xf32> to vector<1x8x7x8xf32>
    %156 = tpu.concatenate %155, %154 in 2 : vector<1x8x7x8xf32>, vector<1x8x1x8xf32> -> vector<1x8x8x8xf32>
    %157 = vector.shape_cast %156 : vector<1x8x8x8xf32> to vector<64x8xf32>
    %158 = arith.truncf %157 : vector<64x8xf32> to vector<64x8xbf16>
    %c5_78 = arith.constant 5 : index
    %c0_79 = arith.constant 0 : index
    %c0_80 = arith.constant 0 : index
    %159 = vector.load %arg3[%c5_78, %c0_79, %c0_80] : memref<9x8x8xbf16, #tpu.memory_space<vmem>>, vector<1x8x8xbf16>
    %160 = vector.shape_cast %159 : vector<1x8x8xbf16> to vector<8x8xbf16>
    %cst_81 = arith.constant dense<0.000000e+00> : vector<64x8xf32>
    %161 = tpu.matmul %158, %160, %cst_81 {dimension_numbers = #tpu.dot_dimension_numbers<[1], [0], [0], [1], [0, 0, 1, 1], [], []>} : vector<64x8xbf16>, vector<8x8xbf16>, vector<64x8xf32> -> vector<64x8xf32>
    %162 = arith.addf %153, %161 : vector<64x8xf32>
    %cst_82 = arith.constant 0.000000e+00 : f32
    %163 = vector.broadcast %cst_82 : f32 to vector<1x1x8x8xf32>
    %164 = vector.extract_strided_slice %110 {offsets = [0, 1, 0, 0], sizes = [1, 7, 8, 8], strides = [1, 1, 1, 1]} : vector<1x8x8x8xf32> to vector<1x7x8x8xf32>
    %165 = tpu.concatenate %164, %163 in 1 : vector<1x7x8x8xf32>, vector<1x1x8x8xf32> -> vector<1x8x8x8xf32>
    %cst_83 = arith.constant 0.000000e+00 : f32
    %166 = vector.broadcast %cst_83 : f32 to vector<1x8x1x8xf32>
    %167 = vector.extract_strided_slice %165 {offsets = [0, 0, 0, 0], sizes = [1, 8, 7, 8], strides = [1, 1, 1, 1]} : vector<1x8x8x8xf32> to vector<1x8x7x8xf32>
    %168 = tpu.concatenate %166, %167 in 2 : vector<1x8x1x8xf32>, vector<1x8x7x8xf32> -> vector<1x8x8x8xf32>
    %169 = vector.shape_cast %168 : vector<1x8x8x8xf32> to vector<64x8xf32>
    %170 = arith.truncf %169 : vector<64x8xf32> to vector<64x8xbf16>
    %c6_84 = arith.constant 6 : index
    %c0_85 = arith.constant 0 : index
    %c0_86 = arith.constant 0 : index
    %171 = vector.load %arg3[%c6_84, %c0_85, %c0_86] : memref<9x8x8xbf16, #tpu.memory_space<vmem>>, vector<1x8x8xbf16>
    %172 = vector.shape_cast %171 : vector<1x8x8xbf16> to vector<8x8xbf16>
    %cst_87 = arith.constant dense<0.000000e+00> : vector<64x8xf32>
    %173 = tpu.matmul %170, %172, %cst_87 {dimension_numbers = #tpu.dot_dimension_numbers<[1], [0], [0], [1], [0, 0, 1, 1], [], []>} : vector<64x8xbf16>, vector<8x8xbf16>, vector<64x8xf32> -> vector<64x8xf32>
    %174 = arith.addf %162, %173 : vector<64x8xf32>
    %175 = vector.shape_cast %165 : vector<1x8x8x8xf32> to vector<64x8xf32>
    %176 = arith.truncf %175 : vector<64x8xf32> to vector<64x8xbf16>
    %c7_88 = arith.constant 7 : index
    %c0_89 = arith.constant 0 : index
    %c0_90 = arith.constant 0 : index
    %177 = vector.load %arg3[%c7_88, %c0_89, %c0_90] : memref<9x8x8xbf16, #tpu.memory_space<vmem>>, vector<1x8x8xbf16>
    %178 = vector.shape_cast %177 : vector<1x8x8xbf16> to vector<8x8xbf16>
    %cst_91 = arith.constant dense<0.000000e+00> : vector<64x8xf32>
    %179 = tpu.matmul %176, %178, %cst_91 {dimension_numbers = #tpu.dot_dimension_numbers<[1], [0], [0], [1], [0, 0, 1, 1], [], []>} : vector<64x8xbf16>, vector<8x8xbf16>, vector<64x8xf32> -> vector<64x8xf32>
    %180 = arith.addf %174, %179 : vector<64x8xf32>
    %cst_92 = arith.constant 0.000000e+00 : f32
    %181 = vector.broadcast %cst_92 : f32 to vector<1x8x1x8xf32>
    %182 = vector.extract_strided_slice %165 {offsets = [0, 0, 1, 0], sizes = [1, 8, 7, 8], strides = [1, 1, 1, 1]} : vector<1x8x8x8xf32> to vector<1x8x7x8xf32>
    %183 = tpu.concatenate %182, %181 in 2 : vector<1x8x7x8xf32>, vector<1x8x1x8xf32> -> vector<1x8x8x8xf32>
    %184 = vector.shape_cast %183 : vector<1x8x8x8xf32> to vector<64x8xf32>
    %185 = arith.truncf %184 : vector<64x8xf32> to vector<64x8xbf16>
    %c8_93 = arith.constant 8 : index
    %c0_94 = arith.constant 0 : index
    %c0_95 = arith.constant 0 : index
    %186 = vector.load %arg3[%c8_93, %c0_94, %c0_95] : memref<9x8x8xbf16, #tpu.memory_space<vmem>>, vector<1x8x8xbf16>
    %187 = vector.shape_cast %186 : vector<1x8x8xbf16> to vector<8x8xbf16>
    %cst_96 = arith.constant dense<0.000000e+00> : vector<64x8xf32>
    %188 = tpu.matmul %185, %187, %cst_96 {dimension_numbers = #tpu.dot_dimension_numbers<[1], [0], [0], [1], [0, 0, 1, 1], [], []>} : vector<64x8xbf16>, vector<8x8xbf16>, vector<64x8xf32> -> vector<64x8xf32>
    %189 = arith.addf %180, %188 : vector<64x8xf32>
    %190 = vector.shape_cast %189 : vector<64x8xf32> to vector<1x64x8xf32>
    %cst_97 = arith.constant dense<0.000000e+00> : vector<1x8xf32>
    %191 = vector.multi_reduction <add>, %190, %cst_97 [1] : vector<1x64x8xf32> to vector<1x8xf32>
    %192 = vector.shape_cast %191 : vector<1x8xf32> to vector<1x1x8xf32>
    %193 = arith.mulf %190, %190 : vector<1x64x8xf32>
    %cst_98 = arith.constant dense<0.000000e+00> : vector<1x8xf32>
    %194 = vector.multi_reduction <add>, %193, %cst_98 [1] : vector<1x64x8xf32> to vector<1x8xf32>
    %195 = vector.shape_cast %194 : vector<1x8xf32> to vector<1x1x8xf32>
    %cst_99 = arith.constant 1.562500e-02 : f32
    %196 = vector.broadcast %cst_99 : f32 to vector<1x1x8xf32>
    %197 = arith.mulf %192, %196 : vector<1x1x8xf32>
    %cst_100 = arith.constant 1.562500e-02 : f32
    %198 = vector.broadcast %cst_100 : f32 to vector<1x1x8xf32>
    %199 = arith.mulf %195, %198 : vector<1x1x8xf32>
    %200 = arith.mulf %197, %197 : vector<1x1x8xf32>
    %201 = arith.subf %199, %200 : vector<1x1x8xf32>
    %cst_101 = arith.constant 0.000000e+00 : f32
    %202 = vector.broadcast %cst_101 : f32 to vector<1x1x8xf32>
    %203 = arith.maximumf %201, %202 : vector<1x1x8xf32>
    %204 = vector.broadcast %197 : vector<1x1x8xf32> to vector<1x64x8xf32>
    %205 = arith.subf %190, %204 : vector<1x64x8xf32>
    %cst_102 = arith.constant 9.99999974E-6 : f32
    %206 = vector.broadcast %cst_102 : f32 to vector<1x1x8xf32>
    %207 = arith.addf %203, %206 : vector<1x1x8xf32>
    %208 = math.rsqrt %207 : vector<1x1x8xf32>
    %209 = vector.broadcast %208 : vector<1x1x8xf32> to vector<1x64x8xf32>
    %210 = arith.mulf %205, %209 : vector<1x64x8xf32>
    %cst_103 = arith.constant 0.000000e+00 : f32
    %211 = vector.broadcast %cst_103 : f32 to vector<1x64x8xf32>
    %212 = arith.maximumf %210, %211 : vector<1x64x8xf32>
    %c0_104 = arith.constant 0 : index
    %c0_105 = arith.constant 0 : index
    %c0_106 = arith.constant 0 : index
    %213 = vector.load %arg4[%c0_104, %c0_105, %c0_106] : memref<1x64x8xf32, #tpu.memory_space<vmem>>, vector<1x64x8xf32>
    tpu.vector_store %arg4[%c0_104, %c0_105, %c0_106], %212 {strides = array<i32>} : memref<1x64x8xf32, #tpu.memory_space<vmem>>, vector<1x64x8xf32>,
    return
  }
  func.func @transform_0(%arg0: i32) -> (i32, i32, i32, i32, i32) {
    %c0_i32 = arith.constant 0 : i32
    %c0_i32_0 = arith.constant 0 : i32
    %c0_i32_1 = arith.constant 0 : i32
    %c0_i32_2 = arith.constant 0 : i32
    %c0_i32_3 = arith.constant 0 : i32
    return %arg0, %c0_i32, %c0_i32_0, %c0_i32_1, %c0_i32_2 : i32, i32, i32, i32, i32
  }
  func.func @transform_1(%arg0: i32) -> (i32, i32, i32) {
    %c0_i32 = arith.constant 0 : i32
    %c0_i32_0 = arith.constant 0 : i32
    %c0_i32_1 = arith.constant 0 : i32
    %c0_i32_2 = arith.constant 0 : i32
    return %c0_i32, %c0_i32_0, %c0_i32_1 : i32, i32, i32
  }
  func.func @transform_2(%arg0: i32) -> (i32, i32, i32) {
    %c0_i32 = arith.constant 0 : i32
    %c0_i32_0 = arith.constant 0 : i32
    %c0_i32_1 = arith.constant 0 : i32
    %c0_i32_2 = arith.constant 0 : i32
    return %c0_i32, %c0_i32_0, %c0_i32_1 : i32, i32, i32
  }
  func.func @transform_3(%arg0: i32) -> (i32, i32, i32) {
    %c0_i32 = arith.constant 0 : i32
    %c0_i32_0 = arith.constant 0 : i32
    %c0_i32_1 = arith.constant 0 : i32
    return %arg0, %c0_i32, %c0_i32_0 : i32, i32, i32
  }
}

module attributes {stable_mosaic.version = 11 : i64} {
  func.func @down_kernel(%arg0: i32, %arg1: memref<1x8x2x8x8xf32, #tpu.memory_space<vmem>>, %arg2: memref<9x4x8xbf16, #tpu.memory_space<vmem>>, %arg3: memref<9x8x8xbf16, #tpu.memory_space<vmem>>, %arg4: memref<1x64x8xf32, #tpu.memory_space<vmem>>) attributes {dimension_semantics = [#tpu.dimension_semantics<parallel>], iteration_bounds = array<i64: 2>, scalar_prefetch = 0 : i64, scratch_operands = 0 : i64, tpu.core_type = #tpu.core_type<tc>, window_params = [{transform_indices = @transform_0, window_bounds = array<i64: 1, 8, 2, 8, 8>}, {pipeline_mode = #tpu.pipeline_mode<synchronous>, transform_indices = @transform_1, window_bounds = array<i64: 9, 4, 8>}, {pipeline_mode = #tpu.pipeline_mode<synchronous>, transform_indices = @transform_2, window_bounds = array<i64: 9, 8, 8>}, {transform_indices = @transform_3, window_bounds = array<i64: 1, 64, 8>}]} {
    %c0 = arith.constant 0 : index
    %c0_0 = arith.constant 0 : index
    %c0_1 = arith.constant 0 : index
    %c0_2 = arith.constant 0 : index
    %c0_3 = arith.constant 0 : index
    %0 = vector.load %arg1[%c0, %c0_0, %c0_1, %c0_2, %c0_3] : memref<1x8x2x8x8xf32, #tpu.memory_space<vmem>>, vector<1x8x1x8x8xf32>
    %1 = vector.shape_cast %0 : vector<1x8x1x8x8xf32> to vector<1x8x8x8xf32>
    %c0_4 = arith.constant 0 : index
    %c0_5 = arith.constant 0 : index
    %c1 = arith.constant 1 : index
    %c0_6 = arith.constant 0 : index
    %c0_7 = arith.constant 0 : index
    %2 = vector.load %arg1[%c0_4, %c0_5, %c1, %c0_6, %c0_7] : memref<1x8x2x8x8xf32, #tpu.memory_space<vmem>>, vector<1x8x1x8x8xf32>
    %3 = vector.shape_cast %2 : vector<1x8x1x8x8xf32> to vector<1x8x8x8xf32>
    %4 = arith.maximumf %1, %3 : vector<1x8x8x8xf32>
    %5 = vector.extract_strided_slice %4 {offsets = [0, 0, 0, 0], sizes = [1, 8, 8, 4], strides = [1, 1, 1, 1]} : vector<1x8x8x8xf32> to vector<1x8x8x4xf32>
    %6 = vector.extract_strided_slice %4 {offsets = [0, 0, 0, 4], sizes = [1, 8, 8, 4], strides = [1, 1, 1, 1]} : vector<1x8x8x8xf32> to vector<1x8x8x4xf32>
    %7 = arith.maximumf %5, %6 : vector<1x8x8x4xf32>
    %cst = arith.constant 0.000000e+00 : f32
    %8 = vector.broadcast %cst : f32 to vector<64x8xf32>
    %cst_8 = arith.constant 0.000000e+00 : f32
    %9 = vector.broadcast %cst_8 : f32 to vector<1x1x8x4xf32>
    %10 = vector.extract_strided_slice %7 {offsets = [0, 0, 0, 0], sizes = [1, 7, 8, 4], strides = [1, 1, 1, 1]} : vector<1x8x8x4xf32> to vector<1x7x8x4xf32>
    %11 = tpu.concatenate %9, %10 in 1 : vector<1x1x8x4xf32>, vector<1x7x8x4xf32> -> vector<1x8x8x4xf32>
    %cst_9 = arith.constant 0.000000e+00 : f32
    %12 = vector.broadcast %cst_9 : f32 to vector<1x8x1x4xf32>
    %13 = vector.extract_strided_slice %11 {offsets = [0, 0, 0, 0], sizes = [1, 8, 7, 4], strides = [1, 1, 1, 1]} : vector<1x8x8x4xf32> to vector<1x8x7x4xf32>
    %14 = tpu.concatenate %12, %13 in 2 : vector<1x8x1x4xf32>, vector<1x8x7x4xf32> -> vector<1x8x8x4xf32>
    %15 = vector.shape_cast %14 : vector<1x8x8x4xf32> to vector<64x4xf32>
    %16 = arith.truncf %15 : vector<64x4xf32> to vector<64x4xbf16>
    %c0_10 = arith.constant 0 : index
    %c0_11 = arith.constant 0 : index
    %c0_12 = arith.constant 0 : index
    %17 = vector.load %arg2[%c0_10, %c0_11, %c0_12] : memref<9x4x8xbf16, #tpu.memory_space<vmem>>, vector<1x4x8xbf16>
    %18 = vector.shape_cast %17 : vector<1x4x8xbf16> to vector<4x8xbf16>
    %cst_13 = arith.constant dense<0.000000e+00> : vector<64x8xf32>
    %19 = tpu.matmul %16, %18, %cst_13 {dimension_numbers = #tpu.dot_dimension_numbers<[1], [0], [0], [1], [0, 0, 1, 1], [], []>} : vector<64x4xbf16>, vector<4x8xbf16>, vector<64x8xf32> -> vector<64x8xf32>
    %20 = arith.addf %8, %19 : vector<64x8xf32>
    %21 = vector.shape_cast %11 : vector<1x8x8x4xf32> to vector<64x4xf32>
    %22 = arith.truncf %21 : vector<64x4xf32> to vector<64x4xbf16>
    %c1_14 = arith.constant 1 : index
    %c0_15 = arith.constant 0 : index
    %c0_16 = arith.constant 0 : index
    %23 = vector.load %arg2[%c1_14, %c0_15, %c0_16] : memref<9x4x8xbf16, #tpu.memory_space<vmem>>, vector<1x4x8xbf16>
    %24 = vector.shape_cast %23 : vector<1x4x8xbf16> to vector<4x8xbf16>
    %cst_17 = arith.constant dense<0.000000e+00> : vector<64x8xf32>
    %25 = tpu.matmul %22, %24, %cst_17 {dimension_numbers = #tpu.dot_dimension_numbers<[1], [0], [0], [1], [0, 0, 1, 1], [], []>} : vector<64x4xbf16>, vector<4x8xbf16>, vector<64x8xf32> -> vector<64x8xf32>
    %26 = arith.addf %20, %25 : vector<64x8xf32>
    %cst_18 = arith.constant 0.000000e+00 : f32
    %27 = vector.broadcast %cst_18 : f32 to vector<1x8x1x4xf32>
    %28 = vector.extract_strided_slice %11 {offsets = [0, 0, 1, 0], sizes = [1, 8, 7, 4], strides = [1, 1, 1, 1]} : vector<1x8x8x4xf32> to vector<1x8x7x4xf32>
    %29 = tpu.concatenate %28, %27 in 2 : vector<1x8x7x4xf32>, vector<1x8x1x4xf32> -> vector<1x8x8x4xf32>
    %30 = vector.shape_cast %29 : vector<1x8x8x4xf32> to vector<64x4xf32>
    %31 = arith.truncf %30 : vector<64x4xf32> to vector<64x4xbf16>
    %c2 = arith.constant 2 : index
    %c0_19 = arith.constant 0 : index
    %c0_20 = arith.constant 0 : index
    %32 = vector.load %arg2[%c2, %c0_19, %c0_20] : memref<9x4x8xbf16, #tpu.memory_space<vmem>>, vector<1x4x8xbf16>
    %33 = vector.shape_cast %32 : vector<1x4x8xbf16> to vector<4x8xbf16>
    %cst_21 = arith.constant dense<0.000000e+00> : vector<64x8xf32>
    %34 = tpu.matmul %31, %33, %cst_21 {dimension_numbers = #tpu.dot_dimension_numbers<[1], [0], [0], [1], [0, 0, 1, 1], [], []>} : vector<64x4xbf16>, vector<4x8xbf16>, vector<64x8xf32> -> vector<64x8xf32>
    %35 = arith.addf %26, %34 : vector<64x8xf32>
    %cst_22 = arith.constant 0.000000e+00 : f32
    %36 = vector.broadcast %cst_22 : f32 to vector<1x8x1x4xf32>
    %37 = vector.extract_strided_slice %7 {offsets = [0, 0, 0, 0], sizes = [1, 8, 7, 4], strides = [1, 1, 1, 1]} : vector<1x8x8x4xf32> to vector<1x8x7x4xf32>
    %38 = tpu.concatenate %36, %37 in 2 : vector<1x8x1x4xf32>, vector<1x8x7x4xf32> -> vector<1x8x8x4xf32>
    %39 = vector.shape_cast %38 : vector<1x8x8x4xf32> to vector<64x4xf32>
    %40 = arith.truncf %39 : vector<64x4xf32> to vector<64x4xbf16>
    %c3 = arith.constant 3 : index
    %c0_23 = arith.constant 0 : index
    %c0_24 = arith.constant 0 : index
    %41 = vector.load %arg2[%c3, %c0_23, %c0_24] : memref<9x4x8xbf16, #tpu.memory_space<vmem>>, vector<1x4x8xbf16>
    %42 = vector.shape_cast %41 : vector<1x4x8xbf16> to vector<4x8xbf16>
    %cst_25 = arith.constant dense<0.000000e+00> : vector<64x8xf32>
    %43 = tpu.matmul %40, %42, %cst_25 {dimension_numbers = #tpu.dot_dimension_numbers<[1], [0], [0], [1], [0, 0, 1, 1], [], []>} : vector<64x4xbf16>, vector<4x8xbf16>, vector<64x8xf32> -> vector<64x8xf32>
    %44 = arith.addf %35, %43 : vector<64x8xf32>
    %45 = vector.shape_cast %7 : vector<1x8x8x4xf32> to vector<64x4xf32>
    %46 = arith.truncf %45 : vector<64x4xf32> to vector<64x4xbf16>
    %c4 = arith.constant 4 : index
    %c0_26 = arith.constant 0 : index
    %c0_27 = arith.constant 0 : index
    %47 = vector.load %arg2[%c4, %c0_26, %c0_27] : memref<9x4x8xbf16, #tpu.memory_space<vmem>>, vector<1x4x8xbf16>
    %48 = vector.shape_cast %47 : vector<1x4x8xbf16> to vector<4x8xbf16>
    %cst_28 = arith.constant dense<0.000000e+00> : vector<64x8xf32>
    %49 = tpu.matmul %46, %48, %cst_28 {dimension_numbers = #tpu.dot_dimension_numbers<[1], [0], [0], [1], [0, 0, 1, 1], [], []>} : vector<64x4xbf16>, vector<4x8xbf16>, vector<64x8xf32> -> vector<64x8xf32>
    %50 = arith.addf %44, %49 : vector<64x8xf32>
    %cst_29 = arith.constant 0.000000e+00 : f32
    %51 = vector.broadcast %cst_29 : f32 to vector<1x8x1x4xf32>
    %52 = vector.extract_strided_slice %7 {offsets = [0, 0, 1, 0], sizes = [1, 8, 7, 4], strides = [1, 1, 1, 1]} : vector<1x8x8x4xf32> to vector<1x8x7x4xf32>
    %53 = tpu.concatenate %52, %51 in 2 : vector<1x8x7x4xf32>, vector<1x8x1x4xf32> -> vector<1x8x8x4xf32>
    %54 = vector.shape_cast %53 : vector<1x8x8x4xf32> to vector<64x4xf32>
    %55 = arith.truncf %54 : vector<64x4xf32> to vector<64x4xbf16>
    %c5 = arith.constant 5 : index
    %c0_30 = arith.constant 0 : index
    %c0_31 = arith.constant 0 : index
    %56 = vector.load %arg2[%c5, %c0_30, %c0_31] : memref<9x4x8xbf16, #tpu.memory_space<vmem>>, vector<1x4x8xbf16>
    %57 = vector.shape_cast %56 : vector<1x4x8xbf16> to vector<4x8xbf16>
    %cst_32 = arith.constant dense<0.000000e+00> : vector<64x8xf32>
    %58 = tpu.matmul %55, %57, %cst_32 {dimension_numbers = #tpu.dot_dimension_numbers<[1], [0], [0], [1], [0, 0, 1, 1], [], []>} : vector<64x4xbf16>, vector<4x8xbf16>, vector<64x8xf32> -> vector<64x8xf32>
    %59 = arith.addf %50, %58 : vector<64x8xf32>
    %cst_33 = arith.constant 0.000000e+00 : f32
    %60 = vector.broadcast %cst_33 : f32 to vector<1x1x8x4xf32>
    %61 = vector.extract_strided_slice %7 {offsets = [0, 1, 0, 0], sizes = [1, 7, 8, 4], strides = [1, 1, 1, 1]} : vector<1x8x8x4xf32> to vector<1x7x8x4xf32>
    %62 = tpu.concatenate %61, %60 in 1 : vector<1x7x8x4xf32>, vector<1x1x8x4xf32> -> vector<1x8x8x4xf32>
    %cst_34 = arith.constant 0.000000e+00 : f32
    %63 = vector.broadcast %cst_34 : f32 to vector<1x8x1x4xf32>
    %64 = vector.extract_strided_slice %62 {offsets = [0, 0, 0, 0], sizes = [1, 8, 7, 4], strides = [1, 1, 1, 1]} : vector<1x8x8x4xf32> to vector<1x8x7x4xf32>
    %65 = tpu.concatenate %63, %64 in 2 : vector<1x8x1x4xf32>, vector<1x8x7x4xf32> -> vector<1x8x8x4xf32>
    %66 = vector.shape_cast %65 : vector<1x8x8x4xf32> to vector<64x4xf32>
    %67 = arith.truncf %66 : vector<64x4xf32> to vector<64x4xbf16>
    %c6 = arith.constant 6 : index
    %c0_35 = arith.constant 0 : index
    %c0_36 = arith.constant 0 : index
    %68 = vector.load %arg2[%c6, %c0_35, %c0_36] : memref<9x4x8xbf16, #tpu.memory_space<vmem>>, vector<1x4x8xbf16>
    %69 = vector.shape_cast %68 : vector<1x4x8xbf16> to vector<4x8xbf16>
    %cst_37 = arith.constant dense<0.000000e+00> : vector<64x8xf32>
    %70 = tpu.matmul %67, %69, %cst_37 {dimension_numbers = #tpu.dot_dimension_numbers<[1], [0], [0], [1], [0, 0, 1, 1], [], []>} : vector<64x4xbf16>, vector<4x8xbf16>, vector<64x8xf32> -> vector<64x8xf32>
    %71 = arith.addf %59, %70 : vector<64x8xf32>
    %72 = vector.shape_cast %62 : vector<1x8x8x4xf32> to vector<64x4xf32>
    %73 = arith.truncf %72 : vector<64x4xf32> to vector<64x4xbf16>
    %c7 = arith.constant 7 : index
    %c0_38 = arith.constant 0 : index
    %c0_39 = arith.constant 0 : index
    %74 = vector.load %arg2[%c7, %c0_38, %c0_39] : memref<9x4x8xbf16, #tpu.memory_space<vmem>>, vector<1x4x8xbf16>
    %75 = vector.shape_cast %74 : vector<1x4x8xbf16> to vector<4x8xbf16>
    %cst_40 = arith.constant dense<0.000000e+00> : vector<64x8xf32>
    %76 = tpu.matmul %73, %75, %cst_40 {dimension_numbers = #tpu.dot_dimension_numbers<[1], [0], [0], [1], [0, 0, 1, 1], [], []>} : vector<64x4xbf16>, vector<4x8xbf16>, vector<64x8xf32> -> vector<64x8xf32>
    %77 = arith.addf %71, %76 : vector<64x8xf32>
    %cst_41 = arith.constant 0.000000e+00 : f32
    %78 = vector.broadcast %cst_41 : f32 to vector<1x8x1x4xf32>
    %79 = vector.extract_strided_slice %62 {offsets = [0, 0, 1, 0], sizes = [1, 8, 7, 4], strides = [1, 1, 1, 1]} : vector<1x8x8x4xf32> to vector<1x8x7x4xf32>
    %80 = tpu.concatenate %79, %78 in 2 : vector<1x8x7x4xf32>, vector<1x8x1x4xf32> -> vector<1x8x8x4xf32>
    %81 = vector.shape_cast %80 : vector<1x8x8x4xf32> to vector<64x4xf32>
    %82 = arith.truncf %81 : vector<64x4xf32> to vector<64x4xbf16>
    %c8 = arith.constant 8 : index
    %c0_42 = arith.constant 0 : index
    %c0_43 = arith.constant 0 : index
    %83 = vector.load %arg2[%c8, %c0_42, %c0_43] : memref<9x4x8xbf16, #tpu.memory_space<vmem>>, vector<1x4x8xbf16>
    %84 = vector.shape_cast %83 : vector<1x4x8xbf16> to vector<4x8xbf16>
    %cst_44 = arith.constant dense<0.000000e+00> : vector<64x8xf32>
    %85 = tpu.matmul %82, %84, %cst_44 {dimension_numbers = #tpu.dot_dimension_numbers<[1], [0], [0], [1], [0, 0, 1, 1], [], []>} : vector<64x4xbf16>, vector<4x8xbf16>, vector<64x8xf32> -> vector<64x8xf32>
    %86 = arith.addf %77, %85 : vector<64x8xf32>
    %87 = vector.shape_cast %86 : vector<64x8xf32> to vector<1x64x8xf32>
    %cst_45 = arith.constant dense<0.000000e+00> : vector<1x8xf32>
    %88 = vector.multi_reduction <add>, %87, %cst_45 [1] : vector<1x64x8xf32> to vector<1x8xf32>
    %89 = vector.shape_cast %88 : vector<1x8xf32> to vector<1x1x8xf32>
    %90 = arith.mulf %87, %87 : vector<1x64x8xf32>
    %cst_46 = arith.constant dense<0.000000e+00> : vector<1x8xf32>
    %91 = vector.multi_reduction <add>, %90, %cst_46 [1] : vector<1x64x8xf32> to vector<1x8xf32>
    %92 = vector.shape_cast %91 : vector<1x8xf32> to vector<1x1x8xf32>
    %cst_47 = arith.constant 1.562500e-02 : f32
    %93 = vector.broadcast %cst_47 : f32 to vector<1x1x8xf32>
    %94 = arith.mulf %89, %93 : vector<1x1x8xf32>
    %cst_48 = arith.constant 1.562500e-02 : f32
    %95 = vector.broadcast %cst_48 : f32 to vector<1x1x8xf32>
    %96 = arith.mulf %92, %95 : vector<1x1x8xf32>
    %97 = arith.mulf %94, %94 : vector<1x1x8xf32>
    %98 = arith.subf %96, %97 : vector<1x1x8xf32>
    %cst_49 = arith.constant 0.000000e+00 : f32
    %99 = vector.broadcast %cst_49 : f32 to vector<1x1x8xf32>
    %100 = arith.maximumf %98, %99 : vector<1x1x8xf32>
    %101 = vector.broadcast %94 : vector<1x1x8xf32> to vector<1x64x8xf32>
    %102 = arith.subf %87, %101 : vector<1x64x8xf32>
    %cst_50 = arith.constant 9.99999974E-6 : f32
    %103 = vector.broadcast %cst_50 : f32 to vector<1x1x8xf32>
    %104 = arith.addf %100, %103 : vector<1x1x8xf32>
    %105 = math.rsqrt %104 : vector<1x1x8xf32>
    %106 = vector.broadcast %105 : vector<1x1x8xf32> to vector<1x64x8xf32>
    %107 = arith.mulf %102, %106 : vector<1x64x8xf32>
    %cst_51 = arith.constant 0.000000e+00 : f32
    %108 = vector.broadcast %cst_51 : f32 to vector<1x64x8xf32>
    %109 = arith.maximumf %107, %108 : vector<1x64x8xf32>
    %110 = vector.shape_cast %109 : vector<1x64x8xf32> to vector<1x8x8x8xf32>
    %cst_52 = arith.constant 0.000000e+00 : f32
    %111 = vector.broadcast %cst_52 : f32 to vector<64x8xf32>
    %cst_53 = arith.constant 0.000000e+00 : f32
    %112 = vector.broadcast %cst_53 : f32 to vector<1x1x8x8xf32>
    %113 = vector.extract_strided_slice %110 {offsets = [0, 0, 0, 0], sizes = [1, 7, 8, 8], strides = [1, 1, 1, 1]} : vector<1x8x8x8xf32> to vector<1x7x8x8xf32>
    %114 = tpu.concatenate %112, %113 in 1 : vector<1x1x8x8xf32>, vector<1x7x8x8xf32> -> vector<1x8x8x8xf32>
    %cst_54 = arith.constant 0.000000e+00 : f32
    %115 = vector.broadcast %cst_54 : f32 to vector<1x8x1x8xf32>
    %116 = vector.extract_strided_slice %114 {offsets = [0, 0, 0, 0], sizes = [1, 8, 7, 8], strides = [1, 1, 1, 1]} : vector<1x8x8x8xf32> to vector<1x8x7x8xf32>
    %117 = tpu.concatenate %115, %116 in 2 : vector<1x8x1x8xf32>, vector<1x8x7x8xf32> -> vector<1x8x8x8xf32>
    %118 = vector.shape_cast %117 : vector<1x8x8x8xf32> to vector<64x8xf32>
    %119 = arith.truncf %118 : vector<64x8xf32> to vector<64x8xbf16>
    %c0_55 = arith.constant 0 : index
    %c0_56 = arith.constant 0 : index
    %c0_57 = arith.constant 0 : index
    %120 = vector.load %arg3[%c0_55, %c0_56, %c0_57] : memref<9x8x8xbf16, #tpu.memory_space<vmem>>, vector<1x8x8xbf16>
    %121 = vector.shape_cast %120 : vector<1x8x8xbf16> to vector<8x8xbf16>
    %cst_58 = arith.constant dense<0.000000e+00> : vector<64x8xf32>
    %122 = tpu.matmul %119, %121, %cst_58 {dimension_numbers = #tpu.dot_dimension_numbers<[1], [0], [0], [1], [0, 0, 1, 1], [], []>} : vector<64x8xbf16>, vector<8x8xbf16>, vector<64x8xf32> -> vector<64x8xf32>
    %123 = arith.addf %111, %122 : vector<64x8xf32>
    %124 = vector.shape_cast %114 : vector<1x8x8x8xf32> to vector<64x8xf32>
    %125 = arith.truncf %124 : vector<64x8xf32> to vector<64x8xbf16>
    %c1_59 = arith.constant 1 : index
    %c0_60 = arith.constant 0 : index
    %c0_61 = arith.constant 0 : index
    %126 = vector.load %arg3[%c1_59, %c0_60, %c0_61] : memref<9x8x8xbf16, #tpu.memory_space<vmem>>, vector<1x8x8xbf16>
    %127 = vector.shape_cast %126 : vector<1x8x8xbf16> to vector<8x8xbf16>
    %cst_62 = arith.constant dense<0.000000e+00> : vector<64x8xf32>
    %128 = tpu.matmul %125, %127, %cst_62 {dimension_numbers = #tpu.dot_dimension_numbers<[1], [0], [0], [1], [0, 0, 1, 1], [], []>} : vector<64x8xbf16>, vector<8x8xbf16>, vector<64x8xf32> -> vector<64x8xf32>
    %129 = arith.addf %123, %128 : vector<64x8xf32>
    %cst_63 = arith.constant 0.000000e+00 : f32
    %130 = vector.broadcast %cst_63 : f32 to vector<1x8x1x8xf32>
    %131 = vector.extract_strided_slice %114 {offsets = [0, 0, 1, 0], sizes = [1, 8, 7, 8], strides = [1, 1, 1, 1]} : vector<1x8x8x8xf32> to vector<1x8x7x8xf32>
    %132 = tpu.concatenate %131, %130 in 2 : vector<1x8x7x8xf32>, vector<1x8x1x8xf32> -> vector<1x8x8x8xf32>
    %133 = vector.shape_cast %132 : vector<1x8x8x8xf32> to vector<64x8xf32>
    %134 = arith.truncf %133 : vector<64x8xf32> to vector<64x8xbf16>
    %c2_64 = arith.constant 2 : index
    %c0_65 = arith.constant 0 : index
    %c0_66 = arith.constant 0 : index
    %135 = vector.load %arg3[%c2_64, %c0_65, %c0_66] : memref<9x8x8xbf16, #tpu.memory_space<vmem>>, vector<1x8x8xbf16>
    %136 = vector.shape_cast %135 : vector<1x8x8xbf16> to vector<8x8xbf16>
    %cst_67 = arith.constant dense<0.000000e+00> : vector<64x8xf32>
    %137 = tpu.matmul %134, %136, %cst_67 {dimension_numbers = #tpu.dot_dimension_numbers<[1], [0], [0], [1], [0, 0, 1, 1], [], []>} : vector<64x8xbf16>, vector<8x8xbf16>, vector<64x8xf32> -> vector<64x8xf32>
    %138 = arith.addf %129, %137 : vector<64x8xf32>
    %cst_68 = arith.constant 0.000000e+00 : f32
    %139 = vector.broadcast %cst_68 : f32 to vector<1x8x1x8xf32>
    %140 = vector.extract_strided_slice %110 {offsets = [0, 0, 0, 0], sizes = [1, 8, 7, 8], strides = [1, 1, 1, 1]} : vector<1x8x8x8xf32> to vector<1x8x7x8xf32>
    %141 = tpu.concatenate %139, %140 in 2 : vector<1x8x1x8xf32>, vector<1x8x7x8xf32> -> vector<1x8x8x8xf32>
    %142 = vector.shape_cast %141 : vector<1x8x8x8xf32> to vector<64x8xf32>
    %143 = arith.truncf %142 : vector<64x8xf32> to vector<64x8xbf16>
    %c3_69 = arith.constant 3 : index
    %c0_70 = arith.constant 0 : index
    %c0_71 = arith.constant 0 : index
    %144 = vector.load %arg3[%c3_69, %c0_70, %c0_71] : memref<9x8x8xbf16, #tpu.memory_space<vmem>>, vector<1x8x8xbf16>
    %145 = vector.shape_cast %144 : vector<1x8x8xbf16> to vector<8x8xbf16>
    %cst_72 = arith.constant dense<0.000000e+00> : vector<64x8xf32>
    %146 = tpu.matmul %143, %145, %cst_72 {dimension_numbers = #tpu.dot_dimension_numbers<[1], [0], [0], [1], [0, 0, 1, 1], [], []>} : vector<64x8xbf16>, vector<8x8xbf16>, vector<64x8xf32> -> vector<64x8xf32>
    %147 = arith.addf %138, %146 : vector<64x8xf32>
    %148 = vector.shape_cast %110 : vector<1x8x8x8xf32> to vector<64x8xf32>
    %149 = arith.truncf %148 : vector<64x8xf32> to vector<64x8xbf16>
    %c4_73 = arith.constant 4 : index
    %c0_74 = arith.constant 0 : index
    %c0_75 = arith.constant 0 : index
    %150 = vector.load %arg3[%c4_73, %c0_74, %c0_75] : memref<9x8x8xbf16, #tpu.memory_space<vmem>>, vector<1x8x8xbf16>
    %151 = vector.shape_cast %150 : vector<1x8x8xbf16> to vector<8x8xbf16>
    %cst_76 = arith.constant dense<0.000000e+00> : vector<64x8xf32>
    %152 = tpu.matmul %149, %151, %cst_76 {dimension_numbers = #tpu.dot_dimension_numbers<[1], [0], [0], [1], [0, 0, 1, 1], [], []>} : vector<64x8xbf16>, vector<8x8xbf16>, vector<64x8xf32> -> vector<64x8xf32>
    %153 = arith.addf %147, %152 : vector<64x8xf32>
    %cst_77 = arith.constant 0.000000e+00 : f32
    %154 = vector.broadcast %cst_77 : f32 to vector<1x8x1x8xf32>
    %155 = vector.extract_strided_slice %110 {offsets = [0, 0, 1, 0], sizes = [1, 8, 7, 8], strides = [1, 1, 1, 1]} : vector<1x8x8x8xf32> to vector<1x8x7x8xf32>
    %156 = tpu.concatenate %155, %154 in 2 : vector<1x8x7x8xf32>, vector<1x8x1x8xf32> -> vector<1x8x8x8xf32>
    %157 = vector.shape_cast %156 : vector<1x8x8x8xf32> to vector<64x8xf32>
    %158 = arith.truncf %157 : vector<64x8xf32> to vector<64x8xbf16>
    %c5_78 = arith.constant 5 : index
    %c0_79 = arith.constant 0 : index
    %c0_80 = arith.constant 0 : index
    %159 = vector.load %arg3[%c5_78, %c0_79, %c0_80] : memref<9x8x8xbf16, #tpu.memory_space<vmem>>, vector<1x8x8xbf16>
    %160 = vector.shape_cast %159 : vector<1x8x8xbf16> to vector<8x8xbf16>
    %cst_81 = arith.constant dense<0.000000e+00> : vector<64x8xf32>
    %161 = tpu.matmul %158, %160, %cst_81 {dimension_numbers = #tpu.dot_dimension_numbers<[1], [0], [0], [1], [0, 0, 1, 1], [], []>} : vector<64x8xbf16>, vector<8x8xbf16>, vector<64x8xf32> -> vector<64x8xf32>
    %162 = arith.addf %153, %161 : vector<64x8xf32>
    %cst_82 = arith.constant 0.000000e+00 : f32
    %163 = vector.broadcast %cst_82 : f32 to vector<1x1x8x8xf32>
    %164 = vector.extract_strided_slice %110 {offsets = [0, 1, 0, 0], sizes = [1, 7, 8, 8], strides = [1, 1, 1, 1]} : vector<1x8x8x8xf32> to vector<1x7x8x8xf32>
    %165 = tpu.concatenate %164, %163 in 1 : vector<1x7x8x8xf32>, vector<1x1x8x8xf32> -> vector<1x8x8x8xf32>
    %cst_83 = arith.constant 0.000000e+00 : f32
    %166 = vector.broadcast %cst_83 : f32 to vector<1x8x1x8xf32>
    %167 = vector.extract_strided_slice %165 {offsets = [0, 0, 0, 0], sizes = [1, 8, 7, 8], strides = [1, 1, 1, 1]} : vector<1x8x8x8xf32> to vector<1x8x7x8xf32>
    %168 = tpu.concatenate %166, %167 in 2 : vector<1x8x1x8xf32>, vector<1x8x7x8xf32> -> vector<1x8x8x8xf32>
    %169 = vector.shape_cast %168 : vector<1x8x8x8xf32> to vector<64x8xf32>
    %170 = arith.truncf %169 : vector<64x8xf32> to vector<64x8xbf16>
    %c6_84 = arith.constant 6 : index
    %c0_85 = arith.constant 0 : index
    %c0_86 = arith.constant 0 : index
    %171 = vector.load %arg3[%c6_84, %c0_85, %c0_86] : memref<9x8x8xbf16, #tpu.memory_space<vmem>>, vector<1x8x8xbf16>
    %172 = vector.shape_cast %171 : vector<1x8x8xbf16> to vector<8x8xbf16>
    %cst_87 = arith.constant dense<0.000000e+00> : vector<64x8xf32>
    %173 = tpu.matmul %170, %172, %cst_87 {dimension_numbers = #tpu.dot_dimension_numbers<[1], [0], [0], [1], [0, 0, 1, 1], [], []>} : vector<64x8xbf16>, vector<8x8xbf16>, vector<64x8xf32> -> vector<64x8xf32>
    %174 = arith.addf %162, %173 : vector<64x8xf32>
    %175 = vector.shape_cast %165 : vector<1x8x8x8xf32> to vector<64x8xf32>
    %176 = arith.truncf %175 : vector<64x8xf32> to vector<64x8xbf16>
    %c7_88 = arith.constant 7 : index
    %c0_89 = arith.constant 0 : index
    %c0_90 = arith.constant 0 : index
    %177 = vector.load %arg3[%c7_88, %c0_89, %c0_90] : memref<9x8x8xbf16, #tpu.memory_space<vmem>>, vector<1x8x8xbf16>
    %178 = vector.shape_cast %177 : vector<1x8x8xbf16> to vector<8x8xbf16>
    %cst_91 = arith.constant dense<0.000000e+00> : vector<64x8xf32>
    %179 = tpu.matmul %176, %178, %cst_91 {dimension_numbers = #tpu.dot_dimension_numbers<[1], [0], [0], [1], [0, 0, 1, 1], [], []>} : vector<64x8xbf16>, vector<8x8xbf16>, vector<64x8xf32> -> vector<64x8xf32>
    %180 = arith.addf %174, %179 : vector<64x8xf32>
    %cst_92 = arith.constant 0.000000e+00 : f32
    %181 = vector.broadcast %cst_92 : f32 to vector<1x8x1x8xf32>
    %182 = vector.extract_strided_slice %165 {offsets = [0, 0, 1, 0], sizes = [1, 8, 7, 8], strides = [1, 1, 1, 1]} : vector<1x8x8x8xf32> to vector<1x8x7x8xf32>
    %183 = tpu.concatenate %182, %181 in 2 : vector<1x8x7x8xf32>, vector<1x8x1x8xf32> -> vector<1x8x8x8xf32>
    %184 = vector.shape_cast %183 : vector<1x8x8x8xf32> to vector<64x8xf32>
    %185 = arith.truncf %184 : vector<64x8xf32> to vector<64x8xbf16>
    %c8_93 = arith.constant 8 : index
    %c0_94 = arith.constant 0 : index
    %c0_95 = arith.constant 0 : index
    %186 = vector.load %arg3[%c8_93, %c0_94, %c0_95] : memref<9x8x8xbf16, #tpu.memory_space<vmem>>, vector<1x8x8xbf16>
    %187 = vector.shape_cast %186 : vector<1x8x8xbf16> to vector<8x8xbf16>
    %cst_96 = arith.constant dense<0.000000e+00> : vector<64x8xf32>
    %188 = tpu.matmul %185, %187, %cst_96 {dimension_numbers = #tpu.dot_dimension_numbers<[1], [0], [0], [1], [0, 0, 1, 1], [], []>} : vector<64x8xbf16>, vector<8x8xbf16>, vector<64x8xf32> -> vector<64x8xf32>
    %189 = arith.addf %180, %188 : vector<64x8xf32>
    %190 = vector.shape_cast %189 : vector<64x8xf32> to vector<1x64x8xf32>
    %cst_97 = arith.constant dense<0.000000e+00> : vector<1x8xf32>
    %191 = vector.multi_reduction <add>, %190, %cst_97 [1] : vector<1x64x8xf32> to vector<1x8xf32>
    %192 = vector.shape_cast %191 : vector<1x8xf32> to vector<1x1x8xf32>
    %193 = arith.mulf %190, %190 : vector<1x64x8xf32>
    %cst_98 = arith.constant dense<0.000000e+00> : vector<1x8xf32>
    %194 = vector.multi_reduction <add>, %193, %cst_98 [1] : vector<1x64x8xf32> to vector<1x8xf32>
    %195 = vector.shape_cast %194 : vector<1x8xf32> to vector<1x1x8xf32>
    %cst_99 = arith.constant 1.562500e-02 : f32
    %196 = vector.broadcast %cst_99 : f32 to vector<1x1x8xf32>
    %197 = arith.mulf %192, %196 : vector<1x1x8xf32>
    %cst_100 = arith.constant 1.562500e-02 : f32
    %198 = vector.broadcast %cst_100 : f32 to vector<1x1x8xf32>
    %199 = arith.mulf %195, %198 : vector<1x1x8xf32>
    %200 = arith.mulf %197, %197 : vector<1x1x8xf32>
    %201 = arith.subf %199, %200 : vector<1x1x8xf32>
    %cst_101 = arith.constant 0.000000e+00 : f32
    %202 = vector.broadcast %cst_101 : f32 to vector<1x1x8xf32>
    %203 = arith.maximumf %201, %202 : vector<1x1x8xf32>
    %204 = vector.broadcast %197 : vector<1x1x8xf32> to vector<1x64x8xf32>
    %205 = arith.subf %190, %204 : vector<1x64x8xf32>
    %cst_102 = arith.constant 9.99999974E-6 : f32
    %206 = vector.broadcast %cst_102 : f32 to vector<1x1x8xf32>
    %207 = arith.addf %203, %206 : vector<1x1x8xf32>
    %208 = math.rsqrt %207 : vector<1x1x8xf32>
    %209 = vector.broadcast %208 : vector<1x1x8xf32> to vector<1x64x8xf32>
    %210 = arith.mulf %205, %209 : vector<1x64x8xf32>
    %cst_103 = arith.constant 0.000000e+00 : f32
    %211 = vector.broadcast %cst_103 : f32 to vector<1x64x8xf32>
    %212 = arith.maximumf %210, %211 : vector<1x64x8xf32>
    %c0_104 = arith.constant 0 : index
    %c0_105 = arith.constant 0 : index
    %c0_106 = arith.constant 0 : index
    %213 = vector.load %arg4[%c0_104, %c0_105, %c0_106] : memref<1x64x8xf32, #tpu.memory_space<vmem>>, vector<1x64x8xf32>
    tpu.vector_store %arg4[%c0_104, %c0_105, %c0_106], %212 {strides = array<i32>} : memref<1x64x8xf32, #tpu.memory_space<vmem>>, vector<1x64x8xf32>,
    return
  }
  func.func @transform_0(%arg0: i32) -> (i32, i32, i32, i32, i32) {
    %c0_i32 = arith.constant 0 : i32
    %c0_i32_0 = arith.constant 0 : i32
    %c0_i32_1 = arith.constant 0 : i32
    %c0_i32_2 = arith.constant 0 : i32
    %c0_i32_3 = arith.constant 0 : i32
    return %arg0, %c0_i32, %c0_i32_0, %c0_i32_1, %c0_i32_2 : i32, i32, i32, i32, i32
  }
  func.func @transform_1(%arg0: i32) -> (i32, i32, i32) {
    %c0_i32 = arith.constant 0 : i32
    %c0_i32_0 = arith.constant 0 : i32
    %c0_i32_1 = arith.constant 0 : i32
    %c0_i32_2 = arith.constant 0 : i32
    return %c0_i32, %c0_i32_0, %c0_i32_1 : i32, i32, i32
  }
  func.func @transform_2(%arg0: i32) -> (i32, i32, i32) {
    %c0_i32 = arith.constant 0 : i32
    %c0_i32_0 = arith.constant 0 : i32
    %c0_i32_1 = arith.constant 0 : i32
    %c0_i32_2 = arith.constant 0 : i32
    return %c0_i32, %c0_i32_0, %c0_i32_1 : i32, i32, i32
  }
  func.func @transform_3(%arg0: i32) -> (i32, i32, i32) {
    %c0_i32 = arith.constant 0 : i32
    %c0_i32_0 = arith.constant 0 : i32
    %c0_i32_1 = arith.constant 0 : i32
    return %arg0, %c0_i32, %c0_i32_0 : i32, i32, i32
  }
}

</mosaic_0001>

<llo_original>
// kernel: tpu_custom_call.1
$region0: #{tpu_custom_call.1}
  #allocation0 [shape = 'u32[]', space=smem, size = 0x4, offset = 0x4, fixed_abs, tag = 'smem constant byte address 0x4 - core index']
  #allocation1 [shape = 'u32[72,128]{1,0:T(1,128)}', space=vmem, size = 0x9000, scoped, tag = 'internal scratch']
  %s0 = inlined_call_operand.hbm [shape: f32[2,8,2,8,8], index: 0, kind: input, shape index: {}]
  %s1 = inlined_call_operand.vmem [shape: bf16[9,4,8], index: 1, kind: input, shape index: {}]
  %s2 = inlined_call_operand.vmem [shape: bf16[9,8,8], index: 2, kind: input, shape index: {}]
  %s3 = inlined_call_operand.vmem [shape: f32[2,64,8], index: 3, kind: output, shape index: {}]
  %s4 = sld [smem:[#allocation0]]
  $region49: #{tpu_custom_call.1} parent=0
    _
  %s6 = ssub.s32 1, %s4
  %s7 = scalar_select 0, %s6, %s4
  $region1: #{tpu_custom_call.1} parent=0
    #allocation2 [shape = 'u8[131072]{0}', space=vmem, size = 0x20000, scoped, tag = 'input window, operand 0']
    #allocation3 [shape = 's32[2]{0}', space=sflag, size = 0x8, scoped, tag = 'scoped memory for tpu_custom_call.1']
    %8 = vsyncpa [#allocation3], 0
    %s9 = scalar_lea.sflag [#allocation3], 1
    %10 = vsyncpa %s9, 0
    loop: start=0, step=1, limit=4
    $region2: #{tpu_custom_call.1} parent=1 // loop_pre_header
      _
    $region3: #{tpu_custom_call.1} parent=1 // loop_header
      %s12 = sphi 0, %s16
      %p13 = scmp.ge.s32.totalorder %s12, 4
      %s22 = sphi 0, %s24
      %s25 = sphi 0, %s22
      %s26 = sphi 0, %s25
      %s42 = sphi 0, %s26
      %s46 = sphi 0, %s46
      %s48 = sphi 0, %s46
      %s49 = sphi 0, %s48
      %s63 = sphi 0, %s49
      %s67 = sphi 0, %s67
      %s69 = sphi 0, %s67
      %s70 = sphi 0, %s69
      %s84 = sphi 0, %s70
      %s90 = sphi 0, %s92
      %s93 = sphi 0, %s90
      %s94 = sphi 0, %s93
      %s110 = sphi 0, %s94
    $region4: #{tpu_custom_call.1} parent=1 // loop_header_branch
      %15 = sbr.rel (%p13) target = $region8
    $region5: #{tpu_custom_call.1} parent=1 // loop_body
      %s17 = ssub.s32 %s12, 1
      %s18 = ssub.s32 %s12, 2
      %s19 = sadd.s32 %s12, 1
      %s20 = ssub.s32 %s12, %s19
      %p21 = scmp.eq.s32.totalorder %s20, 0
      %s23 = sadd.s32 %s22, 1
      %s24 = scalar_select %p21, %s22, %s23
      %p27 = pneg %p21
      %p28 = scmp.eq.s32.totalorder %s12, 1
      %p29 = por %p27, %p28
      %p30 = scmp.ne.s32.totalorder %s22, %s25
      %p31 = scmp.eq.s32.totalorder %s12, 0
      %p32 = por %p30, %p31
      %p33 = scmp.ne.s32.totalorder %s22, %s25
      %p34 = scmp.eq.s32.totalorder %s17, 1
      %p35 = por %p33, %p34
      %p36 = scmp.ne.s32.totalorder %s25, %s26
      %p37 = scmp.eq.s32.totalorder %s17, 0
      %p38 = por %p36, %p37
      %p39 = scmp.ne.s32.totalorder %s25, %s26
      %p40 = scmp.eq.s32.totalorder %s18, 1
      %p41 = por %p39, %p40
      %p43 = scmp.ne.s32.totalorder %s26, %s42
      %p44 = scmp.eq.s32.totalorder %s18, 0
      %p45 = por %p43, %p44
      %s47 = sadd.s32 %s46, 1
      %p50 = scmp.eq.s32.totalorder %s12, 1
      %p51 = scmp.ne.s32.totalorder %s46, %s48
      %p52 = scmp.eq.s32.totalorder %s12, 0
      %p53 = por %p51, %p52
      %p54 = scmp.ne.s32.totalorder %s46, %s48
      %p55 = scmp.eq.s32.totalorder %s17, 1
      %p56 = por %p54, %p55
      %p57 = scmp.ne.s32.totalorder %s48, %s49
      %p58 = scmp.eq.s32.totalorder %s17, 0
      %p59 = por %p57, %p58
      %p60 = scmp.ne.s32.totalorder %s48, %s49
      %p61 = scmp.eq.s32.totalorder %s18, 1
      %p62 = por %p60, %p61
      %p64 = scmp.ne.s32.totalorder %s49, %s63
      %p65 = scmp.eq.s32.totalorder %s18, 0
      %p66 = por %p64, %p65
      %s68 = sadd.s32 %s67, 1
      %p71 = scmp.eq.s32.totalorder %s12, 1
      %p72 = scmp.ne.s32.totalorder %s67, %s69
      %p73 = scmp.eq.s32.totalorder %s12, 0
      %p74 = por %p72, %p73
      %p75 = scmp.ne.s32.totalorder %s67, %s69
      %p76 = scmp.eq.s32.totalorder %s17, 1
      %p77 = por %p75, %p76
      %p78 = scmp.ne.s32.totalorder %s69, %s70
      %p79 = scmp.eq.s32.totalorder %s17, 0
      %p80 = por %p78, %p79
      %p81 = scmp.ne.s32.totalorder %s69, %s70
      %p82 = scmp.eq.s32.totalorder %s18, 1
      %p83 = por %p81, %p82
      %p85 = scmp.ne.s32.totalorder %s70, %s84
      %p86 = scmp.eq.s32.totalorder %s18, 0
      %p87 = por %p85, %p86
      %s88 = ssub.s32 %s12, %s19
      %p89 = scmp.eq.s32.totalorder %s88, 0
      %s91 = sadd.s32 %s90, 1
      %s92 = scalar_select %p89, %s90, %s91
      %p95 = pneg %p89
      %p96 = scmp.eq.s32.totalorder %s12, 1
      %p97 = por %p95, %p96
      %p98 = scmp.ne.s32.totalorder %s90, %s93
      %p99 = scmp.eq.s32.totalorder %s12, 0
      %p100 = por %p98, %p99
      %p101 = scmp.ne.s32.totalorder %s90, %s93
      %p102 = scmp.eq.s32.totalorder %s17, 1
      %p103 = por %p101, %p102
      %p104 = scmp.ne.s32.totalorder %s93, %s94
      %p105 = scmp.eq.s32.totalorder %s17, 0
      %p106 = por %p104, %p105
      %p107 = scmp.ne.s32.totalorder %s93, %s94
      %p108 = scmp.eq.s32.totalorder %s18, 1
      %p109 = por %p107, %p108
      %p111 = scmp.ne.s32.totalorder %s94, %s110
      %p112 = scmp.eq.s32.totalorder %s18, 0
      %p113 = por %p111, %p112
      %p114 = scmp.le.s32.totalorder 1, %s12
      %p115 = scmp.lt.s32.totalorder %s12, 3
      %p116 = pnand %p114, %p115
      %p117 = pneg %p116
      // Predicated region
      $region9: #{tpu_custom_call.1} parent=5 // pred_check
        _
      $region10: #{tpu_custom_call.1} parent=5 // pred_check_branch
        %119 = sbr.rel (%p116) target = $region12
      $region11: #{tpu_custom_call.1} parent=5 // pred_region
        %s120 = ssub.s32 %s12, 1
        // Predicated region
        $region13: #{tpu_custom_call.1} parent=11 // pred_check
          %p121 = pneg %p59
        $region14: #{tpu_custom_call.1} parent=11 // pred_check_branch
          %123 = sbr.rel (%p121) target = $region16
        $region15: #{tpu_custom_call.1} parent=11 // pred_region
          _
        $region16: #{tpu_custom_call.1} parent=11 // pred_fallthru
          _
        // Predicated region
        $region17: #{tpu_custom_call.1} parent=11 // pred_check
          %p124 = pneg %p80
        $region18: #{tpu_custom_call.1} parent=11 // pred_check_branch
          %126 = sbr.rel (%p124) target = $region20
        $region19: #{tpu_custom_call.1} parent=11 // pred_region
          _
        $region20: #{tpu_custom_call.1} parent=11 // pred_fallthru
          _
      $region12: #{tpu_custom_call.1} parent=5 // pred_fallthru
        _
      %p127 = scmp.lt.s32.totalorder %s12, 2
      // Predicated region
      $region21: #{tpu_custom_call.1} parent=5 // pred_check
        %p128 = pneg %p127
      $region22: #{tpu_custom_call.1} parent=5 // pred_check_branch
        %130 = sbr.rel (%p128) target = $region24
      $region23: #{tpu_custom_call.1} parent=5 // pred_region
        // Predicated region
        $region25: #{tpu_custom_call.1} parent=23 // pred_check
          %p131 = pneg %p32
        $region26: #{tpu_custom_call.1} parent=23 // pred_check_branch
          %133 = sbr.rel (%p131) target = $region28
        $region27: #{tpu_custom_call.1} parent=23 // pred_region
          %s134 = sand.u32 %s22, 1
          %s135 = scalar_lea.sflag [#allocation3], %s134
          %s136 = sand.u32 %s22, 1
          %s137 = smul.addr %s136, 128
          %s138 = scalar_lea.vmem [#allocation2], %s137
          %140 = vsyncadd %s135, 0
          %s141 = smul.addr %s12, 16
          %s142 = smul.addr %s141, 8
          %s143 = scalar_lea.hbm %s0, %s142
          %s144 = sshll.u32 %s143, 4
          %s145 = int_to_ptr.hbm [resolvable:$true] %s144
          %s146 = sshll.u32 %s138, 4
          %s147 = int_to_ptr.vmem [resolvable:$true] %s146
          %152 = dma.hbm_to_vmem [thread:$0]  %s145, 2048, %s147, %s135, 128, 128, 8
        $region28: #{tpu_custom_call.1} parent=23 // pred_fallthru
          _
      $region24: #{tpu_custom_call.1} parent=5 // pred_fallthru
        _
      %p153 = scmp.le.s32.totalorder 1, %s12
      %p154 = scmp.lt.s32.totalorder %s12, 3
      %p155 = pnand %p153, %p154
      %p156 = pneg %p155
      // Predicated region
      $region29: #{tpu_custom_call.1} parent=5 // pred_check
        _
      $region30: #{tpu_custom_call.1} parent=5 // pred_check_branch
        %158 = sbr.rel (%p155) target = $region32
      $region31: #{tpu_custom_call.1} parent=5 // pred_region
        %s159 = ssub.s32 %s12, 1
        %s160 = sand.u32 %s25, 1
        %s161 = scalar_lea.sflag [#allocation3], %s160
        %s162 = sand.u32 %s25, 1
        %s163 = smul.addr %s162, 128
        %s164 = scalar_lea.vmem [#allocation2], %s163
        // Predicated region
        $region33: #{tpu_custom_call.1} parent=31 // pred_check
          %p165 = pneg %p38
        $region34: #{tpu_custom_call.1} parent=31 // pred_check_branch
          %167 = sbr.rel (%p165) target = $region36
        $region35: #{tpu_custom_call.1} parent=31 // pred_region
          %169 = dma.done %s161, 2048
        $region36: #{tpu_custom_call.1} parent=31 // pred_fallthru
          _
        %s170 = sand.u32 %s25, 1
        %s171 = scalar_lea.sflag [#allocation3], %s170
        %s172 = sand.u32 %s25, 1
        %s173 = smul.addr %s172, 128
        %s174 = scalar_lea.vmem [#allocation2], %s173
        %p175 = pneg %p38
        %p176 = pneg %p35
        %p177 = pneg %p59
        %p178 = pneg %p56
        %p179 = pneg %p80
        %p180 = pneg %p77
        %p181 = pneg %p106
        %p182 = pneg %p103
        %p183 = scmp.lt.s32.totalorder %s17, 1
        %s184 = scalar_select %p183, %s17, 1
        %s185 = smul.addr %s184, 8
        %s186 = smul.addr %s185, 8
        %s187 = scalar_lea.vmem %s3, %s186
        %p188 = scmp.lt.s32.totalorder %s17, 1
        %s189 = scalar_select %p188, %s17, 1
        %s190 = smul.addr %s189, 8
        %s191 = smul.addr %s190, 8
        %s192 = scalar_lea.vmem %s3, %s191
        %v194 = vld [vmem:[%s164] sm:$0xff]
        %v195 = vld [vmem:[%s164 + $0x10] sm:$0xff]
        %v196 = vld [vmem:[%s164 + $0x20] sm:$0xff]
        %v197 = vld [vmem:[%s164 + $0x30] sm:$0xff]
        %v198 = vld [vmem:[%s164 + $0x40] sm:$0xff]
        %v199 = vld [vmem:[%s164 + $0x50] sm:$0xff]
        %v200 = vld [vmem:[%s164 + $0x60] sm:$0xff]
        %v201 = vld [vmem:[%s164 + $0x70] sm:$0xff]
        %s202 = scalar_lea.vmem %s164, 8 [#allocation2]
        %v203 = vld [vmem:[%s202] sm:$0xff]
        %v204 = vld [vmem:[%s202 + $0x10] sm:$0xff]
        %v205 = vld [vmem:[%s202 + $0x20] sm:$0xff]
        %v206 = vld [vmem:[%s202 + $0x30] sm:$0xff]
        %v207 = vld [vmem:[%s202 + $0x40] sm:$0xff]
        %v208 = vld [vmem:[%s202 + $0x50] sm:$0xff]
        %v209 = vld [vmem:[%s202 + $0x60] sm:$0xff]
        %v210 = vld [vmem:[%s202 + $0x70] sm:$0xff]
        %v211 = vmax.f32 %v194, %v203
        %v212 = vmax.f32 %v195, %v204
        %v213 = vmax.f32 %v196, %v205
        %v214 = vmax.f32 %v197, %v206
        %v215 = vmax.f32 %v198, %v207
        %v216 = vmax.f32 %v199, %v208
        %v217 = vmax.f32 %v200, %v209
        %v218 = vmax.f32 %v201, %v210
        %227 = vrot.lane.b32.xlu0 %v211, 124
        %v228 = vpop.permute.xlu0 %227
        %229 = vrot.lane.b32.xlu0 %v212, 124
        %v230 = vpop.permute.xlu0 %229
        %231 = vrot.lane.b32.xlu0 %v213, 124
        %v232 = vpop.permute.xlu0 %231
        %233 = vrot.lane.b32.xlu0 %v214, 124
        %v234 = vpop.permute.xlu0 %233
        %235 = vrot.lane.b32.xlu0 %v215, 124
        %v236 = vpop.permute.xlu0 %235
        %237 = vrot.lane.b32.xlu0 %v216, 124
        %v238 = vpop.permute.xlu0 %237
        %239 = vrot.lane.b32.xlu0 %v217, 124
        %v240 = vpop.permute.xlu0 %239
        %241 = vrot.lane.b32.xlu0 %v218, 124
        %v242 = vpop.permute.xlu0 %241
        %v251 = vmax.f32 %v211, %v228
        %v252 = vmax.f32 %v212, %v230
        %v253 = vmax.f32 %v213, %v232
        %v254 = vmax.f32 %v214, %v234
        %v255 = vmax.f32 %v215, %v236
        %v256 = vmax.f32 %v216, %v238
        %v257 = vmax.f32 %v217, %v240
        %v258 = vmax.f32 %v218, %v242
        %v267 = vrot.slane 0.0, 7
        %v268 = vrot.slane %v251, 7
        %v269 = vrot.slane %v252, 7
        %v270 = vrot.slane %v253, 7
        %v271 = vrot.slane %v254, 7
        %v272 = vrot.slane %v255, 7
        %v273 = vrot.slane %v256, 7
        %v274 = vrot.slane %v257, 7
        %vm283 = vcmask 1040384
        %v284 = vsel %vm283, 0.0, %v267
        %v285 = vsel %vm283, 0.0, %v268
        %v286 = vsel %vm283, 0.0, %v269
        %v287 = vsel %vm283, 0.0, %v270
        %v288 = vsel %vm283, 0.0, %v271
        %v289 = vsel %vm283, 0.0, %v272
        %v290 = vsel %vm283, 0.0, %v273
        %v291 = vsel %vm283, 0.0, %v274
        %v292 = vpack.c.bf16 %v285, %v284
        %v293 = vpack.c.bf16 %v287, %v286
        %v294 = vpack.c.bf16 %v289, %v288
        %v295 = vpack.c.bf16 %v291, %v290
        %v296 = vld [vmem:[%s1] sm:$0x3]
        %v297 = vpack.c.bf16 %v251, 0.0
        %v298 = vpack.c.bf16 %v253, %v252
        %v299 = vpack.c.bf16 %v255, %v254
        %v300 = vpack.c.bf16 %v257, %v256
        %s301 = scalar_lea.vmem %s1, 2
        %v302 = vld [vmem:[%s301] sm:$0x3]
        %vm303 = vcmask 31744
        %v305 = vsel %vm303, %v297, 0
        %v308 = vsel %vm303, %v298, 0
        %v311 = vsel %vm303, %v299, 0
        %v314 = vsel %vm303, %v300, 0
        %vm316 = vcmask 1041408
        %v318 = vsel %vm316, %v302, 0
        %320 = vmatpush.bf16.msra.mxu0 0
        %321 = vmatpush.bf16.msra.mxu0 0
        %322 = vmatpush.bf16.msra.mxu0 0
        %323 = vmatpush.bf16.msra.mxu0 0
        %324 = vmatpush.bf16.msra.mxu0 0
        %325 = vmatpush.bf16.msra.mxu0 0
        %326 = vmatpush.bf16.msra.mxu0 0
        %327 = vmatpush.bf16.msra.mxu0 %v318
        %328 = vmatmul.bf16.gmra.mxu0 %v305
        %v329 = vpop.f32.mrf.mxu0
        %v330 = vadd.f32 0.0, %v329
        %v331 = vpop.f32.mrf.mxu0
        %v332 = vadd.f32 0.0, %v331
        %333 = vmatmul.bf16.gmra.mxu0 %v308
        %v334 = vpop.f32.mrf.mxu0
        %v335 = vadd.f32 0.0, %v334
        %v336 = vpop.f32.mrf.mxu0
        %v337 = vadd.f32 0.0, %v336
        %338 = vmatmul.bf16.gmra.mxu0 %v311
        %v339 = vpop.f32.mrf.mxu0
        %v340 = vadd.f32 0.0, %v339
        %v341 = vpop.f32.mrf.mxu0
        %v342 = vadd.f32 0.0, %v341
        %343 = vmatmul.bf16.gmra.mxu0 %v314
        %v344 = vpop.f32.mrf.mxu0
        %v345 = vadd.f32 0.0, %v344
        %v346 = vpop.f32.mrf.mxu0
        %v347 = vadd.f32 0.0, %v346
        %348 = vdwg.mxu0
        %v350 = vsel %vm303, %v292, 0
        %v353 = vsel %vm303, %v293, 0
        %v356 = vsel %vm303, %v294, 0
        %v359 = vsel %vm303, %v295, 0
        %v362 = vsel %vm316, %v296, 0
        %364 = vmatpush.bf16.msra.mxu0 0
        %365 = vmatpush.bf16.msra.mxu0 0
        %366 = vmatpush.bf16.msra.mxu0 0
        %367 = vmatpush.bf16.msra.mxu0 0
        %368 = vmatpush.bf16.msra.mxu0 0
        %369 = vmatpush.bf16.msra.mxu0 0
        %370 = vmatpush.bf16.msra.mxu0 0
        %371 = vmatpush.bf16.msra.mxu0 %v362
        %372 = vmatmul.bf16.gmra.mxu0 %v350
        %v373 = vpop.f32.mrf.mxu0
        %v374 = vadd.f32 %v330, %v373
        %v375 = vpop.f32.mrf.mxu0
        %v376 = vadd.f32 %v332, %v375
        %377 = vmatmul.bf16.gmra.mxu0 %v353
        %v378 = vpop.f32.mrf.mxu0
        %v379 = vadd.f32 %v335, %v378
        %v380 = vpop.f32.mrf.mxu0
        %v381 = vadd.f32 %v337, %v380
        %382 = vmatmul.bf16.gmra.mxu0 %v356
        %v383 = vpop.f32.mrf.mxu0
        %v384 = vadd.f32 %v340, %v383
        %v385 = vpop.f32.mrf.mxu0
        %v386 = vadd.f32 %v342, %v385
        %387 = vmatmul.bf16.gmra.mxu0 %v359
        %v388 = vpop.f32.mrf.mxu0
        %v389 = vadd.f32 %v345, %v388
        %v390 = vpop.f32.mrf.mxu0
        %v391 = vadd.f32 %v347, %v390
        %392 = vdwg.mxu0
        %v393 = vrot.slane 0.0, 1
        %v394 = vrot.slane %v251, 1
        %v395 = vrot.slane %v252, 1
        %v396 = vrot.slane %v253, 1
        %v397 = vrot.slane %v254, 1
        %v398 = vrot.slane %v255, 1
        %v399 = vrot.slane %v256, 1
        %v400 = vrot.slane %v257, 1
        %vm409 = vcmask 1046528
        %v410 = vsel %vm409, %v393, 0.0
        %v411 = vsel %vm409, %v394, 0.0
        %v412 = vsel %vm409, %v395, 0.0
        %v413 = vsel %vm409, %v396, 0.0
        %v414 = vsel %vm409, %v397, 0.0
        %v415 = vsel %vm409, %v398, 0.0
        %v416 = vsel %vm409, %v399, 0.0
        %v417 = vsel %vm409, %v400, 0.0
        %v418 = vpack.c.bf16 %v411, %v410
        %v419 = vpack.c.bf16 %v413, %v412
        %v420 = vpack.c.bf16 %v415, %v414
        %v421 = vpack.c.bf16 %v417, %v416
        %s422 = scalar_lea.vmem %s1, 4
        %v423 = vld [vmem:[%s422] sm:$0x3]
        %v425 = vsel %vm303, %v418, 0
        %v428 = vsel %vm303, %v419, 0
        %v431 = vsel %vm303, %v420, 0
        %v434 = vsel %vm303, %v421, 0
        %v437 = vsel %vm316, %v423, 0
        %439 = vmatpush.bf16.msra.mxu0 0
        %440 = vmatpush.bf16.msra.mxu0 0
        %441 = vmatpush.bf16.msra.mxu0 0
        %442 = vmatpush.bf16.msra.mxu0 0
        %443 = vmatpush.bf16.msra.mxu0 0
        %444 = vmatpush.bf16.msra.mxu0 0
        %445 = vmatpush.bf16.msra.mxu0 0
        %446 = vmatpush.bf16.msra.mxu0 %v437
        %447 = vmatmul.bf16.gmra.mxu0 %v425
        %v448 = vpop.f32.mrf.mxu0
        %v449 = vadd.f32 0.0, %v448
        %v450 = vpop.f32.mrf.mxu0
        %v451 = vadd.f32 0.0, %v450
        %452 = vmatmul.bf16.gmra.mxu0 %v428
        %v453 = vpop.f32.mrf.mxu0
        %v454 = vadd.f32 0.0, %v453
        %v455 = vpop.f32.mrf.mxu0
        %v456 = vadd.f32 0.0, %v455
        %457 = vmatmul.bf16.gmra.mxu0 %v431
        %v458 = vpop.f32.mrf.mxu0
        %v459 = vadd.f32 0.0, %v458
        %v460 = vpop.f32.mrf.mxu0
        %v461 = vadd.f32 0.0, %v460
        %462 = vmatmul.bf16.gmra.mxu0 %v434
        %v463 = vpop.f32.mrf.mxu0
        %v464 = vadd.f32 0.0, %v463
        %v465 = vpop.f32.mrf.mxu0
        %v466 = vadd.f32 0.0, %v465
        %467 = vdwg.mxu0
        %v468 = vadd.f32 %v374, %v449
        %v469 = vadd.f32 %v376, %v451
        %v470 = vadd.f32 %v379, %v454
        %v471 = vadd.f32 %v381, %v456
        %v472 = vadd.f32 %v384, %v459
        %v473 = vadd.f32 %v386, %v461
        %v474 = vadd.f32 %v389, %v464
        %v475 = vadd.f32 %v391, %v466
        %v477 = vrot.slane %v258, 7
        %v479 = vsel %vm283, 0.0, %v477
        %v480 = vpack.c.bf16 %v286, %v285
        %v481 = vpack.c.bf16 %v288, %v287
        %v482 = vpack.c.bf16 %v290, %v289
        %v483 = vpack.c.bf16 %v479, %v291
        %s484 = scalar_lea.vmem %s1, 6
        %v485 = vld [vmem:[%s484] sm:$0x3]
        %v487 = vsel %vm303, %v480, 0
        %v490 = vsel %vm303, %v481, 0
        %v493 = vsel %vm303, %v482, 0
        %v496 = vsel %vm303, %v483, 0
        %v499 = vsel %vm316, %v485, 0
        %501 = vmatpush.bf16.msra.mxu0 0
        %502 = vmatpush.bf16.msra.mxu0 0
        %503 = vmatpush.bf16.msra.mxu0 0
        %504 = vmatpush.bf16.msra.mxu0 0
        %505 = vmatpush.bf16.msra.mxu0 0
        %506 = vmatpush.bf16.msra.mxu0 0
        %507 = vmatpush.bf16.msra.mxu0 0
        %508 = vmatpush.bf16.msra.mxu0 %v499
        %509 = vmatmul.bf16.gmra.mxu0 %v487
        %v510 = vpop.f32.mrf.mxu0
        %v511 = vadd.f32 0.0, %v510
        %v512 = vpop.f32.mrf.mxu0
        %v513 = vadd.f32 0.0, %v512
        %514 = vmatmul.bf16.gmra.mxu0 %v490
        %v515 = vpop.f32.mrf.mxu0
        %v516 = vadd.f32 0.0, %v515
        %v517 = vpop.f32.mrf.mxu0
        %v518 = vadd.f32 0.0, %v517
        %519 = vmatmul.bf16.gmra.mxu0 %v493
        %v520 = vpop.f32.mrf.mxu0
        %v521 = vadd.f32 0.0, %v520
        %v522 = vpop.f32.mrf.mxu0
        %v523 = vadd.f32 0.0, %v522
        %524 = vmatmul.bf16.gmra.mxu0 %v496
        %v525 = vpop.f32.mrf.mxu0
        %v526 = vadd.f32 0.0, %v525
        %v527 = vpop.f32.mrf.mxu0
        %v528 = vadd.f32 0.0, %v527
        %529 = vdwg.mxu0
        %v530 = vadd.f32 %v468, %v511
        %v531 = vadd.f32 %v469, %v513
        %v532 = vadd.f32 %v470, %v516
        %v533 = vadd.f32 %v471, %v518
        %v534 = vadd.f32 %v472, %v521
        %v535 = vadd.f32 %v473, %v523
        %v536 = vadd.f32 %v474, %v526
        %v537 = vadd.f32 %v475, %v528
        %v538 = vpack.c.bf16 %v252, %v251
        %v539 = vpack.c.bf16 %v254, %v253
        %v540 = vpack.c.bf16 %v256, %v255
        %v541 = vpack.c.bf16 %v258, %v257
        %s542 = scalar_lea.vmem %s1, 8
        %v543 = vld [vmem:[%s542] sm:$0x3]
        %v545 = vsel %vm303, %v538, 0
        %v548 = vsel %vm303, %v539, 0
        %v551 = vsel %vm303, %v540, 0
        %v554 = vsel %vm303, %v541, 0
        %v557 = vsel %vm316, %v543, 0
        %559 = vmatpush.bf16.msra.mxu0 0
        %560 = vmatpush.bf16.msra.mxu0 0
        %561 = vmatpush.bf16.msra.mxu0 0
        %562 = vmatpush.bf16.msra.mxu0 0
        %563 = vmatpush.bf16.msra.mxu0 0
        %564 = vmatpush.bf16.msra.mxu0 0
        %565 = vmatpush.bf16.msra.mxu0 0
        %566 = vmatpush.bf16.msra.mxu0 %v557
        %567 = vmatmul.bf16.gmra.mxu0 %v545
        %v568 = vpop.f32.mrf.mxu0
        %v569 = vadd.f32 0.0, %v568
        %v570 = vpop.f32.mrf.mxu0
        %v571 = vadd.f32 0.0, %v570
        %572 = vmatmul.bf16.gmra.mxu0 %v548
        %v573 = vpop.f32.mrf.mxu0
        %v574 = vadd.f32 0.0, %v573
        %v575 = vpop.f32.mrf.mxu0
        %v576 = vadd.f32 0.0, %v575
        %577 = vmatmul.bf16.gmra.mxu0 %v551
        %v578 = vpop.f32.mrf.mxu0
        %v579 = vadd.f32 0.0, %v578
        %v580 = vpop.f32.mrf.mxu0
        %v581 = vadd.f32 0.0, %v580
        %582 = vmatmul.bf16.gmra.mxu0 %v554
        %v583 = vpop.f32.mrf.mxu0
        %v584 = vadd.f32 0.0, %v583
        %v585 = vpop.f32.mrf.mxu0
        %v586 = vadd.f32 0.0, %v585
        %587 = vdwg.mxu0
        %v588 = vadd.f32 %v530, %v569
        %v589 = vadd.f32 %v531, %v571
        %v590 = vadd.f32 %v532, %v574
        %v591 = vadd.f32 %v533, %v576
        %v592 = vadd.f32 %v534, %v579
        %v593 = vadd.f32 %v535, %v581
        %v594 = vadd.f32 %v536, %v584
        %v595 = vadd.f32 %v537, %v586
        %v596 = vrot.slane %v258, 1
        %v598 = vsel %vm409, %v596, 0.0
        %v599 = vpack.c.bf16 %v412, %v411
        %v600 = vpack.c.bf16 %v414, %v413
        %v601 = vpack.c.bf16 %v416, %v415
        %v602 = vpack.c.bf16 %v598, %v417
        %s603 = scalar_lea.vmem %s1, 10
        %v604 = vld [vmem:[%s603] sm:$0x3]
        %v606 = vsel %vm303, %v599, 0
        %v609 = vsel %vm303, %v600, 0
        %v612 = vsel %vm303, %v601, 0
        %v615 = vsel %vm303, %v602, 0
        %v618 = vsel %vm316, %v604, 0
        %620 = vmatpush.bf16.msra.mxu0 0
        %621 = vmatpush.bf16.msra.mxu0 0
        %622 = vmatpush.bf16.msra.mxu0 0
        %623 = vmatpush.bf16.msra.mxu0 0
        %624 = vmatpush.bf16.msra.mxu0 0
        %625 = vmatpush.bf16.msra.mxu0 0
        %626 = vmatpush.bf16.msra.mxu0 0
        %627 = vmatpush.bf16.msra.mxu0 %v618
        %628 = vmatmul.bf16.gmra.mxu0 %v606
        %v629 = vpop.f32.mrf.mxu0
        %v630 = vadd.f32 0.0, %v629
        %v631 = vpop.f32.mrf.mxu0
        %v632 = vadd.f32 0.0, %v631
        %633 = vmatmul.bf16.gmra.mxu0 %v609
        %v634 = vpop.f32.mrf.mxu0
        %v635 = vadd.f32 0.0, %v634
        %v636 = vpop.f32.mrf.mxu0
        %v637 = vadd.f32 0.0, %v636
        %638 = vmatmul.bf16.gmra.mxu0 %v612
        %v639 = vpop.f32.mrf.mxu0
        %v640 = vadd.f32 0.0, %v639
        %v641 = vpop.f32.mrf.mxu0
        %v642 = vadd.f32 0.0, %v641
        %643 = vmatmul.bf16.gmra.mxu0 %v615
        %v644 = vpop.f32.mrf.mxu0
        %v645 = vadd.f32 0.0, %v644
        %v646 = vpop.f32.mrf.mxu0
        %v647 = vadd.f32 0.0, %v646
        %648 = vdwg.mxu0
        %v649 = vadd.f32 %v588, %v630
        %v650 = vadd.f32 %v589, %v632
        %v651 = vadd.f32 %v590, %v635
        %v652 = vadd.f32 %v591, %v637
        %v653 = vadd.f32 %v592, %v640
        %v654 = vadd.f32 %v593, %v642
        %v655 = vadd.f32 %v594, %v645
        %v656 = vadd.f32 %v595, %v647
        %v657 = vpack.c.bf16 %v284, %v479
        %s658 = scalar_lea.vmem %s1, 12
        %v659 = vld [vmem:[%s658] sm:$0x3]
        %v661 = vsel %vm303, %v657, 0
        %v664 = vsel %vm316, %v659, 0
        %666 = vmatpush.bf16.msra.mxu0 0
        %667 = vmatpush.bf16.msra.mxu0 0
        %668 = vmatpush.bf16.msra.mxu0 0
        %669 = vmatpush.bf16.msra.mxu0 0
        %670 = vmatpush.bf16.msra.mxu0 0
        %671 = vmatpush.bf16.msra.mxu0 0
        %672 = vmatpush.bf16.msra.mxu0 0
        %673 = vmatpush.bf16.msra.mxu0 %v664
        %674 = vmatmul.bf16.gmra.mxu0 %v353
        %v675 = vpop.f32.mrf.mxu0
        %v676 = vadd.f32 0.0, %v675
        %v677 = vpop.f32.mrf.mxu0
        %v678 = vadd.f32 0.0, %v677
        %679 = vmatmul.bf16.gmra.mxu0 %v356
        %v680 = vpop.f32.mrf.mxu0
        %v681 = vadd.f32 0.0, %v680
        %v682 = vpop.f32.mrf.mxu0
        %v683 = vadd.f32 0.0, %v682
        %684 = vmatmul.bf16.gmra.mxu0 %v359
        %v685 = vpop.f32.mrf.mxu0
        %v686 = vadd.f32 0.0, %v685
        %v687 = vpop.f32.mrf.mxu0
        %v688 = vadd.f32 0.0, %v687
        %689 = vmatmul.bf16.gmra.mxu0 %v661
        %v690 = vpop.f32.mrf.mxu0
        %v691 = vadd.f32 0.0, %v690
        %v692 = vpop.f32.mrf.mxu0
        %v693 = vadd.f32 0.0, %v692
        %694 = vdwg.mxu0
        %v695 = vadd.f32 %v649, %v676
        %v696 = vadd.f32 %v650, %v678
        %v697 = vadd.f32 %v651, %v681
        %v698 = vadd.f32 %v652, %v683
        %v699 = vadd.f32 %v653, %v686
        %v700 = vadd.f32 %v654, %v688
        %v701 = vadd.f32 %v655, %v691
        %v702 = vadd.f32 %v656, %v693
        %v703 = vpack.c.bf16 0.0, %v258
        %s704 = scalar_lea.vmem %s1, 14
        %v705 = vld [vmem:[%s704] sm:$0x3]
        %v707 = vsel %vm303, %v703, 0
        %v710 = vsel %vm316, %v705, 0
        %712 = vmatpush.bf16.msra.mxu0 0
        %713 = vmatpush.bf16.msra.mxu0 0
        %714 = vmatpush.bf16.msra.mxu0 0
        %715 = vmatpush.bf16.msra.mxu0 0
        %716 = vmatpush.bf16.msra.mxu0 0
        %717 = vmatpush.bf16.msra.mxu0 0
        %718 = vmatpush.bf16.msra.mxu0 0
        %719 = vmatpush.bf16.msra.mxu0 %v710
        %720 = vmatmul.bf16.gmra.mxu0 %v308
        %v721 = vpop.f32.mrf.mxu0
        %v722 = vadd.f32 0.0, %v721
        %v723 = vpop.f32.mrf.mxu0
        %v724 = vadd.f32 0.0, %v723
        %725 = vmatmul.bf16.gmra.mxu0 %v311
        %v726 = vpop.f32.mrf.mxu0
        %v727 = vadd.f32 0.0, %v726
        %v728 = vpop.f32.mrf.mxu0
        %v729 = vadd.f32 0.0, %v728
        %730 = vmatmul.bf16.gmra.mxu0 %v314
        %v731 = vpop.f32.mrf.mxu0
        %v732 = vadd.f32 0.0, %v731
        %v733 = vpop.f32.mrf.mxu0
        %v734 = vadd.f32 0.0, %v733
        %735 = vmatmul.bf16.gmra.mxu0 %v707
        %v736 = vpop.f32.mrf.mxu0
        %v737 = vadd.f32 0.0, %v736
        %v738 = vpop.f32.mrf.mxu0
        %v739 = vadd.f32 0.0, %v738
        %740 = vdwg.mxu0
        %v741 = vadd.f32 %v695, %v722
        %v742 = vadd.f32 %v696, %v724
        %v743 = vadd.f32 %v697, %v727
        %v744 = vadd.f32 %v698, %v729
        %v745 = vadd.f32 %v699, %v732
        %v746 = vadd.f32 %v700, %v734
        %v747 = vadd.f32 %v701, %v737
        %v748 = vadd.f32 %v702, %v739
        %v749 = vpack.c.bf16 %v410, %v598
        %s750 = scalar_lea.vmem %s1, 16
        %v751 = vld [vmem:[%s750] sm:$0x3]
        %v753 = vsel %vm303, %v749, 0
        %v756 = vsel %vm316, %v751, 0
        %758 = vmatpush.bf16.msra.mxu0 0
        %759 = vmatpush.bf16.msra.mxu0 0
        %760 = vmatpush.bf16.msra.mxu0 0
        %761 = vmatpush.bf16.msra.mxu0 0
        %762 = vmatpush.bf16.msra.mxu0 0
        %763 = vmatpush.bf16.msra.mxu0 0
        %764 = vmatpush.bf16.msra.mxu0 0
        %765 = vmatpush.bf16.msra.mxu0 %v756
        %766 = vmatmul.bf16.gmra.mxu0 %v428
        %v767 = vpop.f32.mrf.mxu0
        %v768 = vadd.f32 0.0, %v767
        %v769 = vpop.f32.mrf.mxu0
        %v770 = vadd.f32 0.0, %v769
        %771 = vmatmul.bf16.gmra.mxu0 %v431
        %v772 = vpop.f32.mrf.mxu0
        %v773 = vadd.f32 0.0, %v772
        %v774 = vpop.f32.mrf.mxu0
        %v775 = vadd.f32 0.0, %v774
        %776 = vmatmul.bf16.gmra.mxu0 %v434
        %v777 = vpop.f32.mrf.mxu0
        %v778 = vadd.f32 0.0, %v777
        %v779 = vpop.f32.mrf.mxu0
        %v780 = vadd.f32 0.0, %v779
        %781 = vmatmul.bf16.gmra.mxu0 %v753
        %v782 = vpop.f32.mrf.mxu0
        %v783 = vadd.f32 0.0, %v782
        %v784 = vpop.f32.mrf.mxu0
        %v785 = vadd.f32 0.0, %v784
        %786 = vdwg.mxu0
        %v787 = vadd.f32 %v741, %v768
        %v788 = vadd.f32 %v742, %v770
        %v789 = vadd.f32 %v743, %v773
        %v790 = vadd.f32 %v744, %v775
        %v791 = vadd.f32 %v745, %v778
        %v792 = vadd.f32 %v746, %v780
        %v793 = vadd.f32 %v747, %v783
        %v794 = vadd.f32 %v748, %v785
        %vm795 = vcmask 64512
        %v796 = vsel %vm795, %v787, 0.0
        %v797 = vsel %vm795, %v788, 0.0
        %v798 = vadd.f32 %v796, %v797
        %v799 = vsel %vm795, %v789, 0.0
        %v800 = vadd.f32 %v798, %v799
        %v801 = vsel %vm795, %v790, 0.0
        %v802 = vadd.f32 %v800, %v801
        %v803 = vsel %vm795, %v791, 0.0
        %v804 = vadd.f32 %v802, %v803
        %v805 = vsel %vm795, %v792, 0.0
        %v806 = vadd.f32 %v804, %v805
        %v807 = vsel %vm795, %v793, 0.0
        %v808 = vadd.f32 %v806, %v807
        %v809 = vsel %vm795, %v794, 0.0
        %v810 = vadd.f32 %v808, %v809
        %v811 = vrot.slane %v810, 4
        %v812 = vadd.f32 %v810, %v811
        %v813 = vrot.slane %v812, 2
        %v814 = vadd.f32 %v812, %v813
        %v815 = vrot.slane %v814, 1
        %v816 = vadd.f32 %v814, %v815
        %v817 = vmul.f32 %v787, %v787
        %v818 = vmul.f32 %v788, %v788
        %v819 = vmul.f32 %v789, %v789
        %v820 = vmul.f32 %v790, %v790
        %v821 = vmul.f32 %v791, %v791
        %v822 = vmul.f32 %v792, %v792
        %v823 = vmul.f32 %v793, %v793
        %v824 = vmul.f32 %v794, %v794
        %v825 = vsel %vm795, %v817, 0.0
        %v826 = vsel %vm795, %v818, 0.0
        %v827 = vadd.f32 %v825, %v826
        %v828 = vsel %vm795, %v819, 0.0
        %v829 = vadd.f32 %v827, %v828
        %v830 = vsel %vm795, %v820, 0.0
        %v831 = vadd.f32 %v829, %v830
        %v832 = vsel %vm795, %v821, 0.0
        %v833 = vadd.f32 %v831, %v832
        %v834 = vsel %vm795, %v822, 0.0
        %v835 = vadd.f32 %v833, %v834
        %v836 = vsel %vm795, %v823, 0.0
        %v837 = vadd.f32 %v835, %v836
        %v838 = vsel %vm795, %v824, 0.0
        %v839 = vadd.f32 %v837, %v838
        %v840 = vrot.slane %v839, 4
        %v841 = vadd.f32 %v839, %v840
        %v842 = vrot.slane %v841, 2
        %v843 = vadd.f32 %v841, %v842
        %v844 = vrot.slane %v843, 1
        %v845 = vadd.f32 %v843, %v844
        %v846 = vmul.f32 %v816, 0.015625
        %v847 = vmul.f32 %v845, 0.015625
        %v848 = vmul.f32 %v846, %v846
        %v849 = vsub.f32 %v847, %v848
        %v850 = vmax.f32 %v849, 0.0
        %v851 = vsub.f32 %v787, %v846
        %v852 = vsub.f32 %v788, %v846
        %v853 = vsub.f32 %v789, %v846
        %v854 = vsub.f32 %v790, %v846
        %v855 = vsub.f32 %v791, %v846
        %v856 = vsub.f32 %v792, %v846
        %v857 = vsub.f32 %v793, %v846
        %v858 = vsub.f32 %v794, %v846
        %v859 = vadd.f32 %v850, 1e-05
        %v860 = vrsqrt.pop %v859
        %v861 = vmul.f32 %v860, %v859
        %v862 = vmul.f32 %v861, %v860
        %v863 = vmul.f32 0.5, %v862
        %v864 = vsub.f32 1.5, %v863
        %v865 = vmul.f32 %v860, %v864
        %vm866 = vweird.f32 %v859
        %vm867 = vweird.f32 %v860
        %vm868 = vmor %vm866, %vm867
        %v869 = vsel %vm868, %v860, %v865
        %v870 = vmul.f32 %v851, %v869
        %v871 = vmul.f32 %v852, %v869
        %v872 = vmul.f32 %v853, %v869
        %v873 = vmul.f32 %v854, %v869
        %v874 = vmul.f32 %v855, %v869
        %v875 = vmul.f32 %v856, %v869
        %v876 = vmul.f32 %v857, %v869
        %v877 = vmul.f32 %v858, %v869
        %v878 = vmax.f32 %v870, 0.0
        %v879 = vmax.f32 %v871, 0.0
        %v880 = vmax.f32 %v872, 0.0
        %v881 = vmax.f32 %v873, 0.0
        %v882 = vmax.f32 %v874, 0.0
        %v883 = vmax.f32 %v875, 0.0
        %v884 = vmax.f32 %v876, 0.0
        %v885 = vmax.f32 %v877, 0.0
        %v893 = vrot.slane %v878, 7
        %v894 = vrot.slane %v879, 7
        %v895 = vrot.slane %v880, 7
        %v896 = vrot.slane %v881, 7
        %v897 = vrot.slane %v882, 7
        %v898 = vrot.slane %v883, 7
        %v899 = vrot.slane %v884, 7
        %v907 = vsel %vm283, 0.0, %v893
        %v908 = vsel %vm283, 0.0, %v894
        %v909 = vsel %vm283, 0.0, %v895
        %v910 = vsel %vm283, 0.0, %v896
        %v911 = vsel %vm283, 0.0, %v897
        %v912 = vsel %vm283, 0.0, %v898
        %v913 = vsel %vm283, 0.0, %v899
        %v914 = vpack.c.bf16 %v907, %v284
        %v915 = vpack.c.bf16 %v909, %v908
        %v916 = vpack.c.bf16 %v911, %v910
        %v917 = vpack.c.bf16 %v913, %v912
        %v918 = vld [vmem:[%s2] sm:$0xf]
        %v919 = vpack.c.bf16 %v878, 0.0
        %v920 = vpack.c.bf16 %v880, %v879
        %v921 = vpack.c.bf16 %v882, %v881
        %v922 = vpack.c.bf16 %v884, %v883
        %s923 = scalar_lea.vmem %s2, 4
        %v924 = vld [vmem:[%s923] sm:$0xf]
        %v926 = vsel %vm795, %v919, 0
        %v929 = vsel %vm795, %v920, 0
        %v932 = vsel %vm795, %v921, 0
        %v935 = vsel %vm795, %v922, 0
        %vm937 = vcmask 1043456
        %v939 = vsel %vm937, %v924, 0
        %941 = vmatpush.bf16.msra.mxu0 0
        %942 = vmatpush.bf16.msra.mxu0 0
        %943 = vmatpush.bf16.msra.mxu0 0
        %944 = vmatpush.bf16.msra.mxu0 0
        %945 = vmatpush.bf16.msra.mxu0 0
        %946 = vmatpush.bf16.msra.mxu0 0
        %947 = vmatpush.bf16.msra.mxu0 0
        %948 = vmatpush.bf16.msra.mxu0 %v939
        %949 = vmatmul.bf16.gmra.mxu0 %v926
        %v950 = vpop.f32.mrf.mxu0
        %v951 = vadd.f32 0.0, %v950
        %v952 = vpop.f32.mrf.mxu0
        %v953 = vadd.f32 0.0, %v952
        %954 = vmatmul.bf16.gmra.mxu0 %v929
        %v955 = vpop.f32.mrf.mxu0
        %v956 = vadd.f32 0.0, %v955
        %v957 = vpop.f32.mrf.mxu0
        %v958 = vadd.f32 0.0, %v957
        %959 = vmatmul.bf16.gmra.mxu0 %v932
        %v960 = vpop.f32.mrf.mxu0
        %v961 = vadd.f32 0.0, %v960
        %v962 = vpop.f32.mrf.mxu0
        %v963 = vadd.f32 0.0, %v962
        %964 = vmatmul.bf16.gmra.mxu0 %v935
        %v965 = vpop.f32.mrf.mxu0
        %v966 = vadd.f32 0.0, %v965
        %v967 = vpop.f32.mrf.mxu0
        %v968 = vadd.f32 0.0, %v967
        %969 = vdwg.mxu0
        %v971 = vsel %vm795, %v914, 0
        %v974 = vsel %vm795, %v915, 0
        %v977 = vsel %vm795, %v916, 0
        %v980 = vsel %vm795, %v917, 0
        %v983 = vsel %vm937, %v918, 0
        %985 = vmatpush.bf16.msra.mxu0 0
        %986 = vmatpush.bf16.msra.mxu0 0
        %987 = vmatpush.bf16.msra.mxu0 0
        %988 = vmatpush.bf16.msra.mxu0 0
        %989 = vmatpush.bf16.msra.mxu0 0
        %990 = vmatpush.bf16.msra.mxu0 0
        %991 = vmatpush.bf16.msra.mxu0 0
        %992 = vmatpush.bf16.msra.mxu0 %v983
        %993 = vmatmul.bf16.gmra.mxu0 %v971
        %v994 = vpop.f32.mrf.mxu0
        %v995 = vadd.f32 %v951, %v994
        %v996 = vpop.f32.mrf.mxu0
        %v997 = vadd.f32 %v953, %v996
        %998 = vmatmul.bf16.gmra.mxu0 %v974
        %v999 = vpop.f32.mrf.mxu0
        %v1000 = vadd.f32 %v956, %v999
        %v1001 = vpop.f32.mrf.mxu0
        %v1002 = vadd.f32 %v958, %v1001
        %1003 = vmatmul.bf16.gmra.mxu0 %v977
        %v1004 = vpop.f32.mrf.mxu0
        %v1005 = vadd.f32 %v961, %v1004
        %v1006 = vpop.f32.mrf.mxu0
        %v1007 = vadd.f32 %v963, %v1006
        %1008 = vmatmul.bf16.gmra.mxu0 %v980
        %v1009 = vpop.f32.mrf.mxu0
        %v1010 = vadd.f32 %v966, %v1009
        %v1011 = vpop.f32.mrf.mxu0
        %v1012 = vadd.f32 %v968, %v1011
        %1013 = vdwg.mxu0
        %v1014 = vrot.slane %v878, 1
        %v1015 = vrot.slane %v879, 1
        %v1016 = vrot.slane %v880, 1
        %v1017 = vrot.slane %v881, 1
        %v1018 = vrot.slane %v882, 1
        %v1019 = vrot.slane %v883, 1
        %v1020 = vrot.slane %v884, 1
        %v1028 = vsel %vm409, %v1014, 0.0
        %v1029 = vsel %vm409, %v1015, 0.0
        %v1030 = vsel %vm409, %v1016, 0.0
        %v1031 = vsel %vm409, %v1017, 0.0
        %v1032 = vsel %vm409, %v1018, 0.0
        %v1033 = vsel %vm409, %v1019, 0.0
        %v1034 = vsel %vm409, %v1020, 0.0
        %v1035 = vpack.c.bf16 %v1028, %v410
        %v1036 = vpack.c.bf16 %v1030, %v1029
        %v1037 = vpack.c.bf16 %v1032, %v1031
        %v1038 = vpack.c.bf16 %v1034, %v1033
        %s1039 = scalar_lea.vmem %s2, 8
        %v1040 = vld [vmem:[%s1039] sm:$0xf]
        %v1042 = vsel %vm795, %v1035, 0
        %v1045 = vsel %vm795, %v1036, 0
        %v1048 = vsel %vm795, %v1037, 0
        %v1051 = vsel %vm795, %v1038, 0
        %v1054 = vsel %vm937, %v1040, 0
        %1056 = vmatpush.bf16.msra.mxu0 0
        %1057 = vmatpush.bf16.msra.mxu0 0
        %1058 = vmatpush.bf16.msra.mxu0 0
        %1059 = vmatpush.bf16.msra.mxu0 0
        %1060 = vmatpush.bf16.msra.mxu0 0
        %1061 = vmatpush.bf16.msra.mxu0 0
        %1062 = vmatpush.bf16.msra.mxu0 0
        %1063 = vmatpush.bf16.msra.mxu0 %v1054
        %1064 = vmatmul.bf16.gmra.mxu0 %v1042
        %v1065 = vpop.f32.mrf.mxu0
        %v1066 = vadd.f32 0.0, %v1065
        %v1067 = vpop.f32.mrf.mxu0
        %v1068 = vadd.f32 0.0, %v1067
        %1069 = vmatmul.bf16.gmra.mxu0 %v1045
        %v1070 = vpop.f32.mrf.mxu0
        %v1071 = vadd.f32 0.0, %v1070
        %v1072 = vpop.f32.mrf.mxu0
        %v1073 = vadd.f32 0.0, %v1072
        %1074 = vmatmul.bf16.gmra.mxu0 %v1048
        %v1075 = vpop.f32.mrf.mxu0
        %v1076 = vadd.f32 0.0, %v1075
        %v1077 = vpop.f32.mrf.mxu0
        %v1078 = vadd.f32 0.0, %v1077
        %1079 = vmatmul.bf16.gmra.mxu0 %v1051
        %v1080 = vpop.f32.mrf.mxu0
        %v1081 = vadd.f32 0.0, %v1080
        %v1082 = vpop.f32.mrf.mxu0
        %v1083 = vadd.f32 0.0, %v1082
        %1084 = vdwg.mxu0
        %v1085 = vadd.f32 %v995, %v1066
        %v1086 = vadd.f32 %v997, %v1068
        %v1087 = vadd.f32 %v1000, %v1071
        %v1088 = vadd.f32 %v1002, %v1073
        %v1089 = vadd.f32 %v1005, %v1076
        %v1090 = vadd.f32 %v1007, %v1078
        %v1091 = vadd.f32 %v1010, %v1081
        %v1092 = vadd.f32 %v1012, %v1083
        %v1094 = vrot.slane %v885, 7
        %v1096 = vsel %vm283, 0.0, %v1094
        %v1097 = vpack.c.bf16 %v908, %v907
        %v1098 = vpack.c.bf16 %v910, %v909
        %v1099 = vpack.c.bf16 %v912, %v911
        %v1100 = vpack.c.bf16 %v1096, %v913
        %s1101 = scalar_lea.vmem %s2, 12
        %v1102 = vld [vmem:[%s1101] sm:$0xf]
        %v1104 = vsel %vm795, %v1097, 0
        %v1107 = vsel %vm795, %v1098, 0
        %v1110 = vsel %vm795, %v1099, 0
        %v1113 = vsel %vm795, %v1100, 0
        %v1116 = vsel %vm937, %v1102, 0
        %1118 = vmatpush.bf16.msra.mxu0 0
        %1119 = vmatpush.bf16.msra.mxu0 0
        %1120 = vmatpush.bf16.msra.mxu0 0
        %1121 = vmatpush.bf16.msra.mxu0 0
        %1122 = vmatpush.bf16.msra.mxu0 0
        %1123 = vmatpush.bf16.msra.mxu0 0
        %1124 = vmatpush.bf16.msra.mxu0 0
        %1125 = vmatpush.bf16.msra.mxu0 %v1116
        %1126 = vmatmul.bf16.gmra.mxu0 %v1104
        %v1127 = vpop.f32.mrf.mxu0
        %v1128 = vadd.f32 0.0, %v1127
        %v1129 = vpop.f32.mrf.mxu0
        %v1130 = vadd.f32 0.0, %v1129
        %1131 = vmatmul.bf16.gmra.mxu0 %v1107
        %v1132 = vpop.f32.mrf.mxu0
        %v1133 = vadd.f32 0.0, %v1132
        %v1134 = vpop.f32.mrf.mxu0
        %v1135 = vadd.f32 0.0, %v1134
        %1136 = vmatmul.bf16.gmra.mxu0 %v1110
        %v1137 = vpop.f32.mrf.mxu0
        %v1138 = vadd.f32 0.0, %v1137
        %v1139 = vpop.f32.mrf.mxu0
        %v1140 = vadd.f32 0.0, %v1139
        %1141 = vmatmul.bf16.gmra.mxu0 %v1113
        %v1142 = vpop.f32.mrf.mxu0
        %v1143 = vadd.f32 0.0, %v1142
        %v1144 = vpop.f32.mrf.mxu0
        %v1145 = vadd.f32 0.0, %v1144
        %1146 = vdwg.mxu0
        %v1147 = vadd.f32 %v1085, %v1128
        %v1148 = vadd.f32 %v1086, %v1130
        %v1149 = vadd.f32 %v1087, %v1133
        %v1150 = vadd.f32 %v1088, %v1135
        %v1151 = vadd.f32 %v1089, %v1138
        %v1152 = vadd.f32 %v1090, %v1140
        %v1153 = vadd.f32 %v1091, %v1143
        %v1154 = vadd.f32 %v1092, %v1145
        %v1155 = vpack.c.bf16 %v879, %v878
        %v1156 = vpack.c.bf16 %v881, %v880
        %v1157 = vpack.c.bf16 %v883, %v882
        %v1158 = vpack.c.bf16 %v885, %v884
        %s1159 = scalar_lea.vmem %s2, 16
        %v1160 = vld [vmem:[%s1159] sm:$0xf]
        %v1162 = vsel %vm795, %v1155, 0
        %v1165 = vsel %vm795, %v1156, 0
        %v1168 = vsel %vm795, %v1157, 0
        %v1171 = vsel %vm795, %v1158, 0
        %v1174 = vsel %vm937, %v1160, 0
        %1176 = vmatpush.bf16.msra.mxu0 0
        %1177 = vmatpush.bf16.msra.mxu0 0
        %1178 = vmatpush.bf16.msra.mxu0 0
        %1179 = vmatpush.bf16.msra.mxu0 0
        %1180 = vmatpush.bf16.msra.mxu0 0
        %1181 = vmatpush.bf16.msra.mxu0 0
        %1182 = vmatpush.bf16.msra.mxu0 0
        %1183 = vmatpush.bf16.msra.mxu0 %v1174
        %1184 = vmatmul.bf16.gmra.mxu0 %v1162
        %v1185 = vpop.f32.mrf.mxu0
        %v1186 = vadd.f32 0.0, %v1185
        %v1187 = vpop.f32.mrf.mxu0
        %v1188 = vadd.f32 0.0, %v1187
        %1189 = vmatmul.bf16.gmra.mxu0 %v1165
        %v1190 = vpop.f32.mrf.mxu0
        %v1191 = vadd.f32 0.0, %v1190
        %v1192 = vpop.f32.mrf.mxu0
        %v1193 = vadd.f32 0.0, %v1192
        %1194 = vmatmul.bf16.gmra.mxu0 %v1168
        %v1195 = vpop.f32.mrf.mxu0
        %v1196 = vadd.f32 0.0, %v1195
        %v1197 = vpop.f32.mrf.mxu0
        %v1198 = vadd.f32 0.0, %v1197
        %1199 = vmatmul.bf16.gmra.mxu0 %v1171
        %v1200 = vpop.f32.mrf.mxu0
        %v1201 = vadd.f32 0.0, %v1200
        %v1202 = vpop.f32.mrf.mxu0
        %v1203 = vadd.f32 0.0, %v1202
        %1204 = vdwg.mxu0
        %v1205 = vadd.f32 %v1147, %v1186
        %v1206 = vadd.f32 %v1148, %v1188
        %v1207 = vadd.f32 %v1149, %v1191
        %v1208 = vadd.f32 %v1150, %v1193
        %v1209 = vadd.f32 %v1151, %v1196
        %v1210 = vadd.f32 %v1152, %v1198
        %v1211 = vadd.f32 %v1153, %v1201
        %v1212 = vadd.f32 %v1154, %v1203
        %v1213 = vrot.slane %v885, 1
        %v1215 = vsel %vm409, %v1213, 0.0
        %v1216 = vpack.c.bf16 %v1029, %v1028
        %v1217 = vpack.c.bf16 %v1031, %v1030
        %v1218 = vpack.c.bf16 %v1033, %v1032
        %v1219 = vpack.c.bf16 %v1215, %v1034
        %s1220 = scalar_lea.vmem %s2, 20
        %v1221 = vld [vmem:[%s1220] sm:$0xf]
        %v1223 = vsel %vm795, %v1216, 0
        %v1226 = vsel %vm795, %v1217, 0
        %v1229 = vsel %vm795, %v1218, 0
        %v1232 = vsel %vm795, %v1219, 0
        %v1235 = vsel %vm937, %v1221, 0
        %1237 = vmatpush.bf16.msra.mxu0 0
        %1238 = vmatpush.bf16.msra.mxu0 0
        %1239 = vmatpush.bf16.msra.mxu0 0
        %1240 = vmatpush.bf16.msra.mxu0 0
        %1241 = vmatpush.bf16.msra.mxu0 0
        %1242 = vmatpush.bf16.msra.mxu0 0
        %1243 = vmatpush.bf16.msra.mxu0 0
        %1244 = vmatpush.bf16.msra.mxu0 %v1235
        %1245 = vmatmul.bf16.gmra.mxu0 %v1223
        %v1246 = vpop.f32.mrf.mxu0
        %v1247 = vadd.f32 0.0, %v1246
        %v1248 = vpop.f32.mrf.mxu0
        %v1249 = vadd.f32 0.0, %v1248
        %1250 = vmatmul.bf16.gmra.mxu0 %v1226
        %v1251 = vpop.f32.mrf.mxu0
        %v1252 = vadd.f32 0.0, %v1251
        %v1253 = vpop.f32.mrf.mxu0
        %v1254 = vadd.f32 0.0, %v1253
        %1255 = vmatmul.bf16.gmra.mxu0 %v1229
        %v1256 = vpop.f32.mrf.mxu0
        %v1257 = vadd.f32 0.0, %v1256
        %v1258 = vpop.f32.mrf.mxu0
        %v1259 = vadd.f32 0.0, %v1258
        %1260 = vmatmul.bf16.gmra.mxu0 %v1232
        %v1261 = vpop.f32.mrf.mxu0
        %v1262 = vadd.f32 0.0, %v1261
        %v1263 = vpop.f32.mrf.mxu0
        %v1264 = vadd.f32 0.0, %v1263
        %1265 = vdwg.mxu0
        %v1266 = vadd.f32 %v1205, %v1247
        %v1267 = vadd.f32 %v1206, %v1249
        %v1268 = vadd.f32 %v1207, %v1252
        %v1269 = vadd.f32 %v1208, %v1254
        %v1270 = vadd.f32 %v1209, %v1257
        %v1271 = vadd.f32 %v1210, %v1259
        %v1272 = vadd.f32 %v1211, %v1262
        %v1273 = vadd.f32 %v1212, %v1264
        %v1274 = vpack.c.bf16 %v284, %v1096
        %s1275 = scalar_lea.vmem %s2, 24
        %v1276 = vld [vmem:[%s1275] sm:$0xf]
        %v1278 = vsel %vm795, %v1274, 0
        %v1281 = vsel %vm937, %v1276, 0
        %1283 = vmatpush.bf16.msra.mxu0 0
        %1284 = vmatpush.bf16.msra.mxu0 0
        %1285 = vmatpush.bf16.msra.mxu0 0
        %1286 = vmatpush.bf16.msra.mxu0 0
        %1287 = vmatpush.bf16.msra.mxu0 0
        %1288 = vmatpush.bf16.msra.mxu0 0
        %1289 = vmatpush.bf16.msra.mxu0 0
        %1290 = vmatpush.bf16.msra.mxu0 %v1281
        %1291 = vmatmul.bf16.gmra.mxu0 %v974
        %v1292 = vpop.f32.mrf.mxu0
        %v1293 = vadd.f32 0.0, %v1292
        %v1294 = vpop.f32.mrf.mxu0
        %v1295 = vadd.f32 0.0, %v1294
        %1296 = vmatmul.bf16.gmra.mxu0 %v977
        %v1297 = vpop.f32.mrf.mxu0
        %v1298 = vadd.f32 0.0, %v1297
        %v1299 = vpop.f32.mrf.mxu0
        %v1300 = vadd.f32 0.0, %v1299
        %1301 = vmatmul.bf16.gmra.mxu0 %v980
        %v1302 = vpop.f32.mrf.mxu0
        %v1303 = vadd.f32 0.0, %v1302
        %v1304 = vpop.f32.mrf.mxu0
        %v1305 = vadd.f32 0.0, %v1304
        %1306 = vmatmul.bf16.gmra.mxu0 %v1278
        %v1307 = vpop.f32.mrf.mxu0
        %v1308 = vadd.f32 0.0, %v1307
        %v1309 = vpop.f32.mrf.mxu0
        %v1310 = vadd.f32 0.0, %v1309
        %1311 = vdwg.mxu0
        %v1312 = vadd.f32 %v1266, %v1293
        %v1313 = vadd.f32 %v1267, %v1295
        %v1314 = vadd.f32 %v1268, %v1298
        %v1315 = vadd.f32 %v1269, %v1300
        %v1316 = vadd.f32 %v1270, %v1303
        %v1317 = vadd.f32 %v1271, %v1305
        %v1318 = vadd.f32 %v1272, %v1308
        %v1319 = vadd.f32 %v1273, %v1310
        %v1320 = vpack.c.bf16 0.0, %v885
        %s1321 = scalar_lea.vmem %s2, 28
        %v1322 = vld [vmem:[%s1321] sm:$0xf]
        %v1324 = vsel %vm795, %v1320, 0
        %v1327 = vsel %vm937, %v1322, 0
        %1329 = vmatpush.bf16.msra.mxu0 0
        %1330 = vmatpush.bf16.msra.mxu0 0
        %1331 = vmatpush.bf16.msra.mxu0 0
        %1332 = vmatpush.bf16.msra.mxu0 0
        %1333 = vmatpush.bf16.msra.mxu0 0
        %1334 = vmatpush.bf16.msra.mxu0 0
        %1335 = vmatpush.bf16.msra.mxu0 0
        %1336 = vmatpush.bf16.msra.mxu0 %v1327
        %1337 = vmatmul.bf16.gmra.mxu0 %v929
        %v1338 = vpop.f32.mrf.mxu0
        %v1339 = vadd.f32 0.0, %v1338
        %v1340 = vpop.f32.mrf.mxu0
        %v1341 = vadd.f32 0.0, %v1340
        %1342 = vmatmul.bf16.gmra.mxu0 %v932
        %v1343 = vpop.f32.mrf.mxu0
        %v1344 = vadd.f32 0.0, %v1343
        %v1345 = vpop.f32.mrf.mxu0
        %v1346 = vadd.f32 0.0, %v1345
        %1347 = vmatmul.bf16.gmra.mxu0 %v935
        %v1348 = vpop.f32.mrf.mxu0
        %v1349 = vadd.f32 0.0, %v1348
        %v1350 = vpop.f32.mrf.mxu0
        %v1351 = vadd.f32 0.0, %v1350
        %1352 = vmatmul.bf16.gmra.mxu0 %v1324
        %v1353 = vpop.f32.mrf.mxu0
        %v1354 = vadd.f32 0.0, %v1353
        %v1355 = vpop.f32.mrf.mxu0
        %v1356 = vadd.f32 0.0, %v1355
        %1357 = vdwg.mxu0
        %v1358 = vadd.f32 %v1312, %v1339
        %v1359 = vadd.f32 %v1313, %v1341
        %v1360 = vadd.f32 %v1314, %v1344
        %v1361 = vadd.f32 %v1315, %v1346
        %v1362 = vadd.f32 %v1316, %v1349
        %v1363 = vadd.f32 %v1317, %v1351
        %v1364 = vadd.f32 %v1318, %v1354
        %v1365 = vadd.f32 %v1319, %v1356
        %v1366 = vpack.c.bf16 %v410, %v1215
        %s1367 = scalar_lea.vmem %s2, 32
        %v1368 = vld [vmem:[%s1367] sm:$0xf]
        %v1370 = vsel %vm795, %v1366, 0
        %v1373 = vsel %vm937, %v1368, 0
        %1375 = vmatpush.bf16.msra.mxu0 0
        %1376 = vmatpush.bf16.msra.mxu0 0
        %1377 = vmatpush.bf16.msra.mxu0 0
        %1378 = vmatpush.bf16.msra.mxu0 0
        %1379 = vmatpush.bf16.msra.mxu0 0
        %1380 = vmatpush.bf16.msra.mxu0 0
        %1381 = vmatpush.bf16.msra.mxu0 0
        %1382 = vmatpush.bf16.msra.mxu0 %v1373
        %1383 = vmatmul.bf16.gmra.mxu0 %v1045
        %v1384 = vpop.f32.mrf.mxu0
        %v1385 = vadd.f32 0.0, %v1384
        %v1386 = vpop.f32.mrf.mxu0
        %v1387 = vadd.f32 0.0, %v1386
        %1388 = vmatmul.bf16.gmra.mxu0 %v1048
        %v1389 = vpop.f32.mrf.mxu0
        %v1390 = vadd.f32 0.0, %v1389
        %v1391 = vpop.f32.mrf.mxu0
        %v1392 = vadd.f32 0.0, %v1391
        %1393 = vmatmul.bf16.gmra.mxu0 %v1051
        %v1394 = vpop.f32.mrf.mxu0
        %v1395 = vadd.f32 0.0, %v1394
        %v1396 = vpop.f32.mrf.mxu0
        %v1397 = vadd.f32 0.0, %v1396
        %1398 = vmatmul.bf16.gmra.mxu0 %v1370
        %v1399 = vpop.f32.mrf.mxu0
        %v1400 = vadd.f32 0.0, %v1399
        %v1401 = vpop.f32.mrf.mxu0
        %v1402 = vadd.f32 0.0, %v1401
        %1403 = vdwg.mxu0
        %v1404 = vadd.f32 %v1358, %v1385
        %v1405 = vadd.f32 %v1359, %v1387
        %v1406 = vadd.f32 %v1360, %v1390
        %v1407 = vadd.f32 %v1361, %v1392
        %v1408 = vadd.f32 %v1362, %v1395
        %v1409 = vadd.f32 %v1363, %v1397
        %v1410 = vadd.f32 %v1364, %v1400
        %v1411 = vadd.f32 %v1365, %v1402
        %v1412 = vsel %vm795, %v1404, 0.0
        %v1413 = vsel %vm795, %v1405, 0.0
        %v1414 = vadd.f32 %v1412, %v1413
        %v1415 = vsel %vm795, %v1406, 0.0
        %v1416 = vadd.f32 %v1414, %v1415
        %v1417 = vsel %vm795, %v1407, 0.0
        %v1418 = vadd.f32 %v1416, %v1417
        %v1419 = vsel %vm795, %v1408, 0.0
        %v1420 = vadd.f32 %v1418, %v1419
        %v1421 = vsel %vm795, %v1409, 0.0
        %v1422 = vadd.f32 %v1420, %v1421
        %v1423 = vsel %vm795, %v1410, 0.0
        %v1424 = vadd.f32 %v1422, %v1423
        %v1425 = vsel %vm795, %v1411, 0.0
        %v1426 = vadd.f32 %v1424, %v1425
        %v1427 = vrot.slane %v1426, 4
        %v1428 = vadd.f32 %v1426, %v1427
        %v1429 = vrot.slane %v1428, 2
        %v1430 = vadd.f32 %v1428, %v1429
        %v1431 = vrot.slane %v1430, 1
        %v1432 = vadd.f32 %v1430, %v1431
        %v1433 = vmul.f32 %v1404, %v1404
        %v1434 = vmul.f32 %v1405, %v1405
        %v1435 = vmul.f32 %v1406, %v1406
        %v1436 = vmul.f32 %v1407, %v1407
        %v1437 = vmul.f32 %v1408, %v1408
        %v1438 = vmul.f32 %v1409, %v1409
        %v1439 = vmul.f32 %v1410, %v1410
        %v1440 = vmul.f32 %v1411, %v1411
        %v1441 = vsel %vm795, %v1433, 0.0
        %v1442 = vsel %vm795, %v1434, 0.0
        %v1443 = vadd.f32 %v1441, %v1442
        %v1444 = vsel %vm795, %v1435, 0.0
        %v1445 = vadd.f32 %v1443, %v1444
        %v1446 = vsel %vm795, %v1436, 0.0
        %v1447 = vadd.f32 %v1445, %v1446
        %v1448 = vsel %vm795, %v1437, 0.0
        %v1449 = vadd.f32 %v1447, %v1448
        %v1450 = vsel %vm795, %v1438, 0.0
        %v1451 = vadd.f32 %v1449, %v1450
        %v1452 = vsel %vm795, %v1439, 0.0
        %v1453 = vadd.f32 %v1451, %v1452
        %v1454 = vsel %vm795, %v1440, 0.0
        %v1455 = vadd.f32 %v1453, %v1454
        %v1456 = vrot.slane %v1455, 4
        %v1457 = vadd.f32 %v1455, %v1456
        %v1458 = vrot.slane %v1457, 2
        %v1459 = vadd.f32 %v1457, %v1458
        %v1460 = vrot.slane %v1459, 1
        %v1461 = vadd.f32 %v1459, %v1460
        %v1462 = vmul.f32 %v1432, 0.015625
        %v1463 = vmul.f32 %v1461, 0.015625
        %v1464 = vmul.f32 %v1462, %v1462
        %v1465 = vsub.f32 %v1463, %v1464
        %v1466 = vmax.f32 %v1465, 0.0
        %v1467 = vsub.f32 %v1404, %v1462
        %v1468 = vsub.f32 %v1405, %v1462
        %v1469 = vsub.f32 %v1406, %v1462
        %v1470 = vsub.f32 %v1407, %v1462
        %v1471 = vsub.f32 %v1408, %v1462
        %v1472 = vsub.f32 %v1409, %v1462
        %v1473 = vsub.f32 %v1410, %v1462
        %v1474 = vsub.f32 %v1411, %v1462
        %v1475 = vadd.f32 %v1466, 1e-05
        %v1476 = vrsqrt.pop %v1475
        %v1477 = vmul.f32 %v1476, %v1475
        %v1478 = vmul.f32 %v1477, %v1476
        %v1479 = vmul.f32 0.5, %v1478
        %v1480 = vsub.f32 1.5, %v1479
        %v1481 = vmul.f32 %v1476, %v1480
        %vm1482 = vweird.f32 %v1475
        %vm1483 = vweird.f32 %v1476
        %vm1484 = vmor %vm1482, %vm1483
        %v1485 = vsel %vm1484, %v1476, %v1481
        %v1486 = vmul.f32 %v1467, %v1485
        %v1487 = vmul.f32 %v1468, %v1485
        %v1488 = vmul.f32 %v1469, %v1485
        %v1489 = vmul.f32 %v1470, %v1485
        %v1490 = vmul.f32 %v1471, %v1485
        %v1491 = vmul.f32 %v1472, %v1485
        %v1492 = vmul.f32 %v1473, %v1485
        %v1493 = vmul.f32 %v1474, %v1485
        %v1494 = vmax.f32 %v1486, 0.0
        %v1495 = vmax.f32 %v1487, 0.0
        %v1496 = vmax.f32 %v1488, 0.0
        %v1497 = vmax.f32 %v1489, 0.0
        %v1498 = vmax.f32 %v1490, 0.0
        %v1499 = vmax.f32 %v1491, 0.0
        %v1500 = vmax.f32 %v1492, 0.0
        %v1501 = vmax.f32 %v1493, 0.0
        %1502 = vst.msk [vmem:[%s192] sm:$0xff] %vm795, %v1494
        %1503 = vst.msk [vmem:[%s192 + $0x8] sm:$0xff] %vm795, %v1495
        %1504 = vst.msk [vmem:[%s192 + $0x10] sm:$0xff] %vm795, %v1496
        %1505 = vst.msk [vmem:[%s192 + $0x18] sm:$0xff] %vm795, %v1497
        %1506 = vst.msk [vmem:[%s192 + $0x20] sm:$0xff] %vm795, %v1498
        %1507 = vst.msk [vmem:[%s192 + $0x28] sm:$0xff] %vm795, %v1499
        %1508 = vst.msk [vmem:[%s192 + $0x30] sm:$0xff] %vm795, %v1500
        %1509 = vst.msk [vmem:[%s192 + $0x38] sm:$0xff] %vm795, %v1501
        %p1510 = scmp.lt.s32.totalorder %s17, 1
        %s1511 = scalar_select %p1510, %s17, 1
        %s1512 = smul.addr %s1511, 8
        %s1513 = smul.addr %s1512, 8
        %s1514 = scalar_lea.vmem %s3, %s1513
        // Predicated region
        $region37: #{tpu_custom_call.1} parent=31 // pred_check
          %p1515 = pneg %p103
        $region38: #{tpu_custom_call.1} parent=31 // pred_check_branch
          %1517 = sbr.rel (%p1515) target = $region40
        $region39: #{tpu_custom_call.1} parent=31 // pred_region
          _
        $region40: #{tpu_custom_call.1} parent=31 // pred_fallthru
          _
      $region32: #{tpu_custom_call.1} parent=5 // pred_fallthru
        _
      %p1518 = scmp.le.s32.totalorder 2, %s12
      // Predicated region
      $region41: #{tpu_custom_call.1} parent=5 // pred_check
        %p1519 = pneg %p1518
      $region42: #{tpu_custom_call.1} parent=5 // pred_check_branch
        %1521 = sbr.rel (%p1519) target = $region44
      $region43: #{tpu_custom_call.1} parent=5 // pred_region
        %s1522 = ssub.s32 %s12, 2
        // Predicated region
        $region45: #{tpu_custom_call.1} parent=43 // pred_check
          %p1523 = pneg %p109
        $region46: #{tpu_custom_call.1} parent=43 // pred_check_branch
          %1525 = sbr.rel (%p1523) target = $region48
        $region47: #{tpu_custom_call.1} parent=43 // pred_region
          %p1526 = scmp.lt.s32.totalorder %s18, 1
          %s1527 = scalar_select %p1526, %s18, 1
          %s1528 = smul.addr %s1527, 8
          %s1529 = smul.addr %s1528, 8
          %s1530 = scalar_lea.vmem %s3, %s1529
        $region48: #{tpu_custom_call.1} parent=43 // pred_fallthru
          _
      $region44: #{tpu_custom_call.1} parent=5 // pred_fallthru
        _
    $region6: #{tpu_custom_call.1} parent=1 // loop_footer
      %s16 = sadd.s32 1, %s12
    $region7: #{tpu_custom_call.1} parent=1 // loop_footer_branch
      %11 = sbr.rel target = $region3
    $region8: #{tpu_custom_call.1} parent=1 // loop_exit
      _
    %1531 = vsyncpa [#allocation3], 1
    %s1532 = scalar_lea.sflag [#allocation3], 1
    %1533 = vsyncpa %s1532, 1

// kernel: tpu_custom_call.1
$region0: #{tpu_custom_call.1}
  #allocation0 [shape = 'u32[]', space=smem, size = 0x4, offset = 0x4, fixed_abs, tag = 'smem constant byte address 0x4 - core index']
  #allocation1 [shape = 'u32[72,128]{1,0:T(1,128)}', space=vmem, size = 0x9000, scoped, tag = 'internal scratch']
  %s0 = inlined_call_operand.hbm [shape: f32[2,8,2,8,8], index: 0, kind: input, shape index: {}]
  %s1 = inlined_call_operand.vmem [shape: bf16[9,4,8], index: 1, kind: input, shape index: {}]
  %s2 = inlined_call_operand.vmem [shape: bf16[9,8,8], index: 2, kind: input, shape index: {}]
  %s3 = inlined_call_operand.vmem [shape: f32[2,64,8], index: 3, kind: output, shape index: {}]
  %s4 = sld [smem:[#allocation0]]
  $region49: #{tpu_custom_call.1} parent=0
    _
  %s6 = ssub.s32 1, %s4
  %s7 = scalar_select 0, %s6, %s4
  $region1: #{tpu_custom_call.1} parent=0
    #allocation2 [shape = 'u8[131072]{0}', space=vmem, size = 0x20000, scoped, tag = 'input window, operand 0']
    #allocation3 [shape = 's32[2]{0}', space=sflag, size = 0x8, scoped, tag = 'scoped memory for tpu_custom_call.1']
    %8 = vsyncpa [#allocation3], 0
    %s9 = scalar_lea.sflag [#allocation3], 1
    %10 = vsyncpa %s9, 0
    loop: start=0, step=1, limit=4
    $region2: #{tpu_custom_call.1} parent=1 // loop_pre_header
      _
    $region3: #{tpu_custom_call.1} parent=1 // loop_header
      %s12 = sphi 0, %s16
      %p13 = scmp.ge.s32.totalorder %s12, 4
      %s22 = sphi 0, %s24
      %s25 = sphi 0, %s22
      %s26 = sphi 0, %s25
      %s42 = sphi 0, %s26
      %s46 = sphi 0, %s46
      %s48 = sphi 0, %s46
      %s49 = sphi 0, %s48
      %s63 = sphi 0, %s49
      %s67 = sphi 0, %s67
      %s69 = sphi 0, %s67
      %s70 = sphi 0, %s69
      %s84 = sphi 0, %s70
      %s90 = sphi 0, %s92
      %s93 = sphi 0, %s90
      %s94 = sphi 0, %s93
      %s110 = sphi 0, %s94
    $region4: #{tpu_custom_call.1} parent=1 // loop_header_branch
      %15 = sbr.rel (%p13) target = $region8
    $region5: #{tpu_custom_call.1} parent=1 // loop_body
      %s17 = ssub.s32 %s12, 1
      %s18 = ssub.s32 %s12, 2
      %s19 = sadd.s32 %s12, 1
      %s20 = ssub.s32 %s12, %s19
      %p21 = scmp.eq.s32.totalorder %s20, 0
      %s23 = sadd.s32 %s22, 1
      %s24 = scalar_select %p21, %s22, %s23
      %p27 = pneg %p21
      %p28 = scmp.eq.s32.totalorder %s12, 1
      %p29 = por %p27, %p28
      %p30 = scmp.ne.s32.totalorder %s22, %s25
      %p31 = scmp.eq.s32.totalorder %s12, 0
      %p32 = por %p30, %p31
      %p33 = scmp.ne.s32.totalorder %s22, %s25
      %p34 = scmp.eq.s32.totalorder %s17, 1
      %p35 = por %p33, %p34
      %p36 = scmp.ne.s32.totalorder %s25, %s26
      %p37 = scmp.eq.s32.totalorder %s17, 0
      %p38 = por %p36, %p37
      %p39 = scmp.ne.s32.totalorder %s25, %s26
      %p40 = scmp.eq.s32.totalorder %s18, 1
      %p41 = por %p39, %p40
      %p43 = scmp.ne.s32.totalorder %s26, %s42
      %p44 = scmp.eq.s32.totalorder %s18, 0
      %p45 = por %p43, %p44
      %s47 = sadd.s32 %s46, 1
      %p50 = scmp.eq.s32.totalorder %s12, 1
      %p51 = scmp.ne.s32.totalorder %s46, %s48
      %p52 = scmp.eq.s32.totalorder %s12, 0
      %p53 = por %p51, %p52
      %p54 = scmp.ne.s32.totalorder %s46, %s48
      %p55 = scmp.eq.s32.totalorder %s17, 1
      %p56 = por %p54, %p55
      %p57 = scmp.ne.s32.totalorder %s48, %s49
      %p58 = scmp.eq.s32.totalorder %s17, 0
      %p59 = por %p57, %p58
      %p60 = scmp.ne.s32.totalorder %s48, %s49
      %p61 = scmp.eq.s32.totalorder %s18, 1
      %p62 = por %p60, %p61
      %p64 = scmp.ne.s32.totalorder %s49, %s63
      %p65 = scmp.eq.s32.totalorder %s18, 0
      %p66 = por %p64, %p65
      %s68 = sadd.s32 %s67, 1
      %p71 = scmp.eq.s32.totalorder %s12, 1
      %p72 = scmp.ne.s32.totalorder %s67, %s69
      %p73 = scmp.eq.s32.totalorder %s12, 0
      %p74 = por %p72, %p73
      %p75 = scmp.ne.s32.totalorder %s67, %s69
      %p76 = scmp.eq.s32.totalorder %s17, 1
      %p77 = por %p75, %p76
      %p78 = scmp.ne.s32.totalorder %s69, %s70
      %p79 = scmp.eq.s32.totalorder %s17, 0
      %p80 = por %p78, %p79
      %p81 = scmp.ne.s32.totalorder %s69, %s70
      %p82 = scmp.eq.s32.totalorder %s18, 1
      %p83 = por %p81, %p82
      %p85 = scmp.ne.s32.totalorder %s70, %s84
      %p86 = scmp.eq.s32.totalorder %s18, 0
      %p87 = por %p85, %p86
      %s88 = ssub.s32 %s12, %s19
      %p89 = scmp.eq.s32.totalorder %s88, 0
      %s91 = sadd.s32 %s90, 1
      %s92 = scalar_select %p89, %s90, %s91
      %p95 = pneg %p89
      %p96 = scmp.eq.s32.totalorder %s12, 1
      %p97 = por %p95, %p96
      %p98 = scmp.ne.s32.totalorder %s90, %s93
      %p99 = scmp.eq.s32.totalorder %s12, 0
      %p100 = por %p98, %p99
      %p101 = scmp.ne.s32.totalorder %s90, %s93
      %p102 = scmp.eq.s32.totalorder %s17, 1
      %p103 = por %p101, %p102
      %p104 = scmp.ne.s32.totalorder %s93, %s94
      %p105 = scmp.eq.s32.totalorder %s17, 0
      %p106 = por %p104, %p105
      %p107 = scmp.ne.s32.totalorder %s93, %s94
      %p108 = scmp.eq.s32.totalorder %s18, 1
      %p109 = por %p107, %p108
      %p111 = scmp.ne.s32.totalorder %s94, %s110
      %p112 = scmp.eq.s32.totalorder %s18, 0
      %p113 = por %p111, %p112
      %p114 = scmp.le.s32.totalorder 1, %s12
      %p115 = scmp.lt.s32.totalorder %s12, 3
      %p116 = pnand %p114, %p115
      %p117 = pneg %p116
      // Predicated region
      $region9: #{tpu_custom_call.1} parent=5 // pred_check
        _
      $region10: #{tpu_custom_call.1} parent=5 // pred_check_branch
        %119 = sbr.rel (%p116) target = $region12
      $region11: #{tpu_custom_call.1} parent=5 // pred_region
        %s120 = ssub.s32 %s12, 1
        // Predicated region
        $region13: #{tpu_custom_call.1} parent=11 // pred_check
          %p121 = pneg %p59
        $region14: #{tpu_custom_call.1} parent=11 // pred_check_branch
          %123 = sbr.rel (%p121) target = $region16
        $region15: #{tpu_custom_call.1} parent=11 // pred_region
          _
        $region16: #{tpu_custom_call.1} parent=11 // pred_fallthru
          _
        // Predicated region
        $region17: #{tpu_custom_call.1} parent=11 // pred_check
          %p124 = pneg %p80
        $region18: #{tpu_custom_call.1} parent=11 // pred_check_branch
          %126 = sbr.rel (%p124) target = $region20
        $region19: #{tpu_custom_call.1} parent=11 // pred_region
          _
        $region20: #{tpu_custom_call.1} parent=11 // pred_fallthru
          _
      $region12: #{tpu_custom_call.1} parent=5 // pred_fallthru
        _
      %p127 = scmp.lt.s32.totalorder %s12, 2
      // Predicated region
      $region21: #{tpu_custom_call.1} parent=5 // pred_check
        %p128 = pneg %p127
      $region22: #{tpu_custom_call.1} parent=5 // pred_check_branch
        %130 = sbr.rel (%p128) target = $region24
      $region23: #{tpu_custom_call.1} parent=5 // pred_region
        // Predicated region
        $region25: #{tpu_custom_call.1} parent=23 // pred_check
          %p131 = pneg %p32
        $region26: #{tpu_custom_call.1} parent=23 // pred_check_branch
          %133 = sbr.rel (%p131) target = $region28
        $region27: #{tpu_custom_call.1} parent=23 // pred_region
          %s134 = sand.u32 %s22, 1
          %s135 = scalar_lea.sflag [#allocation3], %s134
          %s136 = sand.u32 %s22, 1
          %s137 = smul.addr %s136, 128
          %s138 = scalar_lea.vmem [#allocation2], %s137
          %140 = vsyncadd %s135, 0
          %s141 = smul.addr %s12, 16
          %s142 = smul.addr %s141, 8
          %s143 = scalar_lea.hbm %s0, %s142
          %s144 = sshll.u32 %s143, 4
          %s145 = int_to_ptr.hbm [resolvable:$true] %s144
          %s146 = sshll.u32 %s138, 4
          %s147 = int_to_ptr.vmem [resolvable:$true] %s146
          %152 = dma.hbm_to_vmem [thread:$0]  %s145, 2048, %s147, %s135, 128, 128, 8
        $region28: #{tpu_custom_call.1} parent=23 // pred_fallthru
          _
      $region24: #{tpu_custom_call.1} parent=5 // pred_fallthru
        _
      %p153 = scmp.le.s32.totalorder 1, %s12
      %p154 = scmp.lt.s32.totalorder %s12, 3
      %p155 = pnand %p153, %p154
      %p156 = pneg %p155
      // Predicated region
      $region29: #{tpu_custom_call.1} parent=5 // pred_check
        _
      $region30: #{tpu_custom_call.1} parent=5 // pred_check_branch
        %158 = sbr.rel (%p155) target = $region32
      $region31: #{tpu_custom_call.1} parent=5 // pred_region
        %s159 = ssub.s32 %s12, 1
        %s160 = sand.u32 %s25, 1
        %s161 = scalar_lea.sflag [#allocation3], %s160
        %s162 = sand.u32 %s25, 1
        %s163 = smul.addr %s162, 128
        %s164 = scalar_lea.vmem [#allocation2], %s163
        // Predicated region
        $region33: #{tpu_custom_call.1} parent=31 // pred_check
          %p165 = pneg %p38
        $region34: #{tpu_custom_call.1} parent=31 // pred_check_branch
          %167 = sbr.rel (%p165) target = $region36
        $region35: #{tpu_custom_call.1} parent=31 // pred_region
          %169 = dma.done %s161, 2048
        $region36: #{tpu_custom_call.1} parent=31 // pred_fallthru
          _
        %s170 = sand.u32 %s25, 1
        %s171 = scalar_lea.sflag [#allocation3], %s170
        %s172 = sand.u32 %s25, 1
        %s173 = smul.addr %s172, 128
        %s174 = scalar_lea.vmem [#allocation2], %s173
        %p175 = pneg %p38
        %p176 = pneg %p35
        %p177 = pneg %p59
        %p178 = pneg %p56
        %p179 = pneg %p80
        %p180 = pneg %p77
        %p181 = pneg %p106
        %p182 = pneg %p103
        %p183 = scmp.lt.s32.totalorder %s17, 1
        %s184 = scalar_select %p183, %s17, 1
        %s185 = smul.addr %s184, 8
        %s186 = smul.addr %s185, 8
        %s187 = scalar_lea.vmem %s3, %s186
        %p188 = scmp.lt.s32.totalorder %s17, 1
        %s189 = scalar_select %p188, %s17, 1
        %s190 = smul.addr %s189, 8
        %s191 = smul.addr %s190, 8
        %s192 = scalar_lea.vmem %s3, %s191
        %v194 = vld [vmem:[%s164] sm:$0xff]
        %v195 = vld [vmem:[%s164 + $0x10] sm:$0xff]
        %v196 = vld [vmem:[%s164 + $0x20] sm:$0xff]
        %v197 = vld [vmem:[%s164 + $0x30] sm:$0xff]
        %v198 = vld [vmem:[%s164 + $0x40] sm:$0xff]
        %v199 = vld [vmem:[%s164 + $0x50] sm:$0xff]
        %v200 = vld [vmem:[%s164 + $0x60] sm:$0xff]
        %v201 = vld [vmem:[%s164 + $0x70] sm:$0xff]
        %s202 = scalar_lea.vmem %s164, 8 [#allocation2]
        %v203 = vld [vmem:[%s202] sm:$0xff]
        %v204 = vld [vmem:[%s202 + $0x10] sm:$0xff]
        %v205 = vld [vmem:[%s202 + $0x20] sm:$0xff]
        %v206 = vld [vmem:[%s202 + $0x30] sm:$0xff]
        %v207 = vld [vmem:[%s202 + $0x40] sm:$0xff]
        %v208 = vld [vmem:[%s202 + $0x50] sm:$0xff]
        %v209 = vld [vmem:[%s202 + $0x60] sm:$0xff]
        %v210 = vld [vmem:[%s202 + $0x70] sm:$0xff]
        %v211 = vmax.f32 %v194, %v203
        %v212 = vmax.f32 %v195, %v204
        %v213 = vmax.f32 %v196, %v205
        %v214 = vmax.f32 %v197, %v206
        %v215 = vmax.f32 %v198, %v207
        %v216 = vmax.f32 %v199, %v208
        %v217 = vmax.f32 %v200, %v209
        %v218 = vmax.f32 %v201, %v210
        %227 = vrot.lane.b32.xlu0 %v211, 124
        %v228 = vpop.permute.xlu0 %227
        %229 = vrot.lane.b32.xlu0 %v212, 124
        %v230 = vpop.permute.xlu0 %229
        %231 = vrot.lane.b32.xlu0 %v213, 124
        %v232 = vpop.permute.xlu0 %231
        %233 = vrot.lane.b32.xlu0 %v214, 124
        %v234 = vpop.permute.xlu0 %233
        %235 = vrot.lane.b32.xlu0 %v215, 124
        %v236 = vpop.permute.xlu0 %235
        %237 = vrot.lane.b32.xlu0 %v216, 124
        %v238 = vpop.permute.xlu0 %237
        %239 = vrot.lane.b32.xlu0 %v217, 124
        %v240 = vpop.permute.xlu0 %239
        %241 = vrot.lane.b32.xlu0 %v218, 124
        %v242 = vpop.permute.xlu0 %241
        %v251 = vmax.f32 %v211, %v228
        %v252 = vmax.f32 %v212, %v230
        %v253 = vmax.f32 %v213, %v232
        %v254 = vmax.f32 %v214, %v234
        %v255 = vmax.f32 %v215, %v236
        %v256 = vmax.f32 %v216, %v238
        %v257 = vmax.f32 %v217, %v240
        %v258 = vmax.f32 %v218, %v242
        %v267 = vrot.slane 0.0, 7
        %v268 = vrot.slane %v251, 7
        %v269 = vrot.slane %v252, 7
        %v270 = vrot.slane %v253, 7
        %v271 = vrot.slane %v254, 7
        %v272 = vrot.slane %v255, 7
        %v273 = vrot.slane %v256, 7
        %v274 = vrot.slane %v257, 7
        %vm283 = vcmask 1040384
        %v284 = vsel %vm283, 0.0, %v267
        %v285 = vsel %vm283, 0.0, %v268
        %v286 = vsel %vm283, 0.0, %v269
        %v287 = vsel %vm283, 0.0, %v270
        %v288 = vsel %vm283, 0.0, %v271
        %v289 = vsel %vm283, 0.0, %v272
        %v290 = vsel %vm283, 0.0, %v273
        %v291 = vsel %vm283, 0.0, %v274
        %v292 = vpack.c.bf16 %v285, %v284
        %v293 = vpack.c.bf16 %v287, %v286
        %v294 = vpack.c.bf16 %v289, %v288
        %v295 = vpack.c.bf16 %v291, %v290
        %v296 = vld [vmem:[%s1] sm:$0x3]
        %v297 = vpack.c.bf16 %v251, 0.0
        %v298 = vpack.c.bf16 %v253, %v252
        %v299 = vpack.c.bf16 %v255, %v254
        %v300 = vpack.c.bf16 %v257, %v256
        %s301 = scalar_lea.vmem %s1, 2
        %v302 = vld [vmem:[%s301] sm:$0x3]
        %vm303 = vcmask 31744
        %v305 = vsel %vm303, %v297, 0
        %v308 = vsel %vm303, %v298, 0
        %v311 = vsel %vm303, %v299, 0
        %v314 = vsel %vm303, %v300, 0
        %vm316 = vcmask 1041408
        %v318 = vsel %vm316, %v302, 0
        %320 = vmatpush.bf16.msra.mxu0 0
        %321 = vmatpush.bf16.msra.mxu0 0
        %322 = vmatpush.bf16.msra.mxu0 0
        %323 = vmatpush.bf16.msra.mxu0 0
        %324 = vmatpush.bf16.msra.mxu0 0
        %325 = vmatpush.bf16.msra.mxu0 0
        %326 = vmatpush.bf16.msra.mxu0 0
        %327 = vmatpush.bf16.msra.mxu0 %v318
        %328 = vmatmul.bf16.gmra.mxu0 %v305
        %v329 = vpop.f32.mrf.mxu0
        %v330 = vadd.f32 0.0, %v329
        %v331 = vpop.f32.mrf.mxu0
        %v332 = vadd.f32 0.0, %v331
        %333 = vmatmul.bf16.gmra.mxu0 %v308
        %v334 = vpop.f32.mrf.mxu0
        %v335 = vadd.f32 0.0, %v334
        %v336 = vpop.f32.mrf.mxu0
        %v337 = vadd.f32 0.0, %v336
        %338 = vmatmul.bf16.gmra.mxu0 %v311
        %v339 = vpop.f32.mrf.mxu0
        %v340 = vadd.f32 0.0, %v339
        %v341 = vpop.f32.mrf.mxu0
        %v342 = vadd.f32 0.0, %v341
        %343 = vmatmul.bf16.gmra.mxu0 %v314
        %v344 = vpop.f32.mrf.mxu0
        %v345 = vadd.f32 0.0, %v344
        %v346 = vpop.f32.mrf.mxu0
        %v347 = vadd.f32 0.0, %v346
        %348 = vdwg.mxu0
        %v350 = vsel %vm303, %v292, 0
        %v353 = vsel %vm303, %v293, 0
        %v356 = vsel %vm303, %v294, 0
        %v359 = vsel %vm303, %v295, 0
        %v362 = vsel %vm316, %v296, 0
        %364 = vmatpush.bf16.msra.mxu0 0
        %365 = vmatpush.bf16.msra.mxu0 0
        %366 = vmatpush.bf16.msra.mxu0 0
        %367 = vmatpush.bf16.msra.mxu0 0
        %368 = vmatpush.bf16.msra.mxu0 0
        %369 = vmatpush.bf16.msra.mxu0 0
        %370 = vmatpush.bf16.msra.mxu0 0
        %371 = vmatpush.bf16.msra.mxu0 %v362
        %372 = vmatmul.bf16.gmra.mxu0 %v350
        %v373 = vpop.f32.mrf.mxu0
        %v374 = vadd.f32 %v330, %v373
        %v375 = vpop.f32.mrf.mxu0
        %v376 = vadd.f32 %v332, %v375
        %377 = vmatmul.bf16.gmra.mxu0 %v353
        %v378 = vpop.f32.mrf.mxu0
        %v379 = vadd.f32 %v335, %v378
        %v380 = vpop.f32.mrf.mxu0
        %v381 = vadd.f32 %v337, %v380
        %382 = vmatmul.bf16.gmra.mxu0 %v356
        %v383 = vpop.f32.mrf.mxu0
        %v384 = vadd.f32 %v340, %v383
        %v385 = vpop.f32.mrf.mxu0
        %v386 = vadd.f32 %v342, %v385
        %387 = vmatmul.bf16.gmra.mxu0 %v359
        %v388 = vpop.f32.mrf.mxu0
        %v389 = vadd.f32 %v345, %v388
        %v390 = vpop.f32.mrf.mxu0
        %v391 = vadd.f32 %v347, %v390
        %392 = vdwg.mxu0
        %v393 = vrot.slane 0.0, 1
        %v394 = vrot.slane %v251, 1
        %v395 = vrot.slane %v252, 1
        %v396 = vrot.slane %v253, 1
        %v397 = vrot.slane %v254, 1
        %v398 = vrot.slane %v255, 1
        %v399 = vrot.slane %v256, 1
        %v400 = vrot.slane %v257, 1
        %vm409 = vcmask 1046528
        %v410 = vsel %vm409, %v393, 0.0
        %v411 = vsel %vm409, %v394, 0.0
        %v412 = vsel %vm409, %v395, 0.0
        %v413 = vsel %vm409, %v396, 0.0
        %v414 = vsel %vm409, %v397, 0.0
        %v415 = vsel %vm409, %v398, 0.0
        %v416 = vsel %vm409, %v399, 0.0
        %v417 = vsel %vm409, %v400, 0.0
        %v418 = vpack.c.bf16 %v411, %v410
        %v419 = vpack.c.bf16 %v413, %v412
        %v420 = vpack.c.bf16 %v415, %v414
        %v421 = vpack.c.bf16 %v417, %v416
        %s422 = scalar_lea.vmem %s1, 4
        %v423 = vld [vmem:[%s422] sm:$0x3]
        %v425 = vsel %vm303, %v418, 0
        %v428 = vsel %vm303, %v419, 0
        %v431 = vsel %vm303, %v420, 0
        %v434 = vsel %vm303, %v421, 0
        %v437 = vsel %vm316, %v423, 0
        %439 = vmatpush.bf16.msra.mxu0 0
        %440 = vmatpush.bf16.msra.mxu0 0
        %441 = vmatpush.bf16.msra.mxu0 0
        %442 = vmatpush.bf16.msra.mxu0 0
        %443 = vmatpush.bf16.msra.mxu0 0
        %444 = vmatpush.bf16.msra.mxu0 0
        %445 = vmatpush.bf16.msra.mxu0 0
        %446 = vmatpush.bf16.msra.mxu0 %v437
        %447 = vmatmul.bf16.gmra.mxu0 %v425
        %v448 = vpop.f32.mrf.mxu0
        %v449 = vadd.f32 0.0, %v448
        %v450 = vpop.f32.mrf.mxu0
        %v451 = vadd.f32 0.0, %v450
        %452 = vmatmul.bf16.gmra.mxu0 %v428
        %v453 = vpop.f32.mrf.mxu0
        %v454 = vadd.f32 0.0, %v453
        %v455 = vpop.f32.mrf.mxu0
        %v456 = vadd.f32 0.0, %v455
        %457 = vmatmul.bf16.gmra.mxu0 %v431
        %v458 = vpop.f32.mrf.mxu0
        %v459 = vadd.f32 0.0, %v458
        %v460 = vpop.f32.mrf.mxu0
        %v461 = vadd.f32 0.0, %v460
        %462 = vmatmul.bf16.gmra.mxu0 %v434
        %v463 = vpop.f32.mrf.mxu0
        %v464 = vadd.f32 0.0, %v463
        %v465 = vpop.f32.mrf.mxu0
        %v466 = vadd.f32 0.0, %v465
        %467 = vdwg.mxu0
        %v468 = vadd.f32 %v374, %v449
        %v469 = vadd.f32 %v376, %v451
        %v470 = vadd.f32 %v379, %v454
        %v471 = vadd.f32 %v381, %v456
        %v472 = vadd.f32 %v384, %v459
        %v473 = vadd.f32 %v386, %v461
        %v474 = vadd.f32 %v389, %v464
        %v475 = vadd.f32 %v391, %v466
        %v477 = vrot.slane %v258, 7
        %v479 = vsel %vm283, 0.0, %v477
        %v480 = vpack.c.bf16 %v286, %v285
        %v481 = vpack.c.bf16 %v288, %v287
        %v482 = vpack.c.bf16 %v290, %v289
        %v483 = vpack.c.bf16 %v479, %v291
        %s484 = scalar_lea.vmem %s1, 6
        %v485 = vld [vmem:[%s484] sm:$0x3]
        %v487 = vsel %vm303, %v480, 0
        %v490 = vsel %vm303, %v481, 0
        %v493 = vsel %vm303, %v482, 0
        %v496 = vsel %vm303, %v483, 0
        %v499 = vsel %vm316, %v485, 0
        %501 = vmatpush.bf16.msra.mxu0 0
        %502 = vmatpush.bf16.msra.mxu0 0
        %503 = vmatpush.bf16.msra.mxu0 0
        %504 = vmatpush.bf16.msra.mxu0 0
        %505 = vmatpush.bf16.msra.mxu0 0
        %506 = vmatpush.bf16.msra.mxu0 0
        %507 = vmatpush.bf16.msra.mxu0 0
        %508 = vmatpush.bf16.msra.mxu0 %v499
        %509 = vmatmul.bf16.gmra.mxu0 %v487
        %v510 = vpop.f32.mrf.mxu0
        %v511 = vadd.f32 0.0, %v510
        %v512 = vpop.f32.mrf.mxu0
        %v513 = vadd.f32 0.0, %v512
        %514 = vmatmul.bf16.gmra.mxu0 %v490
        %v515 = vpop.f32.mrf.mxu0
        %v516 = vadd.f32 0.0, %v515
        %v517 = vpop.f32.mrf.mxu0
        %v518 = vadd.f32 0.0, %v517
        %519 = vmatmul.bf16.gmra.mxu0 %v493
        %v520 = vpop.f32.mrf.mxu0
        %v521 = vadd.f32 0.0, %v520
        %v522 = vpop.f32.mrf.mxu0
        %v523 = vadd.f32 0.0, %v522
        %524 = vmatmul.bf16.gmra.mxu0 %v496
        %v525 = vpop.f32.mrf.mxu0
        %v526 = vadd.f32 0.0, %v525
        %v527 = vpop.f32.mrf.mxu0
        %v528 = vadd.f32 0.0, %v527
        %529 = vdwg.mxu0
        %v530 = vadd.f32 %v468, %v511
        %v531 = vadd.f32 %v469, %v513
        %v532 = vadd.f32 %v470, %v516
        %v533 = vadd.f32 %v471, %v518
        %v534 = vadd.f32 %v472, %v521
        %v535 = vadd.f32 %v473, %v523
        %v536 = vadd.f32 %v474, %v526
        %v537 = vadd.f32 %v475, %v528
        %v538 = vpack.c.bf16 %v252, %v251
        %v539 = vpack.c.bf16 %v254, %v253
        %v540 = vpack.c.bf16 %v256, %v255
        %v541 = vpack.c.bf16 %v258, %v257
        %s542 = scalar_lea.vmem %s1, 8
        %v543 = vld [vmem:[%s542] sm:$0x3]
        %v545 = vsel %vm303, %v538, 0
        %v548 = vsel %vm303, %v539, 0
        %v551 = vsel %vm303, %v540, 0
        %v554 = vsel %vm303, %v541, 0
        %v557 = vsel %vm316, %v543, 0
        %559 = vmatpush.bf16.msra.mxu0 0
        %560 = vmatpush.bf16.msra.mxu0 0
        %561 = vmatpush.bf16.msra.mxu0 0
        %562 = vmatpush.bf16.msra.mxu0 0
        %563 = vmatpush.bf16.msra.mxu0 0
        %564 = vmatpush.bf16.msra.mxu0 0
        %565 = vmatpush.bf16.msra.mxu0 0
        %566 = vmatpush.bf16.msra.mxu0 %v557
        %567 = vmatmul.bf16.gmra.mxu0 %v545
        %v568 = vpop.f32.mrf.mxu0
        %v569 = vadd.f32 0.0, %v568
        %v570 = vpop.f32.mrf.mxu0
        %v571 = vadd.f32 0.0, %v570
        %572 = vmatmul.bf16.gmra.mxu0 %v548
        %v573 = vpop.f32.mrf.mxu0
        %v574 = vadd.f32 0.0, %v573
        %v575 = vpop.f32.mrf.mxu0
        %v576 = vadd.f32 0.0, %v575
        %577 = vmatmul.bf16.gmra.mxu0 %v551
        %v578 = vpop.f32.mrf.mxu0
        %v579 = vadd.f32 0.0, %v578
        %v580 = vpop.f32.mrf.mxu0
        %v581 = vadd.f32 0.0, %v580
        %582 = vmatmul.bf16.gmra.mxu0 %v554
        %v583 = vpop.f32.mrf.mxu0
        %v584 = vadd.f32 0.0, %v583
        %v585 = vpop.f32.mrf.mxu0
        %v586 = vadd.f32 0.0, %v585
        %587 = vdwg.mxu0
        %v588 = vadd.f32 %v530, %v569
        %v589 = vadd.f32 %v531, %v571
        %v590 = vadd.f32 %v532, %v574
        %v591 = vadd.f32 %v533, %v576
        %v592 = vadd.f32 %v534, %v579
        %v593 = vadd.f32 %v535, %v581
        %v594 = vadd.f32 %v536, %v584
        %v595 = vadd.f32 %v537, %v586
        %v596 = vrot.slane %v258, 1
        %v598 = vsel %vm409, %v596, 0.0
        %v599 = vpack.c.bf16 %v412, %v411
        %v600 = vpack.c.bf16 %v414, %v413
        %v601 = vpack.c.bf16 %v416, %v415
        %v602 = vpack.c.bf16 %v598, %v417
        %s603 = scalar_lea.vmem %s1, 10
        %v604 = vld [vmem:[%s603] sm:$0x3]
        %v606 = vsel %vm303, %v599, 0
        %v609 = vsel %vm303, %v600, 0
        %v612 = vsel %vm303, %v601, 0
        %v615 = vsel %vm303, %v602, 0
        %v618 = vsel %vm316, %v604, 0
        %620 = vmatpush.bf16.msra.mxu0 0
        %621 = vmatpush.bf16.msra.mxu0 0
        %622 = vmatpush.bf16.msra.mxu0 0
        %623 = vmatpush.bf16.msra.mxu0 0
        %624 = vmatpush.bf16.msra.mxu0 0
        %625 = vmatpush.bf16.msra.mxu0 0
        %626 = vmatpush.bf16.msra.mxu0 0
        %627 = vmatpush.bf16.msra.mxu0 %v618
        %628 = vmatmul.bf16.gmra.mxu0 %v606
        %v629 = vpop.f32.mrf.mxu0
        %v630 = vadd.f32 0.0, %v629
        %v631 = vpop.f32.mrf.mxu0
        %v632 = vadd.f32 0.0, %v631
        %633 = vmatmul.bf16.gmra.mxu0 %v609
        %v634 = vpop.f32.mrf.mxu0
        %v635 = vadd.f32 0.0, %v634
        %v636 = vpop.f32.mrf.mxu0
        %v637 = vadd.f32 0.0, %v636
        %638 = vmatmul.bf16.gmra.mxu0 %v612
        %v639 = vpop.f32.mrf.mxu0
        %v640 = vadd.f32 0.0, %v639
        %v641 = vpop.f32.mrf.mxu0
        %v642 = vadd.f32 0.0, %v641
        %643 = vmatmul.bf16.gmra.mxu0 %v615
        %v644 = vpop.f32.mrf.mxu0
        %v645 = vadd.f32 0.0, %v644
        %v646 = vpop.f32.mrf.mxu0
        %v647 = vadd.f32 0.0, %v646
        %648 = vdwg.mxu0
        %v649 = vadd.f32 %v588, %v630
        %v650 = vadd.f32 %v589, %v632
        %v651 = vadd.f32 %v590, %v635
        %v652 = vadd.f32 %v591, %v637
        %v653 = vadd.f32 %v592, %v640
        %v654 = vadd.f32 %v593, %v642
        %v655 = vadd.f32 %v594, %v645
        %v656 = vadd.f32 %v595, %v647
        %v657 = vpack.c.bf16 %v284, %v479
        %s658 = scalar_lea.vmem %s1, 12
        %v659 = vld [vmem:[%s658] sm:$0x3]
        %v661 = vsel %vm303, %v657, 0
        %v664 = vsel %vm316, %v659, 0
        %666 = vmatpush.bf16.msra.mxu0 0
        %667 = vmatpush.bf16.msra.mxu0 0
        %668 = vmatpush.bf16.msra.mxu0 0
        %669 = vmatpush.bf16.msra.mxu0 0
        %670 = vmatpush.bf16.msra.mxu0 0
        %671 = vmatpush.bf16.msra.mxu0 0
        %672 = vmatpush.bf16.msra.mxu0 0
        %673 = vmatpush.bf16.msra.mxu0 %v664
        %674 = vmatmul.bf16.gmra.mxu0 %v353
        %v675 = vpop.f32.mrf.mxu0
        %v676 = vadd.f32 0.0, %v675
        %v677 = vpop.f32.mrf.mxu0
        %v678 = vadd.f32 0.0, %v677
        %679 = vmatmul.bf16.gmra.mxu0 %v356
        %v680 = vpop.f32.mrf.mxu0
        %v681 = vadd.f32 0.0, %v680
        %v682 = vpop.f32.mrf.mxu0
        %v683 = vadd.f32 0.0, %v682
        %684 = vmatmul.bf16.gmra.mxu0 %v359
        %v685 = vpop.f32.mrf.mxu0
        %v686 = vadd.f32 0.0, %v685
        %v687 = vpop.f32.mrf.mxu0
        %v688 = vadd.f32 0.0, %v687
        %689 = vmatmul.bf16.gmra.mxu0 %v661
        %v690 = vpop.f32.mrf.mxu0
        %v691 = vadd.f32 0.0, %v690
        %v692 = vpop.f32.mrf.mxu0
        %v693 = vadd.f32 0.0, %v692
        %694 = vdwg.mxu0
        %v695 = vadd.f32 %v649, %v676
        %v696 = vadd.f32 %v650, %v678
        %v697 = vadd.f32 %v651, %v681
        %v698 = vadd.f32 %v652, %v683
        %v699 = vadd.f32 %v653, %v686
        %v700 = vadd.f32 %v654, %v688
        %v701 = vadd.f32 %v655, %v691
        %v702 = vadd.f32 %v656, %v693
        %v703 = vpack.c.bf16 0.0, %v258
        %s704 = scalar_lea.vmem %s1, 14
        %v705 = vld [vmem:[%s704] sm:$0x3]
        %v707 = vsel %vm303, %v703, 0
        %v710 = vsel %vm316, %v705, 0
        %712 = vmatpush.bf16.msra.mxu0 0
        %713 = vmatpush.bf16.msra.mxu0 0
        %714 = vmatpush.bf16.msra.mxu0 0
        %715 = vmatpush.bf16.msra.mxu0 0
        %716 = vmatpush.bf16.msra.mxu0 0
        %717 = vmatpush.bf16.msra.mxu0 0
        %718 = vmatpush.bf16.msra.mxu0 0
        %719 = vmatpush.bf16.msra.mxu0 %v710
        %720 = vmatmul.bf16.gmra.mxu0 %v308
        %v721 = vpop.f32.mrf.mxu0
        %v722 = vadd.f32 0.0, %v721
        %v723 = vpop.f32.mrf.mxu0
        %v724 = vadd.f32 0.0, %v723
        %725 = vmatmul.bf16.gmra.mxu0 %v311
        %v726 = vpop.f32.mrf.mxu0
        %v727 = vadd.f32 0.0, %v726
        %v728 = vpop.f32.mrf.mxu0
        %v729 = vadd.f32 0.0, %v728
        %730 = vmatmul.bf16.gmra.mxu0 %v314
        %v731 = vpop.f32.mrf.mxu0
        %v732 = vadd.f32 0.0, %v731
        %v733 = vpop.f32.mrf.mxu0
        %v734 = vadd.f32 0.0, %v733
        %735 = vmatmul.bf16.gmra.mxu0 %v707
        %v736 = vpop.f32.mrf.mxu0
        %v737 = vadd.f32 0.0, %v736
        %v738 = vpop.f32.mrf.mxu0
        %v739 = vadd.f32 0.0, %v738
        %740 = vdwg.mxu0
        %v741 = vadd.f32 %v695, %v722
        %v742 = vadd.f32 %v696, %v724
        %v743 = vadd.f32 %v697, %v727
        %v744 = vadd.f32 %v698, %v729
        %v745 = vadd.f32 %v699, %v732
        %v746 = vadd.f32 %v700, %v734
        %v747 = vadd.f32 %v701, %v737
        %v748 = vadd.f32 %v702, %v739
        %v749 = vpack.c.bf16 %v410, %v598
        %s750 = scalar_lea.vmem %s1, 16
        %v751 = vld [vmem:[%s750] sm:$0x3]
        %v753 = vsel %vm303, %v749, 0
        %v756 = vsel %vm316, %v751, 0
        %758 = vmatpush.bf16.msra.mxu0 0
        %759 = vmatpush.bf16.msra.mxu0 0
        %760 = vmatpush.bf16.msra.mxu0 0
        %761 = vmatpush.bf16.msra.mxu0 0
        %762 = vmatpush.bf16.msra.mxu0 0
        %763 = vmatpush.bf16.msra.mxu0 0
        %764 = vmatpush.bf16.msra.mxu0 0
        %765 = vmatpush.bf16.msra.mxu0 %v756
        %766 = vmatmul.bf16.gmra.mxu0 %v428
        %v767 = vpop.f32.mrf.mxu0
        %v768 = vadd.f32 0.0, %v767
        %v769 = vpop.f32.mrf.mxu0
        %v770 = vadd.f32 0.0, %v769
        %771 = vmatmul.bf16.gmra.mxu0 %v431
        %v772 = vpop.f32.mrf.mxu0
        %v773 = vadd.f32 0.0, %v772
        %v774 = vpop.f32.mrf.mxu0
        %v775 = vadd.f32 0.0, %v774
        %776 = vmatmul.bf16.gmra.mxu0 %v434
        %v777 = vpop.f32.mrf.mxu0
        %v778 = vadd.f32 0.0, %v777
        %v779 = vpop.f32.mrf.mxu0
        %v780 = vadd.f32 0.0, %v779
        %781 = vmatmul.bf16.gmra.mxu0 %v753
        %v782 = vpop.f32.mrf.mxu0
        %v783 = vadd.f32 0.0, %v782
        %v784 = vpop.f32.mrf.mxu0
        %v785 = vadd.f32 0.0, %v784
        %786 = vdwg.mxu0
        %v787 = vadd.f32 %v741, %v768
        %v788 = vadd.f32 %v742, %v770
        %v789 = vadd.f32 %v743, %v773
        %v790 = vadd.f32 %v744, %v775
        %v791 = vadd.f32 %v745, %v778
        %v792 = vadd.f32 %v746, %v780
        %v793 = vadd.f32 %v747, %v783
        %v794 = vadd.f32 %v748, %v785
        %vm795 = vcmask 64512
        %v796 = vsel %vm795, %v787, 0.0
        %v797 = vsel %vm795, %v788, 0.0
        %v798 = vadd.f32 %v796, %v797
        %v799 = vsel %vm795, %v789, 0.0
        %v800 = vadd.f32 %v798, %v799
        %v801 = vsel %vm795, %v790, 0.0
        %v802 = vadd.f32 %v800, %v801
        %v803 = vsel %vm795, %v791, 0.0
        %v804 = vadd.f32 %v802, %v803
        %v805 = vsel %vm795, %v792, 0.0
        %v806 = vadd.f32 %v804, %v805
        %v807 = vsel %vm795, %v793, 0.0
        %v808 = vadd.f32 %v806, %v807
        %v809 = vsel %vm795, %v794, 0.0
        %v810 = vadd.f32 %v808, %v809
        %v811 = vrot.slane %v810, 4
        %v812 = vadd.f32 %v810, %v811
        %v813 = vrot.slane %v812, 2
        %v814 = vadd.f32 %v812, %v813
        %v815 = vrot.slane %v814, 1
        %v816 = vadd.f32 %v814, %v815
        %v817 = vmul.f32 %v787, %v787
        %v818 = vmul.f32 %v788, %v788
        %v819 = vmul.f32 %v789, %v789
        %v820 = vmul.f32 %v790, %v790
        %v821 = vmul.f32 %v791, %v791
        %v822 = vmul.f32 %v792, %v792
        %v823 = vmul.f32 %v793, %v793
        %v824 = vmul.f32 %v794, %v794
        %v825 = vsel %vm795, %v817, 0.0
        %v826 = vsel %vm795, %v818, 0.0
        %v827 = vadd.f32 %v825, %v826
        %v828 = vsel %vm795, %v819, 0.0
        %v829 = vadd.f32 %v827, %v828
        %v830 = vsel %vm795, %v820, 0.0
        %v831 = vadd.f32 %v829, %v830
        %v832 = vsel %vm795, %v821, 0.0
        %v833 = vadd.f32 %v831, %v832
        %v834 = vsel %vm795, %v822, 0.0
        %v835 = vadd.f32 %v833, %v834
        %v836 = vsel %vm795, %v823, 0.0
        %v837 = vadd.f32 %v835, %v836
        %v838 = vsel %vm795, %v824, 0.0
        %v839 = vadd.f32 %v837, %v838
        %v840 = vrot.slane %v839, 4
        %v841 = vadd.f32 %v839, %v840
        %v842 = vrot.slane %v841, 2
        %v843 = vadd.f32 %v841, %v842
        %v844 = vrot.slane %v843, 1
        %v845 = vadd.f32 %v843, %v844
        %v846 = vmul.f32 %v816, 0.015625
        %v847 = vmul.f32 %v845, 0.015625
        %v848 = vmul.f32 %v846, %v846
        %v849 = vsub.f32 %v847, %v848
        %v850 = vmax.f32 %v849, 0.0
        %v851 = vsub.f32 %v787, %v846
        %v852 = vsub.f32 %v788, %v846
        %v853 = vsub.f32 %v789, %v846
        %v854 = vsub.f32 %v790, %v846
        %v855 = vsub.f32 %v791, %v846
        %v856 = vsub.f32 %v792, %v846
        %v857 = vsub.f32 %v793, %v846
        %v858 = vsub.f32 %v794, %v846
        %v859 = vadd.f32 %v850, 1e-05
        %v860 = vrsqrt.pop %v859
        %v861 = vmul.f32 %v860, %v859
        %v862 = vmul.f32 %v861, %v860
        %v863 = vmul.f32 0.5, %v862
        %v864 = vsub.f32 1.5, %v863
        %v865 = vmul.f32 %v860, %v864
        %vm866 = vweird.f32 %v859
        %vm867 = vweird.f32 %v860
        %vm868 = vmor %vm866, %vm867
        %v869 = vsel %vm868, %v860, %v865
        %v870 = vmul.f32 %v851, %v869
        %v871 = vmul.f32 %v852, %v869
        %v872 = vmul.f32 %v853, %v869
        %v873 = vmul.f32 %v854, %v869
        %v874 = vmul.f32 %v855, %v869
        %v875 = vmul.f32 %v856, %v869
        %v876 = vmul.f32 %v857, %v869
        %v877 = vmul.f32 %v858, %v869
        %v878 = vmax.f32 %v870, 0.0
        %v879 = vmax.f32 %v871, 0.0
        %v880 = vmax.f32 %v872, 0.0
        %v881 = vmax.f32 %v873, 0.0
        %v882 = vmax.f32 %v874, 0.0
        %v883 = vmax.f32 %v875, 0.0
        %v884 = vmax.f32 %v876, 0.0
        %v885 = vmax.f32 %v877, 0.0
        %v893 = vrot.slane %v878, 7
        %v894 = vrot.slane %v879, 7
        %v895 = vrot.slane %v880, 7
        %v896 = vrot.slane %v881, 7
        %v897 = vrot.slane %v882, 7
        %v898 = vrot.slane %v883, 7
        %v899 = vrot.slane %v884, 7
        %v907 = vsel %vm283, 0.0, %v893
        %v908 = vsel %vm283, 0.0, %v894
        %v909 = vsel %vm283, 0.0, %v895
        %v910 = vsel %vm283, 0.0, %v896
        %v911 = vsel %vm283, 0.0, %v897
        %v912 = vsel %vm283, 0.0, %v898
        %v913 = vsel %vm283, 0.0, %v899
        %v914 = vpack.c.bf16 %v907, %v284
        %v915 = vpack.c.bf16 %v909, %v908
        %v916 = vpack.c.bf16 %v911, %v910
        %v917 = vpack.c.bf16 %v913, %v912
        %v918 = vld [vmem:[%s2] sm:$0xf]
        %v919 = vpack.c.bf16 %v878, 0.0
        %v920 = vpack.c.bf16 %v880, %v879
        %v921 = vpack.c.bf16 %v882, %v881
        %v922 = vpack.c.bf16 %v884, %v883
        %s923 = scalar_lea.vmem %s2, 4
        %v924 = vld [vmem:[%s923] sm:$0xf]
        %v926 = vsel %vm795, %v919, 0
        %v929 = vsel %vm795, %v920, 0
        %v932 = vsel %vm795, %v921, 0
        %v935 = vsel %vm795, %v922, 0
        %vm937 = vcmask 1043456
        %v939 = vsel %vm937, %v924, 0
        %941 = vmatpush.bf16.msra.mxu0 0
        %942 = vmatpush.bf16.msra.mxu0 0
        %943 = vmatpush.bf16.msra.mxu0 0
        %944 = vmatpush.bf16.msra.mxu0 0
        %945 = vmatpush.bf16.msra.mxu0 0
        %946 = vmatpush.bf16.msra.mxu0 0
        %947 = vmatpush.bf16.msra.mxu0 0
        %948 = vmatpush.bf16.msra.mxu0 %v939
        %949 = vmatmul.bf16.gmra.mxu0 %v926
        %v950 = vpop.f32.mrf.mxu0
        %v951 = vadd.f32 0.0, %v950
        %v952 = vpop.f32.mrf.mxu0
        %v953 = vadd.f32 0.0, %v952
        %954 = vmatmul.bf16.gmra.mxu0 %v929
        %v955 = vpop.f32.mrf.mxu0
        %v956 = vadd.f32 0.0, %v955
        %v957 = vpop.f32.mrf.mxu0
        %v958 = vadd.f32 0.0, %v957
        %959 = vmatmul.bf16.gmra.mxu0 %v932
        %v960 = vpop.f32.mrf.mxu0
        %v961 = vadd.f32 0.0, %v960
        %v962 = vpop.f32.mrf.mxu0
        %v963 = vadd.f32 0.0, %v962
        %964 = vmatmul.bf16.gmra.mxu0 %v935
        %v965 = vpop.f32.mrf.mxu0
        %v966 = vadd.f32 0.0, %v965
        %v967 = vpop.f32.mrf.mxu0
        %v968 = vadd.f32 0.0, %v967
        %969 = vdwg.mxu0
        %v971 = vsel %vm795, %v914, 0
        %v974 = vsel %vm795, %v915, 0
        %v977 = vsel %vm795, %v916, 0
        %v980 = vsel %vm795, %v917, 0
        %v983 = vsel %vm937, %v918, 0
        %985 = vmatpush.bf16.msra.mxu0 0
        %986 = vmatpush.bf16.msra.mxu0 0
        %987 = vmatpush.bf16.msra.mxu0 0
        %988 = vmatpush.bf16.msra.mxu0 0
        %989 = vmatpush.bf16.msra.mxu0 0
        %990 = vmatpush.bf16.msra.mxu0 0
        %991 = vmatpush.bf16.msra.mxu0 0
        %992 = vmatpush.bf16.msra.mxu0 %v983
        %993 = vmatmul.bf16.gmra.mxu0 %v971
        %v994 = vpop.f32.mrf.mxu0
        %v995 = vadd.f32 %v951, %v994
        %v996 = vpop.f32.mrf.mxu0
        %v997 = vadd.f32 %v953, %v996
        %998 = vmatmul.bf16.gmra.mxu0 %v974
        %v999 = vpop.f32.mrf.mxu0
        %v1000 = vadd.f32 %v956, %v999
        %v1001 = vpop.f32.mrf.mxu0
        %v1002 = vadd.f32 %v958, %v1001
        %1003 = vmatmul.bf16.gmra.mxu0 %v977
        %v1004 = vpop.f32.mrf.mxu0
        %v1005 = vadd.f32 %v961, %v1004
        %v1006 = vpop.f32.mrf.mxu0
        %v1007 = vadd.f32 %v963, %v1006
        %1008 = vmatmul.bf16.gmra.mxu0 %v980
        %v1009 = vpop.f32.mrf.mxu0
        %v1010 = vadd.f32 %v966, %v1009
        %v1011 = vpop.f32.mrf.mxu0
        %v1012 = vadd.f32 %v968, %v1011
        %1013 = vdwg.mxu0
        %v1014 = vrot.slane %v878, 1
        %v1015 = vrot.slane %v879, 1
        %v1016 = vrot.slane %v880, 1
        %v1017 = vrot.slane %v881, 1
        %v1018 = vrot.slane %v882, 1
        %v1019 = vrot.slane %v883, 1
        %v1020 = vrot.slane %v884, 1
        %v1028 = vsel %vm409, %v1014, 0.0
        %v1029 = vsel %vm409, %v1015, 0.0
        %v1030 = vsel %vm409, %v1016, 0.0
        %v1031 = vsel %vm409, %v1017, 0.0
        %v1032 = vsel %vm409, %v1018, 0.0
        %v1033 = vsel %vm409, %v1019, 0.0
        %v1034 = vsel %vm409, %v1020, 0.0
        %v1035 = vpack.c.bf16 %v1028, %v410
        %v1036 = vpack.c.bf16 %v1030, %v1029
        %v1037 = vpack.c.bf16 %v1032, %v1031
        %v1038 = vpack.c.bf16 %v1034, %v1033
        %s1039 = scalar_lea.vmem %s2, 8
        %v1040 = vld [vmem:[%s1039] sm:$0xf]
        %v1042 = vsel %vm795, %v1035, 0
        %v1045 = vsel %vm795, %v1036, 0
        %v1048 = vsel %vm795, %v1037, 0
        %v1051 = vsel %vm795, %v1038, 0
        %v1054 = vsel %vm937, %v1040, 0
        %1056 = vmatpush.bf16.msra.mxu0 0
        %1057 = vmatpush.bf16.msra.mxu0 0
        %1058 = vmatpush.bf16.msra.mxu0 0
        %1059 = vmatpush.bf16.msra.mxu0 0
        %1060 = vmatpush.bf16.msra.mxu0 0
        %1061 = vmatpush.bf16.msra.mxu0 0
        %1062 = vmatpush.bf16.msra.mxu0 0
        %1063 = vmatpush.bf16.msra.mxu0 %v1054
        %1064 = vmatmul.bf16.gmra.mxu0 %v1042
        %v1065 = vpop.f32.mrf.mxu0
        %v1066 = vadd.f32 0.0, %v1065
        %v1067 = vpop.f32.mrf.mxu0
        %v1068 = vadd.f32 0.0, %v1067
        %1069 = vmatmul.bf16.gmra.mxu0 %v1045
        %v1070 = vpop.f32.mrf.mxu0
        %v1071 = vadd.f32 0.0, %v1070
        %v1072 = vpop.f32.mrf.mxu0
        %v1073 = vadd.f32 0.0, %v1072
        %1074 = vmatmul.bf16.gmra.mxu0 %v1048
        %v1075 = vpop.f32.mrf.mxu0
        %v1076 = vadd.f32 0.0, %v1075
        %v1077 = vpop.f32.mrf.mxu0
        %v1078 = vadd.f32 0.0, %v1077
        %1079 = vmatmul.bf16.gmra.mxu0 %v1051
        %v1080 = vpop.f32.mrf.mxu0
        %v1081 = vadd.f32 0.0, %v1080
        %v1082 = vpop.f32.mrf.mxu0
        %v1083 = vadd.f32 0.0, %v1082
        %1084 = vdwg.mxu0
        %v1085 = vadd.f32 %v995, %v1066
        %v1086 = vadd.f32 %v997, %v1068
        %v1087 = vadd.f32 %v1000, %v1071
        %v1088 = vadd.f32 %v1002, %v1073
        %v1089 = vadd.f32 %v1005, %v1076
        %v1090 = vadd.f32 %v1007, %v1078
        %v1091 = vadd.f32 %v1010, %v1081
        %v1092 = vadd.f32 %v1012, %v1083
        %v1094 = vrot.slane %v885, 7
        %v1096 = vsel %vm283, 0.0, %v1094
        %v1097 = vpack.c.bf16 %v908, %v907
        %v1098 = vpack.c.bf16 %v910, %v909
        %v1099 = vpack.c.bf16 %v912, %v911
        %v1100 = vpack.c.bf16 %v1096, %v913
        %s1101 = scalar_lea.vmem %s2, 12
        %v1102 = vld [vmem:[%s1101] sm:$0xf]
        %v1104 = vsel %vm795, %v1097, 0
        %v1107 = vsel %vm795, %v1098, 0
        %v1110 = vsel %vm795, %v1099, 0
        %v1113 = vsel %vm795, %v1100, 0
        %v1116 = vsel %vm937, %v1102, 0
        %1118 = vmatpush.bf16.msra.mxu0 0
        %1119 = vmatpush.bf16.msra.mxu0 0
        %1120 = vmatpush.bf16.msra.mxu0 0
        %1121 = vmatpush.bf16.msra.mxu0 0
        %1122 = vmatpush.bf16.msra.mxu0 0
        %1123 = vmatpush.bf16.msra.mxu0 0
        %1124 = vmatpush.bf16.msra.mxu0 0
        %1125 = vmatpush.bf16.msra.mxu0 %v1116
        %1126 = vmatmul.bf16.gmra.mxu0 %v1104
        %v1127 = vpop.f32.mrf.mxu0
        %v1128 = vadd.f32 0.0, %v1127
        %v1129 = vpop.f32.mrf.mxu0
        %v1130 = vadd.f32 0.0, %v1129
        %1131 = vmatmul.bf16.gmra.mxu0 %v1107
        %v1132 = vpop.f32.mrf.mxu0
        %v1133 = vadd.f32 0.0, %v1132
        %v1134 = vpop.f32.mrf.mxu0
        %v1135 = vadd.f32 0.0, %v1134
        %1136 = vmatmul.bf16.gmra.mxu0 %v1110
        %v1137 = vpop.f32.mrf.mxu0
        %v1138 = vadd.f32 0.0, %v1137
        %v1139 = vpop.f32.mrf.mxu0
        %v1140 = vadd.f32 0.0, %v1139
        %1141 = vmatmul.bf16.gmra.mxu0 %v1113
        %v1142 = vpop.f32.mrf.mxu0
        %v1143 = vadd.f32 0.0, %v1142
        %v1144 = vpop.f32.mrf.mxu0
        %v1145 = vadd.f32 0.0, %v1144
        %1146 = vdwg.mxu0
        %v1147 = vadd.f32 %v1085, %v1128
        %v1148 = vadd.f32 %v1086, %v1130
        %v1149 = vadd.f32 %v1087, %v1133
        %v1150 = vadd.f32 %v1088, %v1135
        %v1151 = vadd.f32 %v1089, %v1138
        %v1152 = vadd.f32 %v1090, %v1140
        %v1153 = vadd.f32 %v1091, %v1143
        %v1154 = vadd.f32 %v1092, %v1145
        %v1155 = vpack.c.bf16 %v879, %v878
        %v1156 = vpack.c.bf16 %v881, %v880
        %v1157 = vpack.c.bf16 %v883, %v882
        %v1158 = vpack.c.bf16 %v885, %v884
        %s1159 = scalar_lea.vmem %s2, 16
        %v1160 = vld [vmem:[%s1159] sm:$0xf]
        %v1162 = vsel %vm795, %v1155, 0
        %v1165 = vsel %vm795, %v1156, 0
        %v1168 = vsel %vm795, %v1157, 0
        %v1171 = vsel %vm795, %v1158, 0
        %v1174 = vsel %vm937, %v1160, 0
        %1176 = vmatpush.bf16.msra.mxu0 0
        %1177 = vmatpush.bf16.msra.mxu0 0
        %1178 = vmatpush.bf16.msra.mxu0 0
        %1179 = vmatpush.bf16.msra.mxu0 0
        %1180 = vmatpush.bf16.msra.mxu0 0
        %1181 = vmatpush.bf16.msra.mxu0 0
        %1182 = vmatpush.bf16.msra.mxu0 0
        %1183 = vmatpush.bf16.msra.mxu0 %v1174
        %1184 = vmatmul.bf16.gmra.mxu0 %v1162
        %v1185 = vpop.f32.mrf.mxu0
        %v1186 = vadd.f32 0.0, %v1185
        %v1187 = vpop.f32.mrf.mxu0
        %v1188 = vadd.f32 0.0, %v1187
        %1189 = vmatmul.bf16.gmra.mxu0 %v1165
        %v1190 = vpop.f32.mrf.mxu0
        %v1191 = vadd.f32 0.0, %v1190
        %v1192 = vpop.f32.mrf.mxu0
        %v1193 = vadd.f32 0.0, %v1192
        %1194 = vmatmul.bf16.gmra.mxu0 %v1168
        %v1195 = vpop.f32.mrf.mxu0
        %v1196 = vadd.f32 0.0, %v1195
        %v1197 = vpop.f32.mrf.mxu0
        %v1198 = vadd.f32 0.0, %v1197
        %1199 = vmatmul.bf16.gmra.mxu0 %v1171
        %v1200 = vpop.f32.mrf.mxu0
        %v1201 = vadd.f32 0.0, %v1200
        %v1202 = vpop.f32.mrf.mxu0
        %v1203 = vadd.f32 0.0, %v1202
        %1204 = vdwg.mxu0
        %v1205 = vadd.f32 %v1147, %v1186
        %v1206 = vadd.f32 %v1148, %v1188
        %v1207 = vadd.f32 %v1149, %v1191
        %v1208 = vadd.f32 %v1150, %v1193
        %v1209 = vadd.f32 %v1151, %v1196
        %v1210 = vadd.f32 %v1152, %v1198
        %v1211 = vadd.f32 %v1153, %v1201
        %v1212 = vadd.f32 %v1154, %v1203
        %v1213 = vrot.slane %v885, 1
        %v1215 = vsel %vm409, %v1213, 0.0
        %v1216 = vpack.c.bf16 %v1029, %v1028
        %v1217 = vpack.c.bf16 %v1031, %v1030
        %v1218 = vpack.c.bf16 %v1033, %v1032
        %v1219 = vpack.c.bf16 %v1215, %v1034
        %s1220 = scalar_lea.vmem %s2, 20
        %v1221 = vld [vmem:[%s1220] sm:$0xf]
        %v1223 = vsel %vm795, %v1216, 0
        %v1226 = vsel %vm795, %v1217, 0
        %v1229 = vsel %vm795, %v1218, 0
        %v1232 = vsel %vm795, %v1219, 0
        %v1235 = vsel %vm937, %v1221, 0
        %1237 = vmatpush.bf16.msra.mxu0 0
        %1238 = vmatpush.bf16.msra.mxu0 0
        %1239 = vmatpush.bf16.msra.mxu0 0
        %1240 = vmatpush.bf16.msra.mxu0 0
        %1241 = vmatpush.bf16.msra.mxu0 0
        %1242 = vmatpush.bf16.msra.mxu0 0
        %1243 = vmatpush.bf16.msra.mxu0 0
        %1244 = vmatpush.bf16.msra.mxu0 %v1235
        %1245 = vmatmul.bf16.gmra.mxu0 %v1223
        %v1246 = vpop.f32.mrf.mxu0
        %v1247 = vadd.f32 0.0, %v1246
        %v1248 = vpop.f32.mrf.mxu0
        %v1249 = vadd.f32 0.0, %v1248
        %1250 = vmatmul.bf16.gmra.mxu0 %v1226
        %v1251 = vpop.f32.mrf.mxu0
        %v1252 = vadd.f32 0.0, %v1251
        %v1253 = vpop.f32.mrf.mxu0
        %v1254 = vadd.f32 0.0, %v1253
        %1255 = vmatmul.bf16.gmra.mxu0 %v1229
        %v1256 = vpop.f32.mrf.mxu0
        %v1257 = vadd.f32 0.0, %v1256
        %v1258 = vpop.f32.mrf.mxu0
        %v1259 = vadd.f32 0.0, %v1258
        %1260 = vmatmul.bf16.gmra.mxu0 %v1232
        %v1261 = vpop.f32.mrf.mxu0
        %v1262 = vadd.f32 0.0, %v1261
        %v1263 = vpop.f32.mrf.mxu0
        %v1264 = vadd.f32 0.0, %v1263
        %1265 = vdwg.mxu0
        %v1266 = vadd.f32 %v1205, %v1247
        %v1267 = vadd.f32 %v1206, %v1249
        %v1268 = vadd.f32 %v1207, %v1252
        %v1269 = vadd.f32 %v1208, %v1254
        %v1270 = vadd.f32 %v1209, %v1257
        %v1271 = vadd.f32 %v1210, %v1259
        %v1272 = vadd.f32 %v1211, %v1262
        %v1273 = vadd.f32 %v1212, %v1264
        %v1274 = vpack.c.bf16 %v284, %v1096
        %s1275 = scalar_lea.vmem %s2, 24
        %v1276 = vld [vmem:[%s1275] sm:$0xf]
        %v1278 = vsel %vm795, %v1274, 0
        %v1281 = vsel %vm937, %v1276, 0
        %1283 = vmatpush.bf16.msra.mxu0 0
        %1284 = vmatpush.bf16.msra.mxu0 0
        %1285 = vmatpush.bf16.msra.mxu0 0
        %1286 = vmatpush.bf16.msra.mxu0 0
        %1287 = vmatpush.bf16.msra.mxu0 0
        %1288 = vmatpush.bf16.msra.mxu0 0
        %1289 = vmatpush.bf16.msra.mxu0 0
        %1290 = vmatpush.bf16.msra.mxu0 %v1281
        %1291 = vmatmul.bf16.gmra.mxu0 %v974
        %v1292 = vpop.f32.mrf.mxu0
        %v1293 = vadd.f32 0.0, %v1292
        %v1294 = vpop.f32.mrf.mxu0
        %v1295 = vadd.f32 0.0, %v1294
        %1296 = vmatmul.bf16.gmra.mxu0 %v977
        %v1297 = vpop.f32.mrf.mxu0
        %v1298 = vadd.f32 0.0, %v1297
        %v1299 = vpop.f32.mrf.mxu0
        %v1300 = vadd.f32 0.0, %v1299
        %1301 = vmatmul.bf16.gmra.mxu0 %v980
        %v1302 = vpop.f32.mrf.mxu0
        %v1303 = vadd.f32 0.0, %v1302
        %v1304 = vpop.f32.mrf.mxu0
        %v1305 = vadd.f32 0.0, %v1304
        %1306 = vmatmul.bf16.gmra.mxu0 %v1278
        %v1307 = vpop.f32.mrf.mxu0
        %v1308 = vadd.f32 0.0, %v1307
        %v1309 = vpop.f32.mrf.mxu0
        %v1310 = vadd.f32 0.0, %v1309
        %1311 = vdwg.mxu0
        %v1312 = vadd.f32 %v1266, %v1293
        %v1313 = vadd.f32 %v1267, %v1295
        %v1314 = vadd.f32 %v1268, %v1298
        %v1315 = vadd.f32 %v1269, %v1300
        %v1316 = vadd.f32 %v1270, %v1303
        %v1317 = vadd.f32 %v1271, %v1305
        %v1318 = vadd.f32 %v1272, %v1308
        %v1319 = vadd.f32 %v1273, %v1310
        %v1320 = vpack.c.bf16 0.0, %v885
        %s1321 = scalar_lea.vmem %s2, 28
        %v1322 = vld [vmem:[%s1321] sm:$0xf]
        %v1324 = vsel %vm795, %v1320, 0
        %v1327 = vsel %vm937, %v1322, 0
        %1329 = vmatpush.bf16.msra.mxu0 0
        %1330 = vmatpush.bf16.msra.mxu0 0
        %1331 = vmatpush.bf16.msra.mxu0 0
        %1332 = vmatpush.bf16.msra.mxu0 0
        %1333 = vmatpush.bf16.msra.mxu0 0
        %1334 = vmatpush.bf16.msra.mxu0 0
        %1335 = vmatpush.bf16.msra.mxu0 0
        %1336 = vmatpush.bf16.msra.mxu0 %v1327
        %1337 = vmatmul.bf16.gmra.mxu0 %v929
        %v1338 = vpop.f32.mrf.mxu0
        %v1339 = vadd.f32 0.0, %v1338
        %v1340 = vpop.f32.mrf.mxu0
        %v1341 = vadd.f32 0.0, %v1340
        %1342 = vmatmul.bf16.gmra.mxu0 %v932
        %v1343 = vpop.f32.mrf.mxu0
        %v1344 = vadd.f32 0.0, %v1343
        %v1345 = vpop.f32.mrf.mxu0
        %v1346 = vadd.f32 0.0, %v1345
        %1347 = vmatmul.bf16.gmra.mxu0 %v935
        %v1348 = vpop.f32.mrf.mxu0
        %v1349 = vadd.f32 0.0, %v1348
        %v1350 = vpop.f32.mrf.mxu0
        %v1351 = vadd.f32 0.0, %v1350
        %1352 = vmatmul.bf16.gmra.mxu0 %v1324
        %v1353 = vpop.f32.mrf.mxu0
        %v1354 = vadd.f32 0.0, %v1353
        %v1355 = vpop.f32.mrf.mxu0
        %v1356 = vadd.f32 0.0, %v1355
        %1357 = vdwg.mxu0
        %v1358 = vadd.f32 %v1312, %v1339
        %v1359 = vadd.f32 %v1313, %v1341
        %v1360 = vadd.f32 %v1314, %v1344
        %v1361 = vadd.f32 %v1315, %v1346
        %v1362 = vadd.f32 %v1316, %v1349
        %v1363 = vadd.f32 %v1317, %v1351
        %v1364 = vadd.f32 %v1318, %v1354
        %v1365 = vadd.f32 %v1319, %v1356
        %v1366 = vpack.c.bf16 %v410, %v1215
        %s1367 = scalar_lea.vmem %s2, 32
        %v1368 = vld [vmem:[%s1367] sm:$0xf]
        %v1370 = vsel %vm795, %v1366, 0
        %v1373 = vsel %vm937, %v1368, 0
        %1375 = vmatpush.bf16.msra.mxu0 0
        %1376 = vmatpush.bf16.msra.mxu0 0
        %1377 = vmatpush.bf16.msra.mxu0 0
        %1378 = vmatpush.bf16.msra.mxu0 0
        %1379 = vmatpush.bf16.msra.mxu0 0
        %1380 = vmatpush.bf16.msra.mxu0 0
        %1381 = vmatpush.bf16.msra.mxu0 0
        %1382 = vmatpush.bf16.msra.mxu0 %v1373
        %1383 = vmatmul.bf16.gmra.mxu0 %v1045
        %v1384 = vpop.f32.mrf.mxu0
        %v1385 = vadd.f32 0.0, %v1384
        %v1386 = vpop.f32.mrf.mxu0
        %v1387 = vadd.f32 0.0, %v1386
        %1388 = vmatmul.bf16.gmra.mxu0 %v1048
        %v1389 = vpop.f32.mrf.mxu0
        %v1390 = vadd.f32 0.0, %v1389
        %v1391 = vpop.f32.mrf.mxu0
        %v1392 = vadd.f32 0.0, %v1391
        %1393 = vmatmul.bf16.gmra.mxu0 %v1051
        %v1394 = vpop.f32.mrf.mxu0
        %v1395 = vadd.f32 0.0, %v1394
        %v1396 = vpop.f32.mrf.mxu0
        %v1397 = vadd.f32 0.0, %v1396
        %1398 = vmatmul.bf16.gmra.mxu0 %v1370
        %v1399 = vpop.f32.mrf.mxu0
        %v1400 = vadd.f32 0.0, %v1399
        %v1401 = vpop.f32.mrf.mxu0
        %v1402 = vadd.f32 0.0, %v1401
        %1403 = vdwg.mxu0
        %v1404 = vadd.f32 %v1358, %v1385
        %v1405 = vadd.f32 %v1359, %v1387
        %v1406 = vadd.f32 %v1360, %v1390
        %v1407 = vadd.f32 %v1361, %v1392
        %v1408 = vadd.f32 %v1362, %v1395
        %v1409 = vadd.f32 %v1363, %v1397
        %v1410 = vadd.f32 %v1364, %v1400
        %v1411 = vadd.f32 %v1365, %v1402
        %v1412 = vsel %vm795, %v1404, 0.0
        %v1413 = vsel %vm795, %v1405, 0.0
        %v1414 = vadd.f32 %v1412, %v1413
        %v1415 = vsel %vm795, %v1406, 0.0
        %v1416 = vadd.f32 %v1414, %v1415
        %v1417 = vsel %vm795, %v1407, 0.0
        %v1418 = vadd.f32 %v1416, %v1417
        %v1419 = vsel %vm795, %v1408, 0.0
        %v1420 = vadd.f32 %v1418, %v1419
        %v1421 = vsel %vm795, %v1409, 0.0
        %v1422 = vadd.f32 %v1420, %v1421
        %v1423 = vsel %vm795, %v1410, 0.0
        %v1424 = vadd.f32 %v1422, %v1423
        %v1425 = vsel %vm795, %v1411, 0.0
        %v1426 = vadd.f32 %v1424, %v1425
        %v1427 = vrot.slane %v1426, 4
        %v1428 = vadd.f32 %v1426, %v1427
        %v1429 = vrot.slane %v1428, 2
        %v1430 = vadd.f32 %v1428, %v1429
        %v1431 = vrot.slane %v1430, 1
        %v1432 = vadd.f32 %v1430, %v1431
        %v1433 = vmul.f32 %v1404, %v1404
        %v1434 = vmul.f32 %v1405, %v1405
        %v1435 = vmul.f32 %v1406, %v1406
        %v1436 = vmul.f32 %v1407, %v1407
        %v1437 = vmul.f32 %v1408, %v1408
        %v1438 = vmul.f32 %v1409, %v1409
        %v1439 = vmul.f32 %v1410, %v1410
        %v1440 = vmul.f32 %v1411, %v1411
        %v1441 = vsel %vm795, %v1433, 0.0
        %v1442 = vsel %vm795, %v1434, 0.0
        %v1443 = vadd.f32 %v1441, %v1442
        %v1444 = vsel %vm795, %v1435, 0.0
        %v1445 = vadd.f32 %v1443, %v1444
        %v1446 = vsel %vm795, %v1436, 0.0
        %v1447 = vadd.f32 %v1445, %v1446
        %v1448 = vsel %vm795, %v1437, 0.0
        %v1449 = vadd.f32 %v1447, %v1448
        %v1450 = vsel %vm795, %v1438, 0.0
        %v1451 = vadd.f32 %v1449, %v1450
        %v1452 = vsel %vm795, %v1439, 0.0
        %v1453 = vadd.f32 %v1451, %v1452
        %v1454 = vsel %vm795, %v1440, 0.0
        %v1455 = vadd.f32 %v1453, %v1454
        %v1456 = vrot.slane %v1455, 4
        %v1457 = vadd.f32 %v1455, %v1456
        %v1458 = vrot.slane %v1457, 2
        %v1459 = vadd.f32 %v1457, %v1458
        %v1460 = vrot.slane %v1459, 1
        %v1461 = vadd.f32 %v1459, %v1460
        %v1462 = vmul.f32 %v1432, 0.015625
        %v1463 = vmul.f32 %v1461, 0.015625
        %v1464 = vmul.f32 %v1462, %v1462
        %v1465 = vsub.f32 %v1463, %v1464
        %v1466 = vmax.f32 %v1465, 0.0
        %v1467 = vsub.f32 %v1404, %v1462
        %v1468 = vsub.f32 %v1405, %v1462
        %v1469 = vsub.f32 %v1406, %v1462
        %v1470 = vsub.f32 %v1407, %v1462
        %v1471 = vsub.f32 %v1408, %v1462
        %v1472 = vsub.f32 %v1409, %v1462
        %v1473 = vsub.f32 %v1410, %v1462
        %v1474 = vsub.f32 %v1411, %v1462
        %v1475 = vadd.f32 %v1466, 1e-05
        %v1476 = vrsqrt.pop %v1475
        %v1477 = vmul.f32 %v1476, %v1475
        %v1478 = vmul.f32 %v1477, %v1476
        %v1479 = vmul.f32 0.5, %v1478
        %v1480 = vsub.f32 1.5, %v1479
        %v1481 = vmul.f32 %v1476, %v1480
        %vm1482 = vweird.f32 %v1475
        %vm1483 = vweird.f32 %v1476
        %vm1484 = vmor %vm1482, %vm1483
        %v1485 = vsel %vm1484, %v1476, %v1481
        %v1486 = vmul.f32 %v1467, %v1485
        %v1487 = vmul.f32 %v1468, %v1485
        %v1488 = vmul.f32 %v1469, %v1485
        %v1489 = vmul.f32 %v1470, %v1485
        %v1490 = vmul.f32 %v1471, %v1485
        %v1491 = vmul.f32 %v1472, %v1485
        %v1492 = vmul.f32 %v1473, %v1485
        %v1493 = vmul.f32 %v1474, %v1485
        %v1494 = vmax.f32 %v1486, 0.0
        %v1495 = vmax.f32 %v1487, 0.0
        %v1496 = vmax.f32 %v1488, 0.0
        %v1497 = vmax.f32 %v1489, 0.0
        %v1498 = vmax.f32 %v1490, 0.0
        %v1499 = vmax.f32 %v1491, 0.0
        %v1500 = vmax.f32 %v1492, 0.0
        %v1501 = vmax.f32 %v1493, 0.0
        %1502 = vst.msk [vmem:[%s192] sm:$0xff] %vm795, %v1494
        %1503 = vst.msk [vmem:[%s192 + $0x8] sm:$0xff] %vm795, %v1495
        %1504 = vst.msk [vmem:[%s192 + $0x10] sm:$0xff] %vm795, %v1496
        %1505 = vst.msk [vmem:[%s192 + $0x18] sm:$0xff] %vm795, %v1497
        %1506 = vst.msk [vmem:[%s192 + $0x20] sm:$0xff] %vm795, %v1498
        %1507 = vst.msk [vmem:[%s192 + $0x28] sm:$0xff] %vm795, %v1499
        %1508 = vst.msk [vmem:[%s192 + $0x30] sm:$0xff] %vm795, %v1500
        %1509 = vst.msk [vmem:[%s192 + $0x38] sm:$0xff] %vm795, %v1501
        %p1510 = scmp.lt.s32.totalorder %s17, 1
        %s1511 = scalar_select %p1510, %s17, 1
        %s1512 = smul.addr %s1511, 8
        %s1513 = smul.addr %s1512, 8
        %s1514 = scalar_lea.vmem %s3, %s1513
        // Predicated region
        $region37: #{tpu_custom_call.1} parent=31 // pred_check
          %p1515 = pneg %p103
        $region38: #{tpu_custom_call.1} parent=31 // pred_check_branch
          %1517 = sbr.rel (%p1515) target = $region40
        $region39: #{tpu_custom_call.1} parent=31 // pred_region
          _
        $region40: #{tpu_custom_call.1} parent=31 // pred_fallthru
          _
      $region32: #{tpu_custom_call.1} parent=5 // pred_fallthru
        _
      %p1518 = scmp.le.s32.totalorder 2, %s12
      // Predicated region
      $region41: #{tpu_custom_call.1} parent=5 // pred_check
        %p1519 = pneg %p1518
      $region42: #{tpu_custom_call.1} parent=5 // pred_check_branch
        %1521 = sbr.rel (%p1519) target = $region44
      $region43: #{tpu_custom_call.1} parent=5 // pred_region
        %s1522 = ssub.s32 %s12, 2
        // Predicated region
        $region45: #{tpu_custom_call.1} parent=43 // pred_check
          %p1523 = pneg %p109
        $region46: #{tpu_custom_call.1} parent=43 // pred_check_branch
          %1525 = sbr.rel (%p1523) target = $region48
        $region47: #{tpu_custom_call.1} parent=43 // pred_region
          %p1526 = scmp.lt.s32.totalorder %s18, 1
          %s1527 = scalar_select %p1526, %s18, 1
          %s1528 = smul.addr %s1527, 8
          %s1529 = smul.addr %s1528, 8
          %s1530 = scalar_lea.vmem %s3, %s1529
        $region48: #{tpu_custom_call.1} parent=43 // pred_fallthru
          _
      $region44: #{tpu_custom_call.1} parent=5 // pred_fallthru
        _
    $region6: #{tpu_custom_call.1} parent=1 // loop_footer
      %s16 = sadd.s32 1, %s12
    $region7: #{tpu_custom_call.1} parent=1 // loop_footer_branch
      %11 = sbr.rel target = $region3
    $region8: #{tpu_custom_call.1} parent=1 // loop_exit
      _
    %1531 = vsyncpa [#allocation3], 1
    %s1532 = scalar_lea.sflag [#allocation3], 1
    %1533 = vsyncpa %s1532, 1

</llo_original>
